<compile_context>
chip_gen: v5e
topology: v5e:2x2
jax: 0.10.0
libtpu: 0.0.40
codegen_flags: <defaults>
</compile_context>

<pallas_src>
import jax
import jax.numpy as jnp
from jax.experimental import pallas as pl
from jax.experimental.pallas import tpu as pltpu

# ----------------------- small Vivit-like configuration -----------------------
B, T, C, H, W = 2, 4, 3, 16, 16          # batch, frames, channels, height, width
KT, KH, KW = 2, 8, 8                     # tubelet size (stride == kernel)
D = 32                                   # hidden size
NH = 4                                   # attention heads
HD = D // NH                             # head dim
FF = 64                                  # MLP intermediate size
NLAYERS = 3                              # num_hidden_layers=3 as in the module
NCLASS = 19                              # class_num=19 as in the module
NCLASS_PAD = 128                         # lane-dense classifier output
EPS = 1e-6                               # Vivit layer_norm_eps
NPATCH = (T // KT) * (H // KH) * (W // KW)   # tubelet patches per clip (= 8)
N = NPATCH + 1                           # real sequence length incl. CLS (= 9)
N_PAD = 16                               # padded sequence rows (2 f32 sublane tiles)
PATCH_DIM = C * KT * KH * KW             # 384
SCALE = 1.0 / (HD ** 0.5)
BF16 = jnp.bfloat16
F32 = jnp.float32


# ------------------------------ in-kernel helpers ------------------------------
def _layernorm(x, g, b):
    mu = jnp.mean(x, axis=-1, keepdims=True)
    var = jnp.mean((x - mu) ** 2, axis=-1, keepdims=True)
    return (x - mu) * jax.lax.rsqrt(var + EPS) * g + b


def _gelu_fast(x):
    # HF "gelu_fast": 0.5*x*(1 + tanh(sqrt(2/pi)*x*(1 + 0.044715*x^2)))
    return 0.5 * x * (1.0 + jnp.tanh(0.7978845608028654 * x * (1.0 + 0.044715 * x * x)))


def _softmax_rows(s):
    s = s - jnp.max(s, axis=-1, keepdims=True)
    e = jnp.exp(s)
    return e * pl.reciprocal(jnp.sum(e, axis=-1, keepdims=True), approx=True)


# --------------------------- the single fused kernel ---------------------------
def vivit_kernel(patches_ref, pw_ref, add_ref, lvec_ref,
                 wqkv_ref, wo_ref, w1_ref, w2_ref,
                 head_ref, clsw_ref, o_ref):
    # ---- tubelet patch embedding (Conv3d stride==kernel as one matmul).
    # patches row 0 and rows 9..15 are zero; add0 carries cls+pos[0] in row 0,
    # pos[i]+patch_bias in rows 1..8, zeros in padded rows -> no row scatter.
    x = jnp.dot(patches_ref[0], pw_ref[...],
                preferred_element_type=F32) + add_ref[...]            # (16, 32) f32

    # mask for padded key columns (columns N..N_PAD-1), built once
    kmask = jax.lax.broadcasted_iota(jnp.int32, (N_PAD, N_PAD), 1) < N

    # ---- statically unrolled encoder layers, weights resident in VMEM ----
    for l in range(NLAYERS):
        vec = lvec_ref[l]                      # (8, 128) f32 per-layer param slab
        ln1g, ln1b = vec[0:1, :D], vec[1:2, :D]
        ln2g, ln2b = vec[2:3, :D], vec[3:4, :D]
        bqkv = vec[4:5, :3 * D]
        bo = vec[5:6, :D]
        b1 = vec[6:7, :FF]
        b2 = vec[7:8, :D]

        # --- attention block (pre-LN); one lane-dense QKV matmul ---
        h = _layernorm(x, ln1g, ln1b).astype(BF16)                    # (16, 32)
        qkv = jnp.dot(h, wqkv_ref[l], preferred_element_type=F32) + bqkv  # (16, 96)
        # per-head scores / context with plain 2-D dots (Q scale pre-folded)
        ctx_cols = []
        for hd in range(NH):
            qh = qkv[:, hd * HD:(hd + 1) * HD].astype(BF16)           # (16, 8)
            kh = qkv[:, D + hd * HD:D + (hd + 1) * HD].astype(BF16)
            vh = qkv[:, 2 * D + hd * HD:2 * D + (hd + 1) * HD].astype(BF16)
            s = jax.lax.dot_general(qh, kh, (((1,), (1,)), ((), ())),
                                    preferred_element_type=F32)       # (16, 16)
            s = jnp.where(kmask, s, jnp.float32(-1e30))                # mask pad keys
            p = _softmax_rows(s)
            ctx_cols.append(jnp.dot(p.astype(BF16), vh,
                                    preferred_element_type=F32))      # (16, 8)
        ctx = jnp.concatenate(ctx_cols, axis=-1).astype(BF16)         # (16, 32)
        attn = jnp.dot(ctx, wo_ref[l], preferred_element_type=F32) + bo
        x = x + attn                                                  # residual 1

        # --- MLP block (pre-LN), f32 elementwise / bf16 matmul operands ---
        h2 = _layernorm(x, ln2g, ln2b).astype(BF16)
        m = _gelu_fast(jnp.dot(h2, w1_ref[l], preferred_element_type=F32) + b1)
        m = jnp.dot(m.astype(BF16), w2_ref[l], preferred_element_type=F32) + b2
        x = x + m                                                     # residual 2

    # ---- final LayerNorm + lane-dense classifier on first aligned 8-row tile
    # (row 0 is the CLS token; extra rows are discarded on the host) ----
    head = head_ref[...]
    lnf_g, lnf_b, cls_b = head[0:1, :D], head[1:2, :D], head[2:3, :]
    hf = _layernorm(x[0:8, :], lnf_g, lnf_b).astype(BF16)             # (8, 32)
    logits = jnp.dot(hf, clsw_ref[...], preferred_element_type=F32) + cls_b
    o_ref[0] = logits                                                 # (8, 128)


# ------------------------------ pallas_call wrapper ----------------------------
def _resident(shape):
    nd = len(shape)
    return pl.BlockSpec(shape, lambda b, nd=nd: (0,) * nd)


def vivit_forward_fused(patch_rows, pk):
    inputs = (patch_rows, pk["patch_w"], pk["add0"], pk["lvec"],
              pk["wqkv"], pk["wo"], pk["w1"], pk["w2"],
              pk["head"], pk["cls_w"])
    in_specs = [pl.BlockSpec((1, N_PAD, PATCH_DIM), lambda b: (b, 0, 0))]
    in_specs += [_resident(a.shape) for a in inputs[1:]]
    out = pl.pallas_call(
        vivit_kernel,
        out_shape=jax.ShapeDtypeStruct((B, 8, NCLASS_PAD), F32),
        grid=(B,),
        in_specs=in_specs,
        out_specs=pl.BlockSpec((1, 8, NCLASS_PAD), lambda b: (b, 0, 0)),
        compiler_params=pltpu.CompilerParams(dimension_semantics=("parallel",)),
    )(*inputs)
    return out[:, 0, :NCLASS]


# ------------------------------- glue (plain JAX) ------------------------------
def tubelet_im2col(x):
    # x: (B, T, C, H, W) -> (B, NPATCH, C*KT*KH*KW); patch order (t, h, w) matches
    # Conv3d(...).flatten(2).transpose(1, 2) in HF VivitEmbeddings.
    x = jnp.transpose(x, (0, 2, 1, 3, 4))                       # (B, C, T, H, W)
    x = x.reshape(B, C, T // KT, KT, H // KH, KH, W // KW, KW)
    x = jnp.transpose(x, (0, 2, 4, 6, 1, 3, 5, 7))              # (B,t,h,w,C,kt,kh,kw)
    return x.reshape(B, NPATCH, PATCH_DIM)


@jax.jit
def vit_model_forward(x, packed):
    patches = tubelet_im2col(x)
    patch_rows = jnp.zeros((B, N_PAD, PATCH_DIM), BF16)
    patch_rows = patch_rows.at[:, 1:1 + NPATCH, :].set(patches.astype(BF16))
    return vivit_forward_fused(patch_rows, packed)              # (B, NCLASS)


# ------------------------- deterministic parameter init ------------------------
def init_params(key):
    keys = iter(jax.random.split(key, 64))

    def dense(din, dout):
        w = 0.02 * jax.random.normal(next(keys), (din, dout), F32)
        b = jnp.zeros((1, dout), F32)
        return w, b

    p = {}
    p["patch_w"], p["patch_b"] = dense(PATCH_DIM, D)             # Conv3d as matmul
    p["cls"] = 0.02 * jax.random.normal(next(keys), (1, D), F32)
    p["pos"] = 0.02 * jax.random.normal(next(keys), (N, D), F32)

    layers = []
    for _ in range(NLAYERS):
        lyr = {"ln1g": jnp.ones((1, D), F32), "ln1b": jnp.zeros((1, D), F32),
               "ln2g": jnp.ones((1, D), F32), "ln2b": jnp.zeros((1, D), F32)}
        lyr["wq"], lyr["bq"] = dense(D, D)
        lyr["wk"], lyr["bk"] = dense(D, D)
        lyr["wv"], lyr["bv"] = dense(D, D)
        lyr["wo"], lyr["bo"] = dense(D, D)
        lyr["w1"], lyr["b1"] = dense(D, FF)
        lyr["w2"], lyr["b2"] = dense(FF, D)
        layers.append(lyr)
    p["layers"] = layers

    p["lnf_g"], p["lnf_b"] = jnp.ones((1, D), F32), jnp.zeros((1, D), F32)
    p["cls_w"], p["cls_b"] = dense(D, NCLASS)                    # nn.Linear(hidden, class_num)
    return p


def pack_params(p):
    bf = lambda a: a.astype(BF16)

    def lane_row(v):                       # (1, w) f32 -> (128,) zero-padded lanes
        r = jnp.zeros((128,), F32)
        return r.at[:v.shape[-1]].set(v.reshape(-1))

    # additive slab: row0 = cls + pos[0]; rows 1..8 = pos[i] + patch_bias; rest 0
    add0 = jnp.zeros((N_PAD, D), F32)
    add0 = add0.at[0, :].set(p["cls"][0] + p["pos"][0])
    add0 = add0.at[1:1 + NPATCH, :].set(p["pos"][1:N] + p["patch_b"])

    wqkv, wo, w1, w2, lvec = [], [], [], [], []
    for lyr in p["layers"]:
        # fold 1/sqrt(HD) into Q weights/bias in f32, BEFORE the bf16 cast
        wqkv.append(jnp.concatenate(
            [lyr["wq"] * SCALE, lyr["wk"], lyr["wv"]], axis=1))      # (D, 3D)
        bqkv = jnp.concatenate(
            [lyr["bq"] * SCALE, lyr["bk"], lyr["bv"]], axis=1)       # (1, 3D)
        wo.append(lyr["wo"])
        w1.append(lyr["w1"]); w2.append(lyr["w2"])
        lvec.append(jnp.stack([
            lane_row(lyr["ln1g"]), lane_row(lyr["ln1b"]),
            lane_row(lyr["ln2g"]), lane_row(lyr["ln2b"]),
            lane_row(bqkv), lane_row(lyr["bo"]),
            lane_row(lyr["b1"]), lane_row(lyr["b2"])]))              # (8, 128)

    head = jnp.zeros((8, 128), F32)
    head = head.at[0, :D].set(p["lnf_g"][0]).at[1, :D].set(p["lnf_b"][0])
    head = head.at[2, :NCLASS].set(p["cls_b"][0])

    cls_w = jnp.zeros((D, NCLASS_PAD), F32).at[:, :NCLASS].set(p["cls_w"])

    return {
        "patch_w": bf(p["patch_w"]),       # (384, 32) bf16
        "add0": add0,                      # (16, 32)  f32
        "lvec": jnp.stack(lvec),           # (L, 8, 128) f32 (LN params + biases)
        "wqkv": bf(jnp.stack(wqkv)),       # (L, 32, 96) bf16
        "wo": bf(jnp.stack(wo)),           # (L, 32, 32) bf16
        "w1": bf(jnp.stack(w1)),           # (L, 32, 64) bf16
        "w2": bf(jnp.stack(w2)),           # (L, 64, 32) bf16
        "head": head,                      # (8, 128)  f32 (lnf g/b + classifier bias)
        "cls_w": bf(cls_w),                # (32, 128) bf16
    }


# ------------------------------------ main -------------------------------------
if __name__ == "__main__":
    # TODO(synk): pretrained-weight loading (from_pretrained) has no Pallas
    # equivalent; deterministic random init with the same structure is used.
    key = jax.random.PRNGKey(0)
    kx, kp = jax.random.split(key)
    packed = pack_params(init_params(kp))
    x = jax.random.normal(kx, (B, T, C, H, W), F32)   # video: (B, frames, C, H, W)

    logits = vit_model_forward(x, packed)
    jax.block_until_ready(logits)

    assert logits.shape == (B, NCLASS), logits.shape
    assert logits.dtype == jnp.float32
    assert bool(jnp.all(jnp.isfinite(logits)))
    print("KERNEL_OK")
</pallas_src>

<mosaic_0001>
module attributes {stable_mosaic.version = 11 : i64} {
  func.func @vivit_kernel(%arg0: i32, %arg1: memref<1x16x384xbf16, #tpu.memory_space<vmem>>, %arg2: memref<384x32xbf16, #tpu.memory_space<vmem>>, %arg3: memref<16x32xf32, #tpu.memory_space<vmem>>, %arg4: memref<3x8x128xf32, #tpu.memory_space<vmem>>, %arg5: memref<3x32x96xbf16, #tpu.memory_space<vmem>>, %arg6: memref<3x32x32xbf16, #tpu.memory_space<vmem>>, %arg7: memref<3x32x64xbf16, #tpu.memory_space<vmem>>, %arg8: memref<3x64x32xbf16, #tpu.memory_space<vmem>>, %arg9: memref<8x128xf32, #tpu.memory_space<vmem>>, %arg10: memref<32x128xbf16, #tpu.memory_space<vmem>>, %arg11: memref<1x8x128xf32, #tpu.memory_space<vmem>>) attributes {dimension_semantics = [#tpu.dimension_semantics<parallel>], iteration_bounds = array<i64: 2>, scalar_prefetch = 0 : i64, scratch_operands = 0 : i64, tpu.core_type = #tpu.core_type<tc>, window_params = [{transform_indices = @transform_0, window_bounds = array<i64: 1, 16, 384>}, {pipeline_mode = #tpu.pipeline_mode<synchronous>, transform_indices = @transform_1, window_bounds = array<i64: 384, 32>}, {pipeline_mode = #tpu.pipeline_mode<synchronous>, transform_indices = @transform_2, window_bounds = array<i64: 16, 32>}, {pipeline_mode = #tpu.pipeline_mode<synchronous>, transform_indices = @transform_3, window_bounds = array<i64: 3, 8, 128>}, {pipeline_mode = #tpu.pipeline_mode<synchronous>, transform_indices = @transform_4, window_bounds = array<i64: 3, 32, 96>}, {pipeline_mode = #tpu.pipeline_mode<synchronous>, transform_indices = @transform_5, window_bounds = array<i64: 3, 32, 32>}, {pipeline_mode = #tpu.pipeline_mode<synchronous>, transform_indices = @transform_6, window_bounds = array<i64: 3, 32, 64>}, {pipeline_mode = #tpu.pipeline_mode<synchronous>, transform_indices = @transform_7, window_bounds = array<i64: 3, 64, 32>}, {pipeline_mode = #tpu.pipeline_mode<synchronous>, transform_indices = @transform_8, window_bounds = array<i64: 8, 128>}, {pipeline_mode = #tpu.pipeline_mode<synchronous>, transform_indices = @transform_9, window_bounds = array<i64: 32, 128>}, {transform_indices = @transform_10, window_bounds = array<i64: 1, 8, 128>}]} {
    %c0 = arith.constant 0 : index
    %c0_0 = arith.constant 0 : index
    %c0_1 = arith.constant 0 : index
    %0 = vector.load %arg1[%c0, %c0_0, %c0_1] : memref<1x16x384xbf16, #tpu.memory_space<vmem>>, vector<1x16x384xbf16>
    %1 = vector.shape_cast %0 : vector<1x16x384xbf16> to vector<16x384xbf16>
    %c0_2 = arith.constant 0 : index
    %c0_3 = arith.constant 0 : index
    %2 = vector.load %arg2[%c0_2, %c0_3] : memref<384x32xbf16, #tpu.memory_space<vmem>>, vector<384x32xbf16>
    %cst = arith.constant dense<0.000000e+00> : vector<16x32xf32>
    %3 = tpu.matmul %1, %2, %cst {dimension_numbers = #tpu.dot_dimension_numbers<[1], [0], [0], [1], [0, 0, 1, 1], [], []>} : vector<16x384xbf16>, vector<384x32xbf16>, vector<16x32xf32> -> vector<16x32xf32>
    %c0_4 = arith.constant 0 : index
    %c0_5 = arith.constant 0 : index
    %4 = vector.load %arg3[%c0_4, %c0_5] : memref<16x32xf32, #tpu.memory_space<vmem>>, vector<16x32xf32>
    %5 = arith.addf %3, %4 : vector<16x32xf32>
    %6 = tpu.iota {dimensions = array<i32: 1>} : vector<16x16xi32>
    %c9_i32 = arith.constant 9 : i32
    %7 = vector.broadcast %c9_i32 : i32 to vector<16x16xi32>
    %8 = arith.cmpi slt, %6, %7 : vector<16x16xi32>
    %c0_6 = arith.constant 0 : index
    %c0_7 = arith.constant 0 : index
    %c0_8 = arith.constant 0 : index
    %9 = vector.load %arg4[%c0_6, %c0_7, %c0_8] : memref<3x8x128xf32, #tpu.memory_space<vmem>>, vector<1x8x128xf32>
    %10 = vector.shape_cast %9 : vector<1x8x128xf32> to vector<8x128xf32>
    %11 = vector.extract_strided_slice %10 {offsets = [0, 0], sizes = [1, 32], strides = [1, 1]} : vector<8x128xf32> to vector<1x32xf32>
    %12 = vector.extract_strided_slice %10 {offsets = [1, 0], sizes = [1, 32], strides = [1, 1]} : vector<8x128xf32> to vector<1x32xf32>
    %13 = vector.extract_strided_slice %10 {offsets = [2, 0], sizes = [1, 32], strides = [1, 1]} : vector<8x128xf32> to vector<1x32xf32>
    %14 = vector.extract_strided_slice %10 {offsets = [3, 0], sizes = [1, 32], strides = [1, 1]} : vector<8x128xf32> to vector<1x32xf32>
    %15 = vector.extract_strided_slice %10 {offsets = [4, 0], sizes = [1, 96], strides = [1, 1]} : vector<8x128xf32> to vector<1x96xf32>
    %16 = vector.extract_strided_slice %10 {offsets = [5, 0], sizes = [1, 32], strides = [1, 1]} : vector<8x128xf32> to vector<1x32xf32>
    %17 = vector.extract_strided_slice %10 {offsets = [6, 0], sizes = [1, 64], strides = [1, 1]} : vector<8x128xf32> to vector<1x64xf32>
    %18 = vector.extract_strided_slice %10 {offsets = [7, 0], sizes = [1, 32], strides = [1, 1]} : vector<8x128xf32> to vector<1x32xf32>
    %cst_9 = arith.constant dense<0.000000e+00> : vector<16xf32>
    %19 = vector.multi_reduction <add>, %5, %cst_9 [1] : vector<16x32xf32> to vector<16xf32>
    %20 = vector.shape_cast %19 : vector<16xf32> to vector<16x1xf32>
    %cst_10 = arith.constant 3.200000e+01 : f32
    %21 = vector.broadcast %cst_10 : f32 to vector<16x1xf32>
    %22 = arith.divf %20, %21 : vector<16x1xf32>
    %23 = vector.broadcast %22 : vector<16x1xf32> to vector<16x32xf32>
    %24 = arith.subf %5, %23 : vector<16x32xf32>
    %25 = arith.mulf %24, %24 : vector<16x32xf32>
    %cst_11 = arith.constant dense<0.000000e+00> : vector<16xf32>
    %26 = vector.multi_reduction <add>, %25, %cst_11 [1] : vector<16x32xf32> to vector<16xf32>
    %27 = vector.shape_cast %26 : vector<16xf32> to vector<16x1xf32>
    %cst_12 = arith.constant 3.200000e+01 : f32
    %28 = vector.broadcast %cst_12 : f32 to vector<16x1xf32>
    %29 = arith.divf %27, %28 : vector<16x1xf32>
    %30 = vector.broadcast %22 : vector<16x1xf32> to vector<16x32xf32>
    %31 = arith.subf %5, %30 : vector<16x32xf32>
    %cst_13 = arith.constant 9.99999997E-7 : f32
    %32 = vector.broadcast %cst_13 : f32 to vector<16x1xf32>
    %33 = arith.addf %29, %32 : vector<16x1xf32>
    %34 = math.rsqrt %33 : vector<16x1xf32>
    %35 = vector.broadcast %34 : vector<16x1xf32> to vector<16x32xf32>
    %36 = arith.mulf %31, %35 : vector<16x32xf32>
    %37 = vector.broadcast %11 : vector<1x32xf32> to vector<16x32xf32>
    %38 = arith.mulf %36, %37 : vector<16x32xf32>
    %39 = vector.broadcast %12 : vector<1x32xf32> to vector<16x32xf32>
    %40 = arith.addf %38, %39 : vector<16x32xf32>
    %41 = arith.truncf %40 : vector<16x32xf32> to vector<16x32xbf16>
    %c0_14 = arith.constant 0 : index
    %c0_15 = arith.constant 0 : index
    %c0_16 = arith.constant 0 : index
    %42 = vector.load %arg5[%c0_14, %c0_15, %c0_16] : memref<3x32x96xbf16, #tpu.memory_space<vmem>>, vector<1x32x96xbf16>
    %43 = vector.shape_cast %42 : vector<1x32x96xbf16> to vector<32x96xbf16>
    %cst_17 = arith.constant dense<0.000000e+00> : vector<16x96xf32>
    %44 = tpu.matmul %41, %43, %cst_17 {dimension_numbers = #tpu.dot_dimension_numbers<[1], [0], [0], [1], [0, 0, 1, 1], [], []>} : vector<16x32xbf16>, vector<32x96xbf16>, vector<16x96xf32> -> vector<16x96xf32>
    %45 = vector.broadcast %15 : vector<1x96xf32> to vector<16x96xf32>
    %46 = arith.addf %44, %45 : vector<16x96xf32>
    %47 = vector.extract_strided_slice %46 {offsets = [0, 0], sizes = [16, 8], strides = [1, 1]} : vector<16x96xf32> to vector<16x8xf32>
    %48 = arith.truncf %47 : vector<16x8xf32> to vector<16x8xbf16>
    %49 = vector.extract_strided_slice %46 {offsets = [0, 32], sizes = [16, 8], strides = [1, 1]} : vector<16x96xf32> to vector<16x8xf32>
    %50 = arith.truncf %49 : vector<16x8xf32> to vector<16x8xbf16>
    %51 = vector.extract_strided_slice %46 {offsets = [0, 64], sizes = [16, 8], strides = [1, 1]} : vector<16x96xf32> to vector<16x8xf32>
    %52 = arith.truncf %51 : vector<16x8xf32> to vector<16x8xbf16>
    %cst_18 = arith.constant dense<0.000000e+00> : vector<16x16xf32>
    %53 = tpu.matmul %48, %50, %cst_18 {dimension_numbers = #tpu.dot_dimension_numbers<[1], [1], [0], [0], [0, 0, 1, 0], [], []>} : vector<16x8xbf16>, vector<16x8xbf16>, vector<16x16xf32> -> vector<16x16xf32>
    %cst_19 = arith.constant -1.000000e+30 : f32
    %54 = vector.broadcast %cst_19 : f32 to vector<16x16xf32>
    %55 = arith.select %8, %53, %54 : vector<16x16xi1>, vector<16x16xf32>
    %cst_20 = arith.constant dense<0xFF800000> : vector<16xf32>
    %56 = vector.multi_reduction <maximumf>, %55, %cst_20 [1] : vector<16x16xf32> to vector<16xf32>
    %57 = vector.shape_cast %56 : vector<16xf32> to vector<16x1xf32>
    %58 = vector.broadcast %57 : vector<16x1xf32> to vector<16x16xf32>
    %59 = arith.subf %55, %58 : vector<16x16xf32>
    %60 = math.exp %59 : vector<16x16xf32>
    %cst_21 = arith.constant dense<0.000000e+00> : vector<16xf32>
    %61 = vector.multi_reduction <add>, %60, %cst_21 [1] : vector<16x16xf32> to vector<16xf32>
    %62 = vector.shape_cast %61 : vector<16xf32> to vector<16x1xf32>
    %63 = tpu.reciprocal %62 {approx = true} : vector<16x1xf32> -> vector<16x1xf32>
    %64 = vector.broadcast %63 : vector<16x1xf32> to vector<16x16xf32>
    %65 = arith.mulf %60, %64 : vector<16x16xf32>
    %66 = arith.truncf %65 : vector<16x16xf32> to vector<16x16xbf16>
    %cst_22 = arith.constant dense<0.000000e+00> : vector<16x8xf32>
    %67 = tpu.matmul %66, %52, %cst_22 {dimension_numbers = #tpu.dot_dimension_numbers<[1], [0], [0], [1], [0, 0, 1, 1], [], []>} : vector<16x16xbf16>, vector<16x8xbf16>, vector<16x8xf32> -> vector<16x8xf32>
    %68 = vector.extract_strided_slice %46 {offsets = [0, 8], sizes = [16, 8], strides = [1, 1]} : vector<16x96xf32> to vector<16x8xf32>
    %69 = arith.truncf %68 : vector<16x8xf32> to vector<16x8xbf16>
    %70 = vector.extract_strided_slice %46 {offsets = [0, 40], sizes = [16, 8], strides = [1, 1]} : vector<16x96xf32> to vector<16x8xf32>
    %71 = arith.truncf %70 : vector<16x8xf32> to vector<16x8xbf16>
    %72 = vector.extract_strided_slice %46 {offsets = [0, 72], sizes = [16, 8], strides = [1, 1]} : vector<16x96xf32> to vector<16x8xf32>
    %73 = arith.truncf %72 : vector<16x8xf32> to vector<16x8xbf16>
    %cst_23 = arith.constant dense<0.000000e+00> : vector<16x16xf32>
    %74 = tpu.matmul %69, %71, %cst_23 {dimension_numbers = #tpu.dot_dimension_numbers<[1], [1], [0], [0], [0, 0, 1, 0], [], []>} : vector<16x8xbf16>, vector<16x8xbf16>, vector<16x16xf32> -> vector<16x16xf32>
    %cst_24 = arith.constant -1.000000e+30 : f32
    %75 = vector.broadcast %cst_24 : f32 to vector<16x16xf32>
    %76 = arith.select %8, %74, %75 : vector<16x16xi1>, vector<16x16xf32>
    %cst_25 = arith.constant dense<0xFF800000> : vector<16xf32>
    %77 = vector.multi_reduction <maximumf>, %76, %cst_25 [1] : vector<16x16xf32> to vector<16xf32>
    %78 = vector.shape_cast %77 : vector<16xf32> to vector<16x1xf32>
    %79 = vector.broadcast %78 : vector<16x1xf32> to vector<16x16xf32>
    %80 = arith.subf %76, %79 : vector<16x16xf32>
    %81 = math.exp %80 : vector<16x16xf32>
    %cst_26 = arith.constant dense<0.000000e+00> : vector<16xf32>
    %82 = vector.multi_reduction <add>, %81, %cst_26 [1] : vector<16x16xf32> to vector<16xf32>
    %83 = vector.shape_cast %82 : vector<16xf32> to vector<16x1xf32>
    %84 = tpu.reciprocal %83 {approx = true} : vector<16x1xf32> -> vector<16x1xf32>
    %85 = vector.broadcast %84 : vector<16x1xf32> to vector<16x16xf32>
    %86 = arith.mulf %81, %85 : vector<16x16xf32>
    %87 = arith.truncf %86 : vector<16x16xf32> to vector<16x16xbf16>
    %cst_27 = arith.constant dense<0.000000e+00> : vector<16x8xf32>
    %88 = tpu.matmul %87, %73, %cst_27 {dimension_numbers = #tpu.dot_dimension_numbers<[1], [0], [0], [1], [0, 0, 1, 1], [], []>} : vector<16x16xbf16>, vector<16x8xbf16>, vector<16x8xf32> -> vector<16x8xf32>
    %89 = vector.extract_strided_slice %46 {offsets = [0, 16], sizes = [16, 8], strides = [1, 1]} : vector<16x96xf32> to vector<16x8xf32>
    %90 = arith.truncf %89 : vector<16x8xf32> to vector<16x8xbf16>
    %91 = vector.extract_strided_slice %46 {offsets = [0, 48], sizes = [16, 8], strides = [1, 1]} : vector<16x96xf32> to vector<16x8xf32>
    %92 = arith.truncf %91 : vector<16x8xf32> to vector<16x8xbf16>
    %93 = vector.extract_strided_slice %46 {offsets = [0, 80], sizes = [16, 8], strides = [1, 1]} : vector<16x96xf32> to vector<16x8xf32>
    %94 = arith.truncf %93 : vector<16x8xf32> to vector<16x8xbf16>
    %cst_28 = arith.constant dense<0.000000e+00> : vector<16x16xf32>
    %95 = tpu.matmul %90, %92, %cst_28 {dimension_numbers = #tpu.dot_dimension_numbers<[1], [1], [0], [0], [0, 0, 1, 0], [], []>} : vector<16x8xbf16>, vector<16x8xbf16>, vector<16x16xf32> -> vector<16x16xf32>
    %cst_29 = arith.constant -1.000000e+30 : f32
    %96 = vector.broadcast %cst_29 : f32 to vector<16x16xf32>
    %97 = arith.select %8, %95, %96 : vector<16x16xi1>, vector<16x16xf32>
    %cst_30 = arith.constant dense<0xFF800000> : vector<16xf32>
    %98 = vector.multi_reduction <maximumf>, %97, %cst_30 [1] : vector<16x16xf32> to vector<16xf32>
    %99 = vector.shape_cast %98 : vector<16xf32> to vector<16x1xf32>
    %100 = vector.broadcast %99 : vector<16x1xf32> to vector<16x16xf32>
    %101 = arith.subf %97, %100 : vector<16x16xf32>
    %102 = math.exp %101 : vector<16x16xf32>
    %cst_31 = arith.constant dense<0.000000e+00> : vector<16xf32>
    %103 = vector.multi_reduction <add>, %102, %cst_31 [1] : vector<16x16xf32> to vector<16xf32>
    %104 = vector.shape_cast %103 : vector<16xf32> to vector<16x1xf32>
    %105 = tpu.reciprocal %104 {approx = true} : vector<16x1xf32> -> vector<16x1xf32>
    %106 = vector.broadcast %105 : vector<16x1xf32> to vector<16x16xf32>
    %107 = arith.mulf %102, %106 : vector<16x16xf32>
    %108 = arith.truncf %107 : vector<16x16xf32> to vector<16x16xbf16>
    %cst_32 = arith.constant dense<0.000000e+00> : vector<16x8xf32>
    %109 = tpu.matmul %108, %94, %cst_32 {dimension_numbers = #tpu.dot_dimension_numbers<[1], [0], [0], [1], [0, 0, 1, 1], [], []>} : vector<16x16xbf16>, vector<16x8xbf16>, vector<16x8xf32> -> vector<16x8xf32>
    %110 = vector.extract_strided_slice %46 {offsets = [0, 24], sizes = [16, 8], strides = [1, 1]} : vector<16x96xf32> to vector<16x8xf32>
    %111 = arith.truncf %110 : vector<16x8xf32> to vector<16x8xbf16>
    %112 = vector.extract_strided_slice %46 {offsets = [0, 56], sizes = [16, 8], strides = [1, 1]} : vector<16x96xf32> to vector<16x8xf32>
    %113 = arith.truncf %112 : vector<16x8xf32> to vector<16x8xbf16>
    %114 = vector.extract_strided_slice %46 {offsets = [0, 88], sizes = [16, 8], strides = [1, 1]} : vector<16x96xf32> to vector<16x8xf32>
    %115 = arith.truncf %114 : vector<16x8xf32> to vector<16x8xbf16>
    %cst_33 = arith.constant dense<0.000000e+00> : vector<16x16xf32>
    %116 = tpu.matmul %111, %113, %cst_33 {dimension_numbers = #tpu.dot_dimension_numbers<[1], [1], [0], [0], [0, 0, 1, 0], [], []>} : vector<16x8xbf16>, vector<16x8xbf16>, vector<16x16xf32> -> vector<16x16xf32>
    %cst_34 = arith.constant -1.000000e+30 : f32
    %117 = vector.broadcast %cst_34 : f32 to vector<16x16xf32>
    %118 = arith.select %8, %116, %117 : vector<16x16xi1>, vector<16x16xf32>
    %cst_35 = arith.constant dense<0xFF800000> : vector<16xf32>
    %119 = vector.multi_reduction <maximumf>, %118, %cst_35 [1] : vector<16x16xf32> to vector<16xf32>
    %120 = vector.shape_cast %119 : vector<16xf32> to vector<16x1xf32>
    %121 = vector.broadcast %120 : vector<16x1xf32> to vector<16x16xf32>
    %122 = arith.subf %118, %121 : vector<16x16xf32>
    %123 = math.exp %122 : vector<16x16xf32>
    %cst_36 = arith.constant dense<0.000000e+00> : vector<16xf32>
    %124 = vector.multi_reduction <add>, %123, %cst_36 [1] : vector<16x16xf32> to vector<16xf32>
    %125 = vector.shape_cast %124 : vector<16xf32> to vector<16x1xf32>
    %126 = tpu.reciprocal %125 {approx = true} : vector<16x1xf32> -> vector<16x1xf32>
    %127 = vector.broadcast %126 : vector<16x1xf32> to vector<16x16xf32>
    %128 = arith.mulf %123, %127 : vector<16x16xf32>
    %129 = arith.truncf %128 : vector<16x16xf32> to vector<16x16xbf16>
    %cst_37 = arith.constant dense<0.000000e+00> : vector<16x8xf32>
    %130 = tpu.matmul %129, %115, %cst_37 {dimension_numbers = #tpu.dot_dimension_numbers<[1], [0], [0], [1], [0, 0, 1, 1], [], []>} : vector<16x16xbf16>, vector<16x8xbf16>, vector<16x8xf32> -> vector<16x8xf32>
    %131 = tpu.concatenate %67, %88, %109, %130 in 1 : vector<16x8xf32>, vector<16x8xf32>, vector<16x8xf32>, vector<16x8xf32> -> vector<16x32xf32>
    %132 = arith.truncf %131 : vector<16x32xf32> to vector<16x32xbf16>
    %c0_38 = arith.constant 0 : index
    %c0_39 = arith.constant 0 : index
    %c0_40 = arith.constant 0 : index
    %133 = vector.load %arg6[%c0_38, %c0_39, %c0_40] : memref<3x32x32xbf16, #tpu.memory_space<vmem>>, vector<1x32x32xbf16>
    %134 = vector.shape_cast %133 : vector<1x32x32xbf16> to vector<32x32xbf16>
    %cst_41 = arith.constant dense<0.000000e+00> : vector<16x32xf32>
    %135 = tpu.matmul %132, %134, %cst_41 {dimension_numbers = #tpu.dot_dimension_numbers<[1], [0], [0], [1], [0, 0, 1, 1], [], []>} : vector<16x32xbf16>, vector<32x32xbf16>, vector<16x32xf32> -> vector<16x32xf32>
    %136 = vector.broadcast %16 : vector<1x32xf32> to vector<16x32xf32>
    %137 = arith.addf %135, %136 : vector<16x32xf32>
    %138 = arith.addf %5, %137 : vector<16x32xf32>
    %cst_42 = arith.constant dense<0.000000e+00> : vector<16xf32>
    %139 = vector.multi_reduction <add>, %138, %cst_42 [1] : vector<16x32xf32> to vector<16xf32>
    %140 = vector.shape_cast %139 : vector<16xf32> to vector<16x1xf32>
    %cst_43 = arith.constant 3.200000e+01 : f32
    %141 = vector.broadcast %cst_43 : f32 to vector<16x1xf32>
    %142 = arith.divf %140, %141 : vector<16x1xf32>
    %143 = vector.broadcast %142 : vector<16x1xf32> to vector<16x32xf32>
    %144 = arith.subf %138, %143 : vector<16x32xf32>
    %145 = arith.mulf %144, %144 : vector<16x32xf32>
    %cst_44 = arith.constant dense<0.000000e+00> : vector<16xf32>
    %146 = vector.multi_reduction <add>, %145, %cst_44 [1] : vector<16x32xf32> to vector<16xf32>
    %147 = vector.shape_cast %146 : vector<16xf32> to vector<16x1xf32>
    %cst_45 = arith.constant 3.200000e+01 : f32
    %148 = vector.broadcast %cst_45 : f32 to vector<16x1xf32>
    %149 = arith.divf %147, %148 : vector<16x1xf32>
    %150 = vector.broadcast %142 : vector<16x1xf32> to vector<16x32xf32>
    %151 = arith.subf %138, %150 : vector<16x32xf32>
    %cst_46 = arith.constant 9.99999997E-7 : f32
    %152 = vector.broadcast %cst_46 : f32 to vector<16x1xf32>
    %153 = arith.addf %149, %152 : vector<16x1xf32>
    %154 = math.rsqrt %153 : vector<16x1xf32>
    %155 = vector.broadcast %154 : vector<16x1xf32> to vector<16x32xf32>
    %156 = arith.mulf %151, %155 : vector<16x32xf32>
    %157 = vector.broadcast %13 : vector<1x32xf32> to vector<16x32xf32>
    %158 = arith.mulf %156, %157 : vector<16x32xf32>
    %159 = vector.broadcast %14 : vector<1x32xf32> to vector<16x32xf32>
    %160 = arith.addf %158, %159 : vector<16x32xf32>
    %161 = arith.truncf %160 : vector<16x32xf32> to vector<16x32xbf16>
    %c0_47 = arith.constant 0 : index
    %c0_48 = arith.constant 0 : index
    %c0_49 = arith.constant 0 : index
    %162 = vector.load %arg7[%c0_47, %c0_48, %c0_49] : memref<3x32x64xbf16, #tpu.memory_space<vmem>>, vector<1x32x64xbf16>
    %163 = vector.shape_cast %162 : vector<1x32x64xbf16> to vector<32x64xbf16>
    %cst_50 = arith.constant dense<0.000000e+00> : vector<16x64xf32>
    %164 = tpu.matmul %161, %163, %cst_50 {dimension_numbers = #tpu.dot_dimension_numbers<[1], [0], [0], [1], [0, 0, 1, 1], [], []>} : vector<16x32xbf16>, vector<32x64xbf16>, vector<16x64xf32> -> vector<16x64xf32>
    %165 = vector.broadcast %17 : vector<1x64xf32> to vector<16x64xf32>
    %166 = arith.addf %164, %165 : vector<16x64xf32>
    %cst_51 = arith.constant 5.000000e-01 : f32
    %167 = vector.broadcast %cst_51 : f32 to vector<16x64xf32>
    %168 = arith.mulf %167, %166 : vector<16x64xf32>
    %cst_52 = arith.constant 0.797884583 : f32
    %169 = vector.broadcast %cst_52 : f32 to vector<16x64xf32>
    %170 = arith.mulf %169, %166 : vector<16x64xf32>
    %cst_53 = arith.constant 4.471500e-02 : f32
    %171 = vector.broadcast %cst_53 : f32 to vector<16x64xf32>
    %172 = arith.mulf %171, %166 : vector<16x64xf32>
    %173 = arith.mulf %172, %166 : vector<16x64xf32>
    %cst_54 = arith.constant 1.000000e+00 : f32
    %174 = vector.broadcast %cst_54 : f32 to vector<16x64xf32>
    %175 = arith.addf %174, %173 : vector<16x64xf32>
    %176 = arith.mulf %170, %175 : vector<16x64xf32>
    %177 = math.tanh %176 : vector<16x64xf32>
    %cst_55 = arith.constant 1.000000e+00 : f32
    %178 = vector.broadcast %cst_55 : f32 to vector<16x64xf32>
    %179 = arith.addf %178, %177 : vector<16x64xf32>
    %180 = arith.mulf %168, %179 : vector<16x64xf32>
    %181 = arith.truncf %180 : vector<16x64xf32> to vector<16x64xbf16>
    %c0_56 = arith.constant 0 : index
    %c0_57 = arith.constant 0 : index
    %c0_58 = arith.constant 0 : index
    %182 = vector.load %arg8[%c0_56, %c0_57, %c0_58] : memref<3x64x32xbf16, #tpu.memory_space<vmem>>, vector<1x64x32xbf16>
    %183 = vector.shape_cast %182 : vector<1x64x32xbf16> to vector<64x32xbf16>
    %cst_59 = arith.constant dense<0.000000e+00> : vector<16x32xf32>
    %184 = tpu.matmul %181, %183, %cst_59 {dimension_numbers = #tpu.dot_dimension_numbers<[1], [0], [0], [1], [0, 0, 1, 1], [], []>} : vector<16x64xbf16>, vector<64x32xbf16>, vector<16x32xf32> -> vector<16x32xf32>
    %185 = vector.broadcast %18 : vector<1x32xf32> to vector<16x32xf32>
    %186 = arith.addf %184, %185 : vector<16x32xf32>
    %187 = arith.addf %138, %186 : vector<16x32xf32>
    %c1 = arith.constant 1 : index
    %c0_60 = arith.constant 0 : index
    %c0_61 = arith.constant 0 : index
    %188 = vector.load %arg4[%c1, %c0_60, %c0_61] : memref<3x8x128xf32, #tpu.memory_space<vmem>>, vector<1x8x128xf32>
    %189 = vector.shape_cast %188 : vector<1x8x128xf32> to vector<8x128xf32>
    %190 = vector.extract_strided_slice %189 {offsets = [0, 0], sizes = [1, 32], strides = [1, 1]} : vector<8x128xf32> to vector<1x32xf32>
    %191 = vector.extract_strided_slice %189 {offsets = [1, 0], sizes = [1, 32], strides = [1, 1]} : vector<8x128xf32> to vector<1x32xf32>
    %192 = vector.extract_strided_slice %189 {offsets = [2, 0], sizes = [1, 32], strides = [1, 1]} : vector<8x128xf32> to vector<1x32xf32>
    %193 = vector.extract_strided_slice %189 {offsets = [3, 0], sizes = [1, 32], strides = [1, 1]} : vector<8x128xf32> to vector<1x32xf32>
    %194 = vector.extract_strided_slice %189 {offsets = [4, 0], sizes = [1, 96], strides = [1, 1]} : vector<8x128xf32> to vector<1x96xf32>
    %195 = vector.extract_strided_slice %189 {offsets = [5, 0], sizes = [1, 32], strides = [1, 1]} : vector<8x128xf32> to vector<1x32xf32>
    %196 = vector.extract_strided_slice %189 {offsets = [6, 0], sizes = [1, 64], strides = [1, 1]} : vector<8x128xf32> to vector<1x64xf32>
    %197 = vector.extract_strided_slice %189 {offsets = [7, 0], sizes = [1, 32], strides = [1, 1]} : vector<8x128xf32> to vector<1x32xf32>
    %cst_62 = arith.constant dense<0.000000e+00> : vector<16xf32>
    %198 = vector.multi_reduction <add>, %187, %cst_62 [1] : vector<16x32xf32> to vector<16xf32>
    %199 = vector.shape_cast %198 : vector<16xf32> to vector<16x1xf32>
    %cst_63 = arith.constant 3.200000e+01 : f32
    %200 = vector.broadcast %cst_63 : f32 to vector<16x1xf32>
    %201 = arith.divf %199, %200 : vector<16x1xf32>
    %202 = vector.broadcast %201 : vector<16x1xf32> to vector<16x32xf32>
    %203 = arith.subf %187, %202 : vector<16x32xf32>
    %204 = arith.mulf %203, %203 : vector<16x32xf32>
    %cst_64 = arith.constant dense<0.000000e+00> : vector<16xf32>
    %205 = vector.multi_reduction <add>, %204, %cst_64 [1] : vector<16x32xf32> to vector<16xf32>
    %206 = vector.shape_cast %205 : vector<16xf32> to vector<16x1xf32>
    %cst_65 = arith.constant 3.200000e+01 : f32
    %207 = vector.broadcast %cst_65 : f32 to vector<16x1xf32>
    %208 = arith.divf %206, %207 : vector<16x1xf32>
    %209 = vector.broadcast %201 : vector<16x1xf32> to vector<16x32xf32>
    %210 = arith.subf %187, %209 : vector<16x32xf32>
    %cst_66 = arith.constant 9.99999997E-7 : f32
    %211 = vector.broadcast %cst_66 : f32 to vector<16x1xf32>
    %212 = arith.addf %208, %211 : vector<16x1xf32>
    %213 = math.rsqrt %212 : vector<16x1xf32>
    %214 = vector.broadcast %213 : vector<16x1xf32> to vector<16x32xf32>
    %215 = arith.mulf %210, %214 : vector<16x32xf32>
    %216 = vector.broadcast %190 : vector<1x32xf32> to vector<16x32xf32>
    %217 = arith.mulf %215, %216 : vector<16x32xf32>
    %218 = vector.broadcast %191 : vector<1x32xf32> to vector<16x32xf32>
    %219 = arith.addf %217, %218 : vector<16x32xf32>
    %220 = arith.truncf %219 : vector<16x32xf32> to vector<16x32xbf16>
    %c1_67 = arith.constant 1 : index
    %c0_68 = arith.constant 0 : index
    %c0_69 = arith.constant 0 : index
    %221 = vector.load %arg5[%c1_67, %c0_68, %c0_69] : memref<3x32x96xbf16, #tpu.memory_space<vmem>>, vector<1x32x96xbf16>
    %222 = vector.shape_cast %221 : vector<1x32x96xbf16> to vector<32x96xbf16>
    %cst_70 = arith.constant dense<0.000000e+00> : vector<16x96xf32>
    %223 = tpu.matmul %220, %222, %cst_70 {dimension_numbers = #tpu.dot_dimension_numbers<[1], [0], [0], [1], [0, 0, 1, 1], [], []>} : vector<16x32xbf16>, vector<32x96xbf16>, vector<16x96xf32> -> vector<16x96xf32>
    %224 = vector.broadcast %194 : vector<1x96xf32> to vector<16x96xf32>
    %225 = arith.addf %223, %224 : vector<16x96xf32>
    %226 = vector.extract_strided_slice %225 {offsets = [0, 0], sizes = [16, 8], strides = [1, 1]} : vector<16x96xf32> to vector<16x8xf32>
    %227 = arith.truncf %226 : vector<16x8xf32> to vector<16x8xbf16>
    %228 = vector.extract_strided_slice %225 {offsets = [0, 32], sizes = [16, 8], strides = [1, 1]} : vector<16x96xf32> to vector<16x8xf32>
    %229 = arith.truncf %228 : vector<16x8xf32> to vector<16x8xbf16>
    %230 = vector.extract_strided_slice %225 {offsets = [0, 64], sizes = [16, 8], strides = [1, 1]} : vector<16x96xf32> to vector<16x8xf32>
    %231 = arith.truncf %230 : vector<16x8xf32> to vector<16x8xbf16>
    %cst_71 = arith.constant dense<0.000000e+00> : vector<16x16xf32>
    %232 = tpu.matmul %227, %229, %cst_71 {dimension_numbers = #tpu.dot_dimension_numbers<[1], [1], [0], [0], [0, 0, 1, 0], [], []>} : vector<16x8xbf16>, vector<16x8xbf16>, vector<16x16xf32> -> vector<16x16xf32>
    %cst_72 = arith.constant -1.000000e+30 : f32
    %233 = vector.broadcast %cst_72 : f32 to vector<16x16xf32>
    %234 = arith.select %8, %232, %233 : vector<16x16xi1>, vector<16x16xf32>
    %cst_73 = arith.constant dense<0xFF800000> : vector<16xf32>
    %235 = vector.multi_reduction <maximumf>, %234, %cst_73 [1] : vector<16x16xf32> to vector<16xf32>
    %236 = vector.shape_cast %235 : vector<16xf32> to vector<16x1xf32>
    %237 = vector.broadcast %236 : vector<16x1xf32> to vector<16x16xf32>
    %238 = arith.subf %234, %237 : vector<16x16xf32>
    %239 = math.exp %238 : vector<16x16xf32>
    %cst_74 = arith.constant dense<0.000000e+00> : vector<16xf32>
    %240 = vector.multi_reduction <add>, %239, %cst_74 [1] : vector<16x16xf32> to vector<16xf32>
    %241 = vector.shape_cast %240 : vector<16xf32> to vector<16x1xf32>
    %242 = tpu.reciprocal %241 {approx = true} : vector<16x1xf32> -> vector<16x1xf32>
    %243 = vector.broadcast %242 : vector<16x1xf32> to vector<16x16xf32>
    %244 = arith.mulf %239, %243 : vector<16x16xf32>
    %245 = arith.truncf %244 : vector<16x16xf32> to vector<16x16xbf16>
    %cst_75 = arith.constant dense<0.000000e+00> : vector<16x8xf32>
    %246 = tpu.matmul %245, %231, %cst_75 {dimension_numbers = #tpu.dot_dimension_numbers<[1], [0], [0], [1], [0, 0, 1, 1], [], []>} : vector<16x16xbf16>, vector<16x8xbf16>, vector<16x8xf32> -> vector<16x8xf32>
    %247 = vector.extract_strided_slice %225 {offsets = [0, 8], sizes = [16, 8], strides = [1, 1]} : vector<16x96xf32> to vector<16x8xf32>
    %248 = arith.truncf %247 : vector<16x8xf32> to vector<16x8xbf16>
    %249 = vector.extract_strided_slice %225 {offsets = [0, 40], sizes = [16, 8], strides = [1, 1]} : vector<16x96xf32> to vector<16x8xf32>
    %250 = arith.truncf %249 : vector<16x8xf32> to vector<16x8xbf16>
    %251 = vector.extract_strided_slice %225 {offsets = [0, 72], sizes = [16, 8], strides = [1, 1]} : vector<16x96xf32> to vector<16x8xf32>
    %252 = arith.truncf %251 : vector<16x8xf32> to vector<16x8xbf16>
    %cst_76 = arith.constant dense<0.000000e+00> : vector<16x16xf32>
    %253 = tpu.matmul %248, %250, %cst_76 {dimension_numbers = #tpu.dot_dimension_numbers<[1], [1], [0], [0], [0, 0, 1, 0], [], []>} : vector<16x8xbf16>, vector<16x8xbf16>, vector<16x16xf32> -> vector<16x16xf32>
    %cst_77 = arith.constant -1.000000e+30 : f32
    %254 = vector.broadcast %cst_77 : f32 to vector<16x16xf32>
    %255 = arith.select %8, %253, %254 : vector<16x16xi1>, vector<16x16xf32>
    %cst_78 = arith.constant dense<0xFF800000> : vector<16xf32>
    %256 = vector.multi_reduction <maximumf>, %255, %cst_78 [1] : vector<16x16xf32> to vector<16xf32>
    %257 = vector.shape_cast %256 : vector<16xf32> to vector<16x1xf32>
    %258 = vector.broadcast %257 : vector<16x1xf32> to vector<16x16xf32>
    %259 = arith.subf %255, %258 : vector<16x16xf32>
    %260 = math.exp %259 : vector<16x16xf32>
    %cst_79 = arith.constant dense<0.000000e+00> : vector<16xf32>
    %261 = vector.multi_reduction <add>, %260, %cst_79 [1] : vector<16x16xf32> to vector<16xf32>
    %262 = vector.shape_cast %261 : vector<16xf32> to vector<16x1xf32>
    %263 = tpu.reciprocal %262 {approx = true} : vector<16x1xf32> -> vector<16x1xf32>
    %264 = vector.broadcast %263 : vector<16x1xf32> to vector<16x16xf32>
    %265 = arith.mulf %260, %264 : vector<16x16xf32>
    %266 = arith.truncf %265 : vector<16x16xf32> to vector<16x16xbf16>
    %cst_80 = arith.constant dense<0.000000e+00> : vector<16x8xf32>
    %267 = tpu.matmul %266, %252, %cst_80 {dimension_numbers = #tpu.dot_dimension_numbers<[1], [0], [0], [1], [0, 0, 1, 1], [], []>} : vector<16x16xbf16>, vector<16x8xbf16>, vector<16x8xf32> -> vector<16x8xf32>
    %268 = vector.extract_strided_slice %225 {offsets = [0, 16], sizes = [16, 8], strides = [1, 1]} : vector<16x96xf32> to vector<16x8xf32>
    %269 = arith.truncf %268 : vector<16x8xf32> to vector<16x8xbf16>
    %270 = vector.extract_strided_slice %225 {offsets = [0, 48], sizes = [16, 8], strides = [1, 1]} : vector<16x96xf32> to vector<16x8xf32>
    %271 = arith.truncf %270 : vector<16x8xf32> to vector<16x8xbf16>
    %272 = vector.extract_strided_slice %225 {offsets = [0, 80], sizes = [16, 8], strides = [1, 1]} : vector<16x96xf32> to vector<16x8xf32>
    %273 = arith.truncf %272 : vector<16x8xf32> to vector<16x8xbf16>
    %cst_81 = arith.constant dense<0.000000e+00> : vector<16x16xf32>
    %274 = tpu.matmul %269, %271, %cst_81 {dimension_numbers = #tpu.dot_dimension_numbers<[1], [1], [0], [0], [0, 0, 1, 0], [], []>} : vector<16x8xbf16>, vector<16x8xbf16>, vector<16x16xf32> -> vector<16x16xf32>
    %cst_82 = arith.constant -1.000000e+30 : f32
    %275 = vector.broadcast %cst_82 : f32 to vector<16x16xf32>
    %276 = arith.select %8, %274, %275 : vector<16x16xi1>, vector<16x16xf32>
    %cst_83 = arith.constant dense<0xFF800000> : vector<16xf32>
    %277 = vector.multi_reduction <maximumf>, %276, %cst_83 [1] : vector<16x16xf32> to vector<16xf32>
    %278 = vector.shape_cast %277 : vector<16xf32> to vector<16x1xf32>
    %279 = vector.broadcast %278 : vector<16x1xf32> to vector<16x16xf32>
    %280 = arith.subf %276, %279 : vector<16x16xf32>
    %281 = math.exp %280 : vector<16x16xf32>
    %cst_84 = arith.constant dense<0.000000e+00> : vector<16xf32>
    %282 = vector.multi_reduction <add>, %281, %cst_84 [1] : vector<16x16xf32> to vector<16xf32>
    %283 = vector.shape_cast %282 : vector<16xf32> to vector<16x1xf32>
    %284 = tpu.reciprocal %283 {approx = true} : vector<16x1xf32> -> vector<16x1xf32>
    %285 = vector.broadcast %284 : vector<16x1xf32> to vector<16x16xf32>
    %286 = arith.mulf %281, %285 : vector<16x16xf32>
    %287 = arith.truncf %286 : vector<16x16xf32> to vector<16x16xbf16>
    %cst_85 = arith.constant dense<0.000000e+00> : vector<16x8xf32>
    %288 = tpu.matmul %287, %273, %cst_85 {dimension_numbers = #tpu.dot_dimension_numbers<[1], [0], [0], [1], [0, 0, 1, 1], [], []>} : vector<16x16xbf16>, vector<16x8xbf16>, vector<16x8xf32> -> vector<16x8xf32>
    %289 = vector.extract_strided_slice %225 {offsets = [0, 24], sizes = [16, 8], strides = [1, 1]} : vector<16x96xf32> to vector<16x8xf32>
    %290 = arith.truncf %289 : vector<16x8xf32> to vector<16x8xbf16>
    %291 = vector.extract_strided_slice %225 {offsets = [0, 56], sizes = [16, 8], strides = [1, 1]} : vector<16x96xf32> to vector<16x8xf32>
    %292 = arith.truncf %291 : vector<16x8xf32> to vector<16x8xbf16>
    %293 = vector.extract_strided_slice %225 {offsets = [0, 88], sizes = [16, 8], strides = [1, 1]} : vector<16x96xf32> to vector<16x8xf32>
    %294 = arith.truncf %293 : vector<16x8xf32> to vector<16x8xbf16>
    %cst_86 = arith.constant dense<0.000000e+00> : vector<16x16xf32>
    %295 = tpu.matmul %290, %292, %cst_86 {dimension_numbers = #tpu.dot_dimension_numbers<[1], [1], [0], [0], [0, 0, 1, 0], [], []>} : vector<16x8xbf16>, vector<16x8xbf16>, vector<16x16xf32> -> vector<16x16xf32>
    %cst_87 = arith.constant -1.000000e+30 : f32
    %296 = vector.broadcast %cst_87 : f32 to vector<16x16xf32>
    %297 = arith.select %8, %295, %296 : vector<16x16xi1>, vector<16x16xf32>
    %cst_88 = arith.constant dense<0xFF800000> : vector<16xf32>
    %298 = vector.multi_reduction <maximumf>, %297, %cst_88 [1] : vector<16x16xf32> to vector<16xf32>
    %299 = vector.shape_cast %298 : vector<16xf32> to vector<16x1xf32>
    %300 = vector.broadcast %299 : vector<16x1xf32> to vector<16x16xf32>
    %301 = arith.subf %297, %300 : vector<16x16xf32>
    %302 = math.exp %301 : vector<16x16xf32>
    %cst_89 = arith.constant dense<0.000000e+00> : vector<16xf32>
    %303 = vector.multi_reduction <add>, %302, %cst_89 [1] : vector<16x16xf32> to vector<16xf32>
    %304 = vector.shape_cast %303 : vector<16xf32> to vector<16x1xf32>
    %305 = tpu.reciprocal %304 {approx = true} : vector<16x1xf32> -> vector<16x1xf32>
    %306 = vector.broadcast %305 : vector<16x1xf32> to vector<16x16xf32>
    %307 = arith.mulf %302, %306 : vector<16x16xf32>
    %308 = arith.truncf %307 : vector<16x16xf32> to vector<16x16xbf16>
    %cst_90 = arith.constant dense<0.000000e+00> : vector<16x8xf32>
    %309 = tpu.matmul %308, %294, %cst_90 {dimension_numbers = #tpu.dot_dimension_numbers<[1], [0], [0], [1], [0, 0, 1, 1], [], []>} : vector<16x16xbf16>, vector<16x8xbf16>, vector<16x8xf32> -> vector<16x8xf32>
    %310 = tpu.concatenate %246, %267, %288, %309 in 1 : vector<16x8xf32>, vector<16x8xf32>, vector<16x8xf32>, vector<16x8xf32> -> vector<16x32xf32>
    %311 = arith.truncf %310 : vector<16x32xf32> to vector<16x32xbf16>
    %c1_91 = arith.constant 1 : index
    %c0_92 = arith.constant 0 : index
    %c0_93 = arith.constant 0 : index
    %312 = vector.load %arg6[%c1_91, %c0_92, %c0_93] : memref<3x32x32xbf16, #tpu.memory_space<vmem>>, vector<1x32x32xbf16>
    %313 = vector.shape_cast %312 : vector<1x32x32xbf16> to vector<32x32xbf16>
    %cst_94 = arith.constant dense<0.000000e+00> : vector<16x32xf32>
    %314 = tpu.matmul %311, %313, %cst_94 {dimension_numbers = #tpu.dot_dimension_numbers<[1], [0], [0], [1], [0, 0, 1, 1], [], []>} : vector<16x32xbf16>, vector<32x32xbf16>, vector<16x32xf32> -> vector<16x32xf32>
    %315 = vector.broadcast %195 : vector<1x32xf32> to vector<16x32xf32>
    %316 = arith.addf %314, %315 : vector<16x32xf32>
    %317 = arith.addf %187, %316 : vector<16x32xf32>
    %cst_95 = arith.constant dense<0.000000e+00> : vector<16xf32>
    %318 = vector.multi_reduction <add>, %317, %cst_95 [1] : vector<16x32xf32> to vector<16xf32>
    %319 = vector.shape_cast %318 : vector<16xf32> to vector<16x1xf32>
    %cst_96 = arith.constant 3.200000e+01 : f32
    %320 = vector.broadcast %cst_96 : f32 to vector<16x1xf32>
    %321 = arith.divf %319, %320 : vector<16x1xf32>
    %322 = vector.broadcast %321 : vector<16x1xf32> to vector<16x32xf32>
    %323 = arith.subf %317, %322 : vector<16x32xf32>
    %324 = arith.mulf %323, %323 : vector<16x32xf32>
    %cst_97 = arith.constant dense<0.000000e+00> : vector<16xf32>
    %325 = vector.multi_reduction <add>, %324, %cst_97 [1] : vector<16x32xf32> to vector<16xf32>
    %326 = vector.shape_cast %325 : vector<16xf32> to vector<16x1xf32>
    %cst_98 = arith.constant 3.200000e+01 : f32
    %327 = vector.broadcast %cst_98 : f32 to vector<16x1xf32>
    %328 = arith.divf %326, %327 : vector<16x1xf32>
    %329 = vector.broadcast %321 : vector<16x1xf32> to vector<16x32xf32>
    %330 = arith.subf %317, %329 : vector<16x32xf32>
    %cst_99 = arith.constant 9.99999997E-7 : f32
    %331 = vector.broadcast %cst_99 : f32 to vector<16x1xf32>
    %332 = arith.addf %328, %331 : vector<16x1xf32>
    %333 = math.rsqrt %332 : vector<16x1xf32>
    %334 = vector.broadcast %333 : vector<16x1xf32> to vector<16x32xf32>
    %335 = arith.mulf %330, %334 : vector<16x32xf32>
    %336 = vector.broadcast %192 : vector<1x32xf32> to vector<16x32xf32>
    %337 = arith.mulf %335, %336 : vector<16x32xf32>
    %338 = vector.broadcast %193 : vector<1x32xf32> to vector<16x32xf32>
    %339 = arith.addf %337, %338 : vector<16x32xf32>
    %340 = arith.truncf %339 : vector<16x32xf32> to vector<16x32xbf16>
    %c1_100 = arith.constant 1 : index
    %c0_101 = arith.constant 0 : index
    %c0_102 = arith.constant 0 : index
    %341 = vector.load %arg7[%c1_100, %c0_101, %c0_102] : memref<3x32x64xbf16, #tpu.memory_space<vmem>>, vector<1x32x64xbf16>
    %342 = vector.shape_cast %341 : vector<1x32x64xbf16> to vector<32x64xbf16>
    %cst_103 = arith.constant dense<0.000000e+00> : vector<16x64xf32>
    %343 = tpu.matmul %340, %342, %cst_103 {dimension_numbers = #tpu.dot_dimension_numbers<[1], [0], [0], [1], [0, 0, 1, 1], [], []>} : vector<16x32xbf16>, vector<32x64xbf16>, vector<16x64xf32> -> vector<16x64xf32>
    %344 = vector.broadcast %196 : vector<1x64xf32> to vector<16x64xf32>
    %345 = arith.addf %343, %344 : vector<16x64xf32>
    %cst_104 = arith.constant 5.000000e-01 : f32
    %346 = vector.broadcast %cst_104 : f32 to vector<16x64xf32>
    %347 = arith.mulf %346, %345 : vector<16x64xf32>
    %cst_105 = arith.constant 0.797884583 : f32
    %348 = vector.broadcast %cst_105 : f32 to vector<16x64xf32>
    %349 = arith.mulf %348, %345 : vector<16x64xf32>
    %cst_106 = arith.constant 4.471500e-02 : f32
    %350 = vector.broadcast %cst_106 : f32 to vector<16x64xf32>
    %351 = arith.mulf %350, %345 : vector<16x64xf32>
    %352 = arith.mulf %351, %345 : vector<16x64xf32>
    %cst_107 = arith.constant 1.000000e+00 : f32
    %353 = vector.broadcast %cst_107 : f32 to vector<16x64xf32>
    %354 = arith.addf %353, %352 : vector<16x64xf32>
    %355 = arith.mulf %349, %354 : vector<16x64xf32>
    %356 = math.tanh %355 : vector<16x64xf32>
    %cst_108 = arith.constant 1.000000e+00 : f32
    %357 = vector.broadcast %cst_108 : f32 to vector<16x64xf32>
    %358 = arith.addf %357, %356 : vector<16x64xf32>
    %359 = arith.mulf %347, %358 : vector<16x64xf32>
    %360 = arith.truncf %359 : vector<16x64xf32> to vector<16x64xbf16>
    %c1_109 = arith.constant 1 : index
    %c0_110 = arith.constant 0 : index
    %c0_111 = arith.constant 0 : index
    %361 = vector.load %arg8[%c1_109, %c0_110, %c0_111] : memref<3x64x32xbf16, #tpu.memory_space<vmem>>, vector<1x64x32xbf16>
    %362 = vector.shape_cast %361 : vector<1x64x32xbf16> to vector<64x32xbf16>
    %cst_112 = arith.constant dense<0.000000e+00> : vector<16x32xf32>
    %363 = tpu.matmul %360, %362, %cst_112 {dimension_numbers = #tpu.dot_dimension_numbers<[1], [0], [0], [1], [0, 0, 1, 1], [], []>} : vector<16x64xbf16>, vector<64x32xbf16>, vector<16x32xf32> -> vector<16x32xf32>
    %364 = vector.broadcast %197 : vector<1x32xf32> to vector<16x32xf32>
    %365 = arith.addf %363, %364 : vector<16x32xf32>
    %366 = arith.addf %317, %365 : vector<16x32xf32>
    %c2 = arith.constant 2 : index
    %c0_113 = arith.constant 0 : index
    %c0_114 = arith.constant 0 : index
    %367 = vector.load %arg4[%c2, %c0_113, %c0_114] : memref<3x8x128xf32, #tpu.memory_space<vmem>>, vector<1x8x128xf32>
    %368 = vector.shape_cast %367 : vector<1x8x128xf32> to vector<8x128xf32>
    %369 = vector.extract_strided_slice %368 {offsets = [0, 0], sizes = [1, 32], strides = [1, 1]} : vector<8x128xf32> to vector<1x32xf32>
    %370 = vector.extract_strided_slice %368 {offsets = [1, 0], sizes = [1, 32], strides = [1, 1]} : vector<8x128xf32> to vector<1x32xf32>
    %371 = vector.extract_strided_slice %368 {offsets = [2, 0], sizes = [1, 32], strides = [1, 1]} : vector<8x128xf32> to vector<1x32xf32>
    %372 = vector.extract_strided_slice %368 {offsets = [3, 0], sizes = [1, 32], strides = [1, 1]} : vector<8x128xf32> to vector<1x32xf32>
    %373 = vector.extract_strided_slice %368 {offsets = [4, 0], sizes = [1, 96], strides = [1, 1]} : vector<8x128xf32> to vector<1x96xf32>
    %374 = vector.extract_strided_slice %368 {offsets = [5, 0], sizes = [1, 32], strides = [1, 1]} : vector<8x128xf32> to vector<1x32xf32>
    %375 = vector.extract_strided_slice %368 {offsets = [6, 0], sizes = [1, 64], strides = [1, 1]} : vector<8x128xf32> to vector<1x64xf32>
    %376 = vector.extract_strided_slice %368 {offsets = [7, 0], sizes = [1, 32], strides = [1, 1]} : vector<8x128xf32> to vector<1x32xf32>
    %cst_115 = arith.constant dense<0.000000e+00> : vector<16xf32>
    %377 = vector.multi_reduction <add>, %366, %cst_115 [1] : vector<16x32xf32> to vector<16xf32>
    %378 = vector.shape_cast %377 : vector<16xf32> to vector<16x1xf32>
    %cst_116 = arith.constant 3.200000e+01 : f32
    %379 = vector.broadcast %cst_116 : f32 to vector<16x1xf32>
    %380 = arith.divf %378, %379 : vector<16x1xf32>
    %381 = vector.broadcast %380 : vector<16x1xf32> to vector<16x32xf32>
    %382 = arith.subf %366, %381 : vector<16x32xf32>
    %383 = arith.mulf %382, %382 : vector<16x32xf32>
    %cst_117 = arith.constant dense<0.000000e+00> : vector<16xf32>
    %384 = vector.multi_reduction <add>, %383, %cst_117 [1] : vector<16x32xf32> to vector<16xf32>
    %385 = vector.shape_cast %384 : vector<16xf32> to vector<16x1xf32>
    %cst_118 = arith.constant 3.200000e+01 : f32
    %386 = vector.broadcast %cst_118 : f32 to vector<16x1xf32>
    %387 = arith.divf %385, %386 : vector<16x1xf32>
    %388 = vector.broadcast %380 : vector<16x1xf32> to vector<16x32xf32>
    %389 = arith.subf %366, %388 : vector<16x32xf32>
    %cst_119 = arith.constant 9.99999997E-7 : f32
    %390 = vector.broadcast %cst_119 : f32 to vector<16x1xf32>
    %391 = arith.addf %387, %390 : vector<16x1xf32>
    %392 = math.rsqrt %391 : vector<16x1xf32>
    %393 = vector.broadcast %392 : vector<16x1xf32> to vector<16x32xf32>
    %394 = arith.mulf %389, %393 : vector<16x32xf32>
    %395 = vector.broadcast %369 : vector<1x32xf32> to vector<16x32xf32>
    %396 = arith.mulf %394, %395 : vector<16x32xf32>
    %397 = vector.broadcast %370 : vector<1x32xf32> to vector<16x32xf32>
    %398 = arith.addf %396, %397 : vector<16x32xf32>
    %399 = arith.truncf %398 : vector<16x32xf32> to vector<16x32xbf16>
    %c2_120 = arith.constant 2 : index
    %c0_121 = arith.constant 0 : index
    %c0_122 = arith.constant 0 : index
    %400 = vector.load %arg5[%c2_120, %c0_121, %c0_122] : memref<3x32x96xbf16, #tpu.memory_space<vmem>>, vector<1x32x96xbf16>
    %401 = vector.shape_cast %400 : vector<1x32x96xbf16> to vector<32x96xbf16>
    %cst_123 = arith.constant dense<0.000000e+00> : vector<16x96xf32>
    %402 = tpu.matmul %399, %401, %cst_123 {dimension_numbers = #tpu.dot_dimension_numbers<[1], [0], [0], [1], [0, 0, 1, 1], [], []>} : vector<16x32xbf16>, vector<32x96xbf16>, vector<16x96xf32> -> vector<16x96xf32>
    %403 = vector.broadcast %373 : vector<1x96xf32> to vector<16x96xf32>
    %404 = arith.addf %402, %403 : vector<16x96xf32>
    %405 = vector.extract_strided_slice %404 {offsets = [0, 0], sizes = [16, 8], strides = [1, 1]} : vector<16x96xf32> to vector<16x8xf32>
    %406 = arith.truncf %405 : vector<16x8xf32> to vector<16x8xbf16>
    %407 = vector.extract_strided_slice %404 {offsets = [0, 32], sizes = [16, 8], strides = [1, 1]} : vector<16x96xf32> to vector<16x8xf32>
    %408 = arith.truncf %407 : vector<16x8xf32> to vector<16x8xbf16>
    %409 = vector.extract_strided_slice %404 {offsets = [0, 64], sizes = [16, 8], strides = [1, 1]} : vector<16x96xf32> to vector<16x8xf32>
    %410 = arith.truncf %409 : vector<16x8xf32> to vector<16x8xbf16>
    %cst_124 = arith.constant dense<0.000000e+00> : vector<16x16xf32>
    %411 = tpu.matmul %406, %408, %cst_124 {dimension_numbers = #tpu.dot_dimension_numbers<[1], [1], [0], [0], [0, 0, 1, 0], [], []>} : vector<16x8xbf16>, vector<16x8xbf16>, vector<16x16xf32> -> vector<16x16xf32>
    %cst_125 = arith.constant -1.000000e+30 : f32
    %412 = vector.broadcast %cst_125 : f32 to vector<16x16xf32>
    %413 = arith.select %8, %411, %412 : vector<16x16xi1>, vector<16x16xf32>
    %cst_126 = arith.constant dense<0xFF800000> : vector<16xf32>
    %414 = vector.multi_reduction <maximumf>, %413, %cst_126 [1] : vector<16x16xf32> to vector<16xf32>
    %415 = vector.shape_cast %414 : vector<16xf32> to vector<16x1xf32>
    %416 = vector.broadcast %415 : vector<16x1xf32> to vector<16x16xf32>
    %417 = arith.subf %413, %416 : vector<16x16xf32>
    %418 = math.exp %417 : vector<16x16xf32>
    %cst_127 = arith.constant dense<0.000000e+00> : vector<16xf32>
    %419 = vector.multi_reduction <add>, %418, %cst_127 [1] : vector<16x16xf32> to vector<16xf32>
    %420 = vector.shape_cast %419 : vector<16xf32> to vector<16x1xf32>
    %421 = tpu.reciprocal %420 {approx = true} : vector<16x1xf32> -> vector<16x1xf32>
    %422 = vector.broadcast %421 : vector<16x1xf32> to vector<16x16xf32>
    %423 = arith.mulf %418, %422 : vector<16x16xf32>
    %424 = arith.truncf %423 : vector<16x16xf32> to vector<16x16xbf16>
    %cst_128 = arith.constant dense<0.000000e+00> : vector<16x8xf32>
    %425 = tpu.matmul %424, %410, %cst_128 {dimension_numbers = #tpu.dot_dimension_numbers<[1], [0], [0], [1], [0, 0, 1, 1], [], []>} : vector<16x16xbf16>, vector<16x8xbf16>, vector<16x8xf32> -> vector<16x8xf32>
    %426 = vector.extract_strided_slice %404 {offsets = [0, 8], sizes = [16, 8], strides = [1, 1]} : vector<16x96xf32> to vector<16x8xf32>
    %427 = arith.truncf %426 : vector<16x8xf32> to vector<16x8xbf16>
    %428 = vector.extract_strided_slice %404 {offsets = [0, 40], sizes = [16, 8], strides = [1, 1]} : vector<16x96xf32> to vector<16x8xf32>
    %429 = arith.truncf %428 : vector<16x8xf32> to vector<16x8xbf16>
    %430 = vector.extract_strided_slice %404 {offsets = [0, 72], sizes = [16, 8], strides = [1, 1]} : vector<16x96xf32> to vector<16x8xf32>
    %431 = arith.truncf %430 : vector<16x8xf32> to vector<16x8xbf16>
    %cst_129 = arith.constant dense<0.000000e+00> : vector<16x16xf32>
    %432 = tpu.matmul %427, %429, %cst_129 {dimension_numbers = #tpu.dot_dimension_numbers<[1], [1], [0], [0], [0, 0, 1, 0], [], []>} : vector<16x8xbf16>, vector<16x8xbf16>, vector<16x16xf32> -> vector<16x16xf32>
    %cst_130 = arith.constant -1.000000e+30 : f32
    %433 = vector.broadcast %cst_130 : f32 to vector<16x16xf32>
    %434 = arith.select %8, %432, %433 : vector<16x16xi1>, vector<16x16xf32>
    %cst_131 = arith.constant dense<0xFF800000> : vector<16xf32>
    %435 = vector.multi_reduction <maximumf>, %434, %cst_131 [1] : vector<16x16xf32> to vector<16xf32>
    %436 = vector.shape_cast %435 : vector<16xf32> to vector<16x1xf32>
    %437 = vector.broadcast %436 : vector<16x1xf32> to vector<16x16xf32>
    %438 = arith.subf %434, %437 : vector<16x16xf32>
    %439 = math.exp %438 : vector<16x16xf32>
    %cst_132 = arith.constant dense<0.000000e+00> : vector<16xf32>
    %440 = vector.multi_reduction <add>, %439, %cst_132 [1] : vector<16x16xf32> to vector<16xf32>
    %441 = vector.shape_cast %440 : vector<16xf32> to vector<16x1xf32>
    %442 = tpu.reciprocal %441 {approx = true} : vector<16x1xf32> -> vector<16x1xf32>
    %443 = vector.broadcast %442 : vector<16x1xf32> to vector<16x16xf32>
    %444 = arith.mulf %439, %443 : vector<16x16xf32>
    %445 = arith.truncf %444 : vector<16x16xf32> to vector<16x16xbf16>
    %cst_133 = arith.constant dense<0.000000e+00> : vector<16x8xf32>
    %446 = tpu.matmul %445, %431, %cst_133 {dimension_numbers = #tpu.dot_dimension_numbers<[1], [0], [0], [1], [0, 0, 1, 1], [], []>} : vector<16x16xbf16>, vector<16x8xbf16>, vector<16x8xf32> -> vector<16x8xf32>
    %447 = vector.extract_strided_slice %404 {offsets = [0, 16], sizes = [16, 8], strides = [1, 1]} : vector<16x96xf32> to vector<16x8xf32>
    %448 = arith.truncf %447 : vector<16x8xf32> to vector<16x8xbf16>
    %449 = vector.extract_strided_slice %404 {offsets = [0, 48], sizes = [16, 8], strides = [1, 1]} : vector<16x96xf32> to vector<16x8xf32>
    %450 = arith.truncf %449 : vector<16x8xf32> to vector<16x8xbf16>
    %451 = vector.extract_strided_slice %404 {offsets = [0, 80], sizes = [16, 8], strides = [1, 1]} : vector<16x96xf32> to vector<16x8xf32>
    %452 = arith.truncf %451 : vector<16x8xf32> to vector<16x8xbf16>
    %cst_134 = arith.constant dense<0.000000e+00> : vector<16x16xf32>
    %453 = tpu.matmul %448, %450, %cst_134 {dimension_numbers = #tpu.dot_dimension_numbers<[1], [1], [0], [0], [0, 0, 1, 0], [], []>} : vector<16x8xbf16>, vector<16x8xbf16>, vector<16x16xf32> -> vector<16x16xf32>
    %cst_135 = arith.constant -1.000000e+30 : f32
    %454 = vector.broadcast %cst_135 : f32 to vector<16x16xf32>
    %455 = arith.select %8, %453, %454 : vector<16x16xi1>, vector<16x16xf32>
    %cst_136 = arith.constant dense<0xFF800000> : vector<16xf32>
    %456 = vector.multi_reduction <maximumf>, %455, %cst_136 [1] : vector<16x16xf32> to vector<16xf32>
    %457 = vector.shape_cast %456 : vector<16xf32> to vector<16x1xf32>
    %458 = vector.broadcast %457 : vector<16x1xf32> to vector<16x16xf32>
    %459 = arith.subf %455, %458 : vector<16x16xf32>
    %460 = math.exp %459 : vector<16x16xf32>
    %cst_137 = arith.constant dense<0.000000e+00> : vector<16xf32>
    %461 = vector.multi_reduction <add>, %460, %cst_137 [1] : vector<16x16xf32> to vector<16xf32>
    %462 = vector.shape_cast %461 : vector<16xf32> to vector<16x1xf32>
    %463 = tpu.reciprocal %462 {approx = true} : vector<16x1xf32> -> vector<16x1xf32>
    %464 = vector.broadcast %463 : vector<16x1xf32> to vector<16x16xf32>
    %465 = arith.mulf %460, %464 : vector<16x16xf32>
    %466 = arith.truncf %465 : vector<16x16xf32> to vector<16x16xbf16>
    %cst_138 = arith.constant dense<0.000000e+00> : vector<16x8xf32>
    %467 = tpu.matmul %466, %452, %cst_138 {dimension_numbers = #tpu.dot_dimension_numbers<[1], [0], [0], [1], [0, 0, 1, 1], [], []>} : vector<16x16xbf16>, vector<16x8xbf16>, vector<16x8xf32> -> vector<16x8xf32>
    %468 = vector.extract_strided_slice %404 {offsets = [0, 24], sizes = [16, 8], strides = [1, 1]} : vector<16x96xf32> to vector<16x8xf32>
    %469 = arith.truncf %468 : vector<16x8xf32> to vector<16x8xbf16>
    %470 = vector.extract_strided_slice %404 {offsets = [0, 56], sizes = [16, 8], strides = [1, 1]} : vector<16x96xf32> to vector<16x8xf32>
    %471 = arith.truncf %470 : vector<16x8xf32> to vector<16x8xbf16>
    %472 = vector.extract_strided_slice %404 {offsets = [0, 88], sizes = [16, 8], strides = [1, 1]} : vector<16x96xf32> to vector<16x8xf32>
    %473 = arith.truncf %472 : vector<16x8xf32> to vector<16x8xbf16>
    %cst_139 = arith.constant dense<0.000000e+00> : vector<16x16xf32>
    %474 = tpu.matmul %469, %471, %cst_139 {dimension_numbers = #tpu.dot_dimension_numbers<[1], [1], [0], [0], [0, 0, 1, 0], [], []>} : vector<16x8xbf16>, vector<16x8xbf16>, vector<16x16xf32> -> vector<16x16xf32>
    %cst_140 = arith.constant -1.000000e+30 : f32
    %475 = vector.broadcast %cst_140 : f32 to vector<16x16xf32>
    %476 = arith.select %8, %474, %475 : vector<16x16xi1>, vector<16x16xf32>
    %cst_141 = arith.constant dense<0xFF800000> : vector<16xf32>
    %477 = vector.multi_reduction <maximumf>, %476, %cst_141 [1] : vector<16x16xf32> to vector<16xf32>
    %478 = vector.shape_cast %477 : vector<16xf32> to vector<16x1xf32>
    %479 = vector.broadcast %478 : vector<16x1xf32> to vector<16x16xf32>
    %480 = arith.subf %476, %479 : vector<16x16xf32>
    %481 = math.exp %480 : vector<16x16xf32>
    %cst_142 = arith.constant dense<0.000000e+00> : vector<16xf32>
    %482 = vector.multi_reduction <add>, %481, %cst_142 [1] : vector<16x16xf32> to vector<16xf32>
    %483 = vector.shape_cast %482 : vector<16xf32> to vector<16x1xf32>
    %484 = tpu.reciprocal %483 {approx = true} : vector<16x1xf32> -> vector<16x1xf32>
    %485 = vector.broadcast %484 : vector<16x1xf32> to vector<16x16xf32>
    %486 = arith.mulf %481, %485 : vector<16x16xf32>
    %487 = arith.truncf %486 : vector<16x16xf32> to vector<16x16xbf16>
    %cst_143 = arith.constant dense<0.000000e+00> : vector<16x8xf32>
    %488 = tpu.matmul %487, %473, %cst_143 {dimension_numbers = #tpu.dot_dimension_numbers<[1], [0], [0], [1], [0, 0, 1, 1], [], []>} : vector<16x16xbf16>, vector<16x8xbf16>, vector<16x8xf32> -> vector<16x8xf32>
    %489 = tpu.concatenate %425, %446, %467, %488 in 1 : vector<16x8xf32>, vector<16x8xf32>, vector<16x8xf32>, vector<16x8xf32> -> vector<16x32xf32>
    %490 = arith.truncf %489 : vector<16x32xf32> to vector<16x32xbf16>
    %c2_144 = arith.constant 2 : index
    %c0_145 = arith.constant 0 : index
    %c0_146 = arith.constant 0 : index
    %491 = vector.load %arg6[%c2_144, %c0_145, %c0_146] : memref<3x32x32xbf16, #tpu.memory_space<vmem>>, vector<1x32x32xbf16>
    %492 = vector.shape_cast %491 : vector<1x32x32xbf16> to vector<32x32xbf16>
    %cst_147 = arith.constant dense<0.000000e+00> : vector<16x32xf32>
    %493 = tpu.matmul %490, %492, %cst_147 {dimension_numbers = #tpu.dot_dimension_numbers<[1], [0], [0], [1], [0, 0, 1, 1], [], []>} : vector<16x32xbf16>, vector<32x32xbf16>, vector<16x32xf32> -> vector<16x32xf32>
    %494 = vector.broadcast %374 : vector<1x32xf32> to vector<16x32xf32>
    %495 = arith.addf %493, %494 : vector<16x32xf32>
    %496 = arith.addf %366, %495 : vector<16x32xf32>
    %cst_148 = arith.constant dense<0.000000e+00> : vector<16xf32>
    %497 = vector.multi_reduction <add>, %496, %cst_148 [1] : vector<16x32xf32> to vector<16xf32>
    %498 = vector.shape_cast %497 : vector<16xf32> to vector<16x1xf32>
    %cst_149 = arith.constant 3.200000e+01 : f32
    %499 = vector.broadcast %cst_149 : f32 to vector<16x1xf32>
    %500 = arith.divf %498, %499 : vector<16x1xf32>
    %501 = vector.broadcast %500 : vector<16x1xf32> to vector<16x32xf32>
    %502 = arith.subf %496, %501 : vector<16x32xf32>
    %503 = arith.mulf %502, %502 : vector<16x32xf32>
    %cst_150 = arith.constant dense<0.000000e+00> : vector<16xf32>
    %504 = vector.multi_reduction <add>, %503, %cst_150 [1] : vector<16x32xf32> to vector<16xf32>
    %505 = vector.shape_cast %504 : vector<16xf32> to vector<16x1xf32>
    %cst_151 = arith.constant 3.200000e+01 : f32
    %506 = vector.broadcast %cst_151 : f32 to vector<16x1xf32>
    %507 = arith.divf %505, %506 : vector<16x1xf32>
    %508 = vector.broadcast %500 : vector<16x1xf32> to vector<16x32xf32>
    %509 = arith.subf %496, %508 : vector<16x32xf32>
    %cst_152 = arith.constant 9.99999997E-7 : f32
    %510 = vector.broadcast %cst_152 : f32 to vector<16x1xf32>
    %511 = arith.addf %507, %510 : vector<16x1xf32>
    %512 = math.rsqrt %511 : vector<16x1xf32>
    %513 = vector.broadcast %512 : vector<16x1xf32> to vector<16x32xf32>
    %514 = arith.mulf %509, %513 : vector<16x32xf32>
    %515 = vector.broadcast %371 : vector<1x32xf32> to vector<16x32xf32>
    %516 = arith.mulf %514, %515 : vector<16x32xf32>
    %517 = vector.broadcast %372 : vector<1x32xf32> to vector<16x32xf32>
    %518 = arith.addf %516, %517 : vector<16x32xf32>
    %519 = arith.truncf %518 : vector<16x32xf32> to vector<16x32xbf16>
    %c2_153 = arith.constant 2 : index
    %c0_154 = arith.constant 0 : index
    %c0_155 = arith.constant 0 : index
    %520 = vector.load %arg7[%c2_153, %c0_154, %c0_155] : memref<3x32x64xbf16, #tpu.memory_space<vmem>>, vector<1x32x64xbf16>
    %521 = vector.shape_cast %520 : vector<1x32x64xbf16> to vector<32x64xbf16>
    %cst_156 = arith.constant dense<0.000000e+00> : vector<16x64xf32>
    %522 = tpu.matmul %519, %521, %cst_156 {dimension_numbers = #tpu.dot_dimension_numbers<[1], [0], [0], [1], [0, 0, 1, 1], [], []>} : vector<16x32xbf16>, vector<32x64xbf16>, vector<16x64xf32> -> vector<16x64xf32>
    %523 = vector.broadcast %375 : vector<1x64xf32> to vector<16x64xf32>
    %524 = arith.addf %522, %523 : vector<16x64xf32>
    %cst_157 = arith.constant 5.000000e-01 : f32
    %525 = vector.broadcast %cst_157 : f32 to vector<16x64xf32>
    %526 = arith.mulf %525, %524 : vector<16x64xf32>
    %cst_158 = arith.constant 0.797884583 : f32
    %527 = vector.broadcast %cst_158 : f32 to vector<16x64xf32>
    %528 = arith.mulf %527, %524 : vector<16x64xf32>
    %cst_159 = arith.constant 4.471500e-02 : f32
    %529 = vector.broadcast %cst_159 : f32 to vector<16x64xf32>
    %530 = arith.mulf %529, %524 : vector<16x64xf32>
    %531 = arith.mulf %530, %524 : vector<16x64xf32>
    %cst_160 = arith.constant 1.000000e+00 : f32
    %532 = vector.broadcast %cst_160 : f32 to vector<16x64xf32>
    %533 = arith.addf %532, %531 : vector<16x64xf32>
    %534 = arith.mulf %528, %533 : vector<16x64xf32>
    %535 = math.tanh %534 : vector<16x64xf32>
    %cst_161 = arith.constant 1.000000e+00 : f32
    %536 = vector.broadcast %cst_161 : f32 to vector<16x64xf32>
    %537 = arith.addf %536, %535 : vector<16x64xf32>
    %538 = arith.mulf %526, %537 : vector<16x64xf32>
    %539 = arith.truncf %538 : vector<16x64xf32> to vector<16x64xbf16>
    %c2_162 = arith.constant 2 : index
    %c0_163 = arith.constant 0 : index
    %c0_164 = arith.constant 0 : index
    %540 = vector.load %arg8[%c2_162, %c0_163, %c0_164] : memref<3x64x32xbf16, #tpu.memory_space<vmem>>, vector<1x64x32xbf16>
    %541 = vector.shape_cast %540 : vector<1x64x32xbf16> to vector<64x32xbf16>
    %cst_165 = arith.constant dense<0.000000e+00> : vector<16x32xf32>
    %542 = tpu.matmul %539, %541, %cst_165 {dimension_numbers = #tpu.dot_dimension_numbers<[1], [0], [0], [1], [0, 0, 1, 1], [], []>} : vector<16x64xbf16>, vector<64x32xbf16>, vector<16x32xf32> -> vector<16x32xf32>
    %543 = vector.broadcast %376 : vector<1x32xf32> to vector<16x32xf32>
    %544 = arith.addf %542, %543 : vector<16x32xf32>
    %545 = arith.addf %496, %544 : vector<16x32xf32>
    %c0_166 = arith.constant 0 : index
    %c0_167 = arith.constant 0 : index
    %546 = vector.load %arg9[%c0_166, %c0_167] : memref<8x128xf32, #tpu.memory_space<vmem>>, vector<8x128xf32>
    %547 = vector.extract_strided_slice %546 {offsets = [0, 0], sizes = [1, 32], strides = [1, 1]} : vector<8x128xf32> to vector<1x32xf32>
    %548 = vector.extract_strided_slice %546 {offsets = [1, 0], sizes = [1, 32], strides = [1, 1]} : vector<8x128xf32> to vector<1x32xf32>
    %549 = vector.extract_strided_slice %546 {offsets = [2, 0], sizes = [1, 128], strides = [1, 1]} : vector<8x128xf32> to vector<1x128xf32>
    %550 = vector.extract_strided_slice %545 {offsets = [0, 0], sizes = [8, 32], strides = [1, 1]} : vector<16x32xf32> to vector<8x32xf32>
    %cst_168 = arith.constant dense<0.000000e+00> : vector<8xf32>
    %551 = vector.multi_reduction <add>, %550, %cst_168 [1] : vector<8x32xf32> to vector<8xf32>
    %552 = vector.shape_cast %551 : vector<8xf32> to vector<8x1xf32>
    %cst_169 = arith.constant 3.200000e+01 : f32
    %553 = vector.broadcast %cst_169 : f32 to vector<8x1xf32>
    %554 = arith.divf %552, %553 : vector<8x1xf32>
    %555 = vector.broadcast %554 : vector<8x1xf32> to vector<8x32xf32>
    %556 = arith.subf %550, %555 : vector<8x32xf32>
    %557 = arith.mulf %556, %556 : vector<8x32xf32>
    %cst_170 = arith.constant dense<0.000000e+00> : vector<8xf32>
    %558 = vector.multi_reduction <add>, %557, %cst_170 [1] : vector<8x32xf32> to vector<8xf32>
    %559 = vector.shape_cast %558 : vector<8xf32> to vector<8x1xf32>
    %cst_171 = arith.constant 3.200000e+01 : f32
    %560 = vector.broadcast %cst_171 : f32 to vector<8x1xf32>
    %561 = arith.divf %559, %560 : vector<8x1xf32>
    %562 = vector.broadcast %554 : vector<8x1xf32> to vector<8x32xf32>
    %563 = arith.subf %550, %562 : vector<8x32xf32>
    %cst_172 = arith.constant 9.99999997E-7 : f32
    %564 = vector.broadcast %cst_172 : f32 to vector<8x1xf32>
    %565 = arith.addf %561, %564 : vector<8x1xf32>
    %566 = math.rsqrt %565 : vector<8x1xf32>
    %567 = vector.broadcast %566 : vector<8x1xf32> to vector<8x32xf32>
    %568 = arith.mulf %563, %567 : vector<8x32xf32>
    %569 = vector.broadcast %547 : vector<1x32xf32> to vector<8x32xf32>
    %570 = arith.mulf %568, %569 : vector<8x32xf32>
    %571 = vector.broadcast %548 : vector<1x32xf32> to vector<8x32xf32>
    %572 = arith.addf %570, %571 : vector<8x32xf32>
    %573 = arith.truncf %572 : vector<8x32xf32> to vector<8x32xbf16>
    %c0_173 = arith.constant 0 : index
    %c0_174 = arith.constant 0 : index
    %574 = vector.load %arg10[%c0_173, %c0_174] : memref<32x128xbf16, #tpu.memory_space<vmem>>, vector<32x128xbf16>
    %cst_175 = arith.constant dense<0.000000e+00> : vector<8x128xf32>
    %575 = tpu.matmul %573, %574, %cst_175 {dimension_numbers = #tpu.dot_dimension_numbers<[1], [0], [0], [1], [0, 0, 1, 1], [], []>} : vector<8x32xbf16>, vector<32x128xbf16>, vector<8x128xf32> -> vector<8x128xf32>
    %576 = vector.broadcast %549 : vector<1x128xf32> to vector<8x128xf32>
    %577 = arith.addf %575, %576 : vector<8x128xf32>
    %c0_176 = arith.constant 0 : index
    %c0_177 = arith.constant 0 : index
    %c0_178 = arith.constant 0 : index
    %578 = vector.load %arg11[%c0_176, %c0_177, %c0_178] : memref<1x8x128xf32, #tpu.memory_space<vmem>>, vector<1x8x128xf32>
    %579 = vector.shape_cast %578 : vector<1x8x128xf32> to vector<8x128xf32>
    %580 = vector.shape_cast %577 : vector<8x128xf32> to vector<1x8x128xf32>
    tpu.vector_store %arg11[%c0_176, %c0_177, %c0_178], %580 {strides = array<i32>} : memref<1x8x128xf32, #tpu.memory_space<vmem>>, vector<1x8x128xf32>,
    return
  }
  func.func @transform_0(%arg0: i32) -> (i32, i32, i32) {
    %c0_i32 = arith.constant 0 : i32
    %c0_i32_0 = arith.constant 0 : i32
    %c0_i32_1 = arith.constant 0 : i32
    return %arg0, %c0_i32, %c0_i32_0 : i32, i32, i32
  }
  func.func @transform_1(%arg0: i32) -> (i32, i32) {
    %c0_i32 = arith.constant 0 : i32
    %c0_i32_0 = arith.constant 0 : i32
    %c0_i32_1 = arith.constant 0 : i32
    return %c0_i32, %c0_i32_0 : i32, i32
  }
  func.func @transform_2(%arg0: i32) -> (i32, i32) {
    %c0_i32 = arith.constant 0 : i32
    %c0_i32_0 = arith.constant 0 : i32
    %c0_i32_1 = arith.constant 0 : i32
    return %c0_i32, %c0_i32_0 : i32, i32
  }
  func.func @transform_3(%arg0: i32) -> (i32, i32, i32) {
    %c0_i32 = arith.constant 0 : i32
    %c0_i32_0 = arith.constant 0 : i32
    %c0_i32_1 = arith.constant 0 : i32
    %c0_i32_2 = arith.constant 0 : i32
    return %c0_i32, %c0_i32_0, %c0_i32_1 : i32, i32, i32
  }
  func.func @transform_4(%arg0: i32) -> (i32, i32, i32) {
    %c0_i32 = arith.constant 0 : i32
    %c0_i32_0 = arith.constant 0 : i32
    %c0_i32_1 = arith.constant 0 : i32
    %c0_i32_2 = arith.constant 0 : i32
    return %c0_i32, %c0_i32_0, %c0_i32_1 : i32, i32, i32
  }
  func.func @transform_5(%arg0: i32) -> (i32, i32, i32) {
    %c0_i32 = arith.constant 0 : i32
    %c0_i32_0 = arith.constant 0 : i32
    %c0_i32_1 = arith.constant 0 : i32
    %c0_i32_2 = arith.constant 0 : i32
    return %c0_i32, %c0_i32_0, %c0_i32_1 : i32, i32, i32
  }
  func.func @transform_6(%arg0: i32) -> (i32, i32, i32) {
    %c0_i32 = arith.constant 0 : i32
    %c0_i32_0 = arith.constant 0 : i32
    %c0_i32_1 = arith.constant 0 : i32
    %c0_i32_2 = arith.constant 0 : i32
    return %c0_i32, %c0_i32_0, %c0_i32_1 : i32, i32, i32
  }
  func.func @transform_7(%arg0: i32) -> (i32, i32, i32) {
    %c0_i32 = arith.constant 0 : i32
    %c0_i32_0 = arith.constant 0 : i32
    %c0_i32_1 = arith.constant 0 : i32
    %c0_i32_2 = arith.constant 0 : i32
    return %c0_i32, %c0_i32_0, %c0_i32_1 : i32, i32, i32
  }
  func.func @transform_8(%arg0: i32) -> (i32, i32) {
    %c0_i32 = arith.constant 0 : i32
    %c0_i32_0 = arith.constant 0 : i32
    %c0_i32_1 = arith.constant 0 : i32
    return %c0_i32, %c0_i32_0 : i32, i32
  }
  func.func @transform_9(%arg0: i32) -> (i32, i32) {
    %c0_i32 = arith.constant 0 : i32
    %c0_i32_0 = arith.constant 0 : i32
    %c0_i32_1 = arith.constant 0 : i32
    return %c0_i32, %c0_i32_0 : i32, i32
  }
  func.func @transform_10(%arg0: i32) -> (i32, i32, i32) {
    %c0_i32 = arith.constant 0 : i32
    %c0_i32_0 = arith.constant 0 : i32
    %c0_i32_1 = arith.constant 0 : i32
    return %arg0, %c0_i32, %c0_i32_0 : i32, i32, i32
  }
}

</mosaic_0001>

<llo_original>
// kernel: vit_model_forward.1
$region0: #{vit_model_forward.1}
  #allocation0 [shape = 'u32[]', space=smem, size = 0x4, offset = 0x4, fixed_abs, tag = 'smem constant byte address 0x4 - core index']
  #allocation1 [shape = 'u32[72,128]{1,0:T(1,128)}', space=vmem, size = 0x9000, scoped, tag = 'internal scratch']
  %s0 = inlined_call_operand.vmem [shape: bf16[2,16,384], index: 0, kind: input, shape index: {}]
  %s1 = inlined_call_operand.vmem [shape: bf16[384,32], index: 1, kind: input, shape index: {}]
  %s2 = inlined_call_operand.vmem [shape: f32[16,32], index: 2, kind: input, shape index: {}]
  %s3 = inlined_call_operand.vmem [shape: f32[3,8,128], index: 3, kind: input, shape index: {}]
  %s4 = inlined_call_operand.vmem [shape: bf16[3,32,96], index: 4, kind: input, shape index: {}]
  %s5 = inlined_call_operand.vmem [shape: bf16[3,32,32], index: 5, kind: input, shape index: {}]
  %s6 = inlined_call_operand.vmem [shape: bf16[3,32,64], index: 6, kind: input, shape index: {}]
  %s7 = inlined_call_operand.vmem [shape: bf16[3,64,32], index: 7, kind: input, shape index: {}]
  %s8 = inlined_call_operand.vmem [shape: f32[8,128], index: 8, kind: input, shape index: {}]
  %s9 = inlined_call_operand.vmem [shape: bf16[32,128], index: 9, kind: input, shape index: {}]
  %s10 = inlined_call_operand.vmem [shape: f32[2,8,128], index: 10, kind: output, shape index: {}]
  %s11 = sld [smem:[#allocation0]]
  $region73: #{vit_model_forward.1} parent=0
    _
  %s13 = ssub.s32 1, %s11
  %s14 = scalar_select 0, %s13, %s11
  loop: start=0, step=1, limit=4
  $region2: #{vit_model_forward.1} parent=0 // loop_pre_header
    _
  $region3: #{vit_model_forward.1} parent=0 // loop_header
    %s16 = sphi 0, %s20
    %p17 = scmp.ge.s32.totalorder %s16, 4
    %s26 = sphi 0, %s28
    %s29 = sphi 0, %s26
    %s30 = sphi 0, %s29
    %s46 = sphi 0, %s30
    %s50 = sphi 0, %s50
    %s52 = sphi 0, %s50
    %s53 = sphi 0, %s52
    %s67 = sphi 0, %s53
    %s71 = sphi 0, %s71
    %s73 = sphi 0, %s71
    %s74 = sphi 0, %s73
    %s88 = sphi 0, %s74
    %s92 = sphi 0, %s92
    %s94 = sphi 0, %s92
    %s95 = sphi 0, %s94
    %s109 = sphi 0, %s95
    %s113 = sphi 0, %s113
    %s115 = sphi 0, %s113
    %s116 = sphi 0, %s115
    %s130 = sphi 0, %s116
    %s134 = sphi 0, %s134
    %s136 = sphi 0, %s134
    %s137 = sphi 0, %s136
    %s151 = sphi 0, %s137
    %s155 = sphi 0, %s155
    %s157 = sphi 0, %s155
    %s158 = sphi 0, %s157
    %s172 = sphi 0, %s158
    %s176 = sphi 0, %s176
    %s178 = sphi 0, %s176
    %s179 = sphi 0, %s178
    %s193 = sphi 0, %s179
    %s197 = sphi 0, %s197
    %s199 = sphi 0, %s197
    %s200 = sphi 0, %s199
    %s214 = sphi 0, %s200
    %s218 = sphi 0, %s218
    %s220 = sphi 0, %s218
    %s221 = sphi 0, %s220
    %s235 = sphi 0, %s221
    %s241 = sphi 0, %s243
    %s244 = sphi 0, %s241
    %s245 = sphi 0, %s244
    %s261 = sphi 0, %s245
  $region4: #{vit_model_forward.1} parent=0 // loop_header_branch
    %19 = sbr.rel (%p17) target = $region8
  $region5: #{vit_model_forward.1} parent=0 // loop_body
    %s21 = ssub.s32 %s16, 1
    %s22 = ssub.s32 %s16, 2
    %s23 = sadd.s32 %s16, 1
    %s24 = ssub.s32 %s16, %s23
    %p25 = scmp.eq.s32.totalorder %s24, 0
    %s27 = sadd.s32 %s26, 1
    %s28 = scalar_select %p25, %s26, %s27
    %p31 = pneg %p25
    %p32 = scmp.eq.s32.totalorder %s16, 1
    %p33 = por %p31, %p32
    %p34 = scmp.ne.s32.totalorder %s26, %s29
    %p35 = scmp.eq.s32.totalorder %s16, 0
    %p36 = por %p34, %p35
    %p37 = scmp.ne.s32.totalorder %s26, %s29
    %p38 = scmp.eq.s32.totalorder %s21, 1
    %p39 = por %p37, %p38
    %p40 = scmp.ne.s32.totalorder %s29, %s30
    %p41 = scmp.eq.s32.totalorder %s21, 0
    %p42 = por %p40, %p41
    %p43 = scmp.ne.s32.totalorder %s29, %s30
    %p44 = scmp.eq.s32.totalorder %s22, 1
    %p45 = por %p43, %p44
    %p47 = scmp.ne.s32.totalorder %s30, %s46
    %p48 = scmp.eq.s32.totalorder %s22, 0
    %p49 = por %p47, %p48
    %s51 = sadd.s32 %s50, 1
    %p54 = scmp.eq.s32.totalorder %s16, 1
    %p55 = scmp.ne.s32.totalorder %s50, %s52
    %p56 = scmp.eq.s32.totalorder %s16, 0
    %p57 = por %p55, %p56
    %p58 = scmp.ne.s32.totalorder %s50, %s52
    %p59 = scmp.eq.s32.totalorder %s21, 1
    %p60 = por %p58, %p59
    %p61 = scmp.ne.s32.totalorder %s52, %s53
    %p62 = scmp.eq.s32.totalorder %s21, 0
    %p63 = por %p61, %p62
    %p64 = scmp.ne.s32.totalorder %s52, %s53
    %p65 = scmp.eq.s32.totalorder %s22, 1
    %p66 = por %p64, %p65
    %p68 = scmp.ne.s32.totalorder %s53, %s67
    %p69 = scmp.eq.s32.totalorder %s22, 0
    %p70 = por %p68, %p69
    %s72 = sadd.s32 %s71, 1
    %p75 = scmp.eq.s32.totalorder %s16, 1
    %p76 = scmp.ne.s32.totalorder %s71, %s73
    %p77 = scmp.eq.s32.totalorder %s16, 0
    %p78 = por %p76, %p77
    %p79 = scmp.ne.s32.totalorder %s71, %s73
    %p80 = scmp.eq.s32.totalorder %s21, 1
    %p81 = por %p79, %p80
    %p82 = scmp.ne.s32.totalorder %s73, %s74
    %p83 = scmp.eq.s32.totalorder %s21, 0
    %p84 = por %p82, %p83
    %p85 = scmp.ne.s32.totalorder %s73, %s74
    %p86 = scmp.eq.s32.totalorder %s22, 1
    %p87 = por %p85, %p86
    %p89 = scmp.ne.s32.totalorder %s74, %s88
    %p90 = scmp.eq.s32.totalorder %s22, 0
    %p91 = por %p89, %p90
    %s93 = sadd.s32 %s92, 1
    %p96 = scmp.eq.s32.totalorder %s16, 1
    %p97 = scmp.ne.s32.totalorder %s92, %s94
    %p98 = scmp.eq.s32.totalorder %s16, 0
    %p99 = por %p97, %p98
    %p100 = scmp.ne.s32.totalorder %s92, %s94
    %p101 = scmp.eq.s32.totalorder %s21, 1
    %p102 = por %p100, %p101
    %p103 = scmp.ne.s32.totalorder %s94, %s95
    %p104 = scmp.eq.s32.totalorder %s21, 0
    %p105 = por %p103, %p104
    %p106 = scmp.ne.s32.totalorder %s94, %s95
    %p107 = scmp.eq.s32.totalorder %s22, 1
    %p108 = por %p106, %p107
    %p110 = scmp.ne.s32.totalorder %s95, %s109
    %p111 = scmp.eq.s32.totalorder %s22, 0
    %p112 = por %p110, %p111
    %s114 = sadd.s32 %s113, 1
    %p117 = scmp.eq.s32.totalorder %s16, 1
    %p118 = scmp.ne.s32.totalorder %s113, %s115
    %p119 = scmp.eq.s32.totalorder %s16, 0
    %p120 = por %p118, %p119
    %p121 = scmp.ne.s32.totalorder %s113, %s115
    %p122 = scmp.eq.s32.totalorder %s21, 1
    %p123 = por %p121, %p122
    %p124 = scmp.ne.s32.totalorder %s115, %s116
    %p125 = scmp.eq.s32.totalorder %s21, 0
    %p126 = por %p124, %p125
    %p127 = scmp.ne.s32.totalorder %s115, %s116
    %p128 = scmp.eq.s32.totalorder %s22, 1
    %p129 = por %p127, %p128
    %p131 = scmp.ne.s32.totalorder %s116, %s130
    %p132 = scmp.eq.s32.totalorder %s22, 0
    %p133 = por %p131, %p132
    %s135 = sadd.s32 %s134, 1
    %p138 = scmp.eq.s32.totalorder %s16, 1
    %p139 = scmp.ne.s32.totalorder %s134, %s136
    %p140 = scmp.eq.s32.totalorder %s16, 0
    %p141 = por %p139, %p140
    %p142 = scmp.ne.s32.totalorder %s134, %s136
    %p143 = scmp.eq.s32.totalorder %s21, 1
    %p144 = por %p142, %p143
    %p145 = scmp.ne.s32.totalorder %s136, %s137
    %p146 = scmp.eq.s32.totalorder %s21, 0
    %p147 = por %p145, %p146
    %p148 = scmp.ne.s32.totalorder %s136, %s137
    %p149 = scmp.eq.s32.totalorder %s22, 1
    %p150 = por %p148, %p149
    %p152 = scmp.ne.s32.totalorder %s137, %s151
    %p153 = scmp.eq.s32.totalorder %s22, 0
    %p154 = por %p152, %p153
    %s156 = sadd.s32 %s155, 1
    %p159 = scmp.eq.s32.totalorder %s16, 1
    %p160 = scmp.ne.s32.totalorder %s155, %s157
    %p161 = scmp.eq.s32.totalorder %s16, 0
    %p162 = por %p160, %p161
    %p163 = scmp.ne.s32.totalorder %s155, %s157
    %p164 = scmp.eq.s32.totalorder %s21, 1
    %p165 = por %p163, %p164
    %p166 = scmp.ne.s32.totalorder %s157, %s158
    %p167 = scmp.eq.s32.totalorder %s21, 0
    %p168 = por %p166, %p167
    %p169 = scmp.ne.s32.totalorder %s157, %s158
    %p170 = scmp.eq.s32.totalorder %s22, 1
    %p171 = por %p169, %p170
    %p173 = scmp.ne.s32.totalorder %s158, %s172
    %p174 = scmp.eq.s32.totalorder %s22, 0
    %p175 = por %p173, %p174
    %s177 = sadd.s32 %s176, 1
    %p180 = scmp.eq.s32.totalorder %s16, 1
    %p181 = scmp.ne.s32.totalorder %s176, %s178
    %p182 = scmp.eq.s32.totalorder %s16, 0
    %p183 = por %p181, %p182
    %p184 = scmp.ne.s32.totalorder %s176, %s178
    %p185 = scmp.eq.s32.totalorder %s21, 1
    %p186 = por %p184, %p185
    %p187 = scmp.ne.s32.totalorder %s178, %s179
    %p188 = scmp.eq.s32.totalorder %s21, 0
    %p189 = por %p187, %p188
    %p190 = scmp.ne.s32.totalorder %s178, %s179
    %p191 = scmp.eq.s32.totalorder %s22, 1
    %p192 = por %p190, %p191
    %p194 = scmp.ne.s32.totalorder %s179, %s193
    %p195 = scmp.eq.s32.totalorder %s22, 0
    %p196 = por %p194, %p195
    %s198 = sadd.s32 %s197, 1
    %p201 = scmp.eq.s32.totalorder %s16, 1
    %p202 = scmp.ne.s32.totalorder %s197, %s199
    %p203 = scmp.eq.s32.totalorder %s16, 0
    %p204 = por %p202, %p203
    %p205 = scmp.ne.s32.totalorder %s197, %s199
    %p206 = scmp.eq.s32.totalorder %s21, 1
    %p207 = por %p205, %p206
    %p208 = scmp.ne.s32.totalorder %s199, %s200
    %p209 = scmp.eq.s32.totalorder %s21, 0
    %p210 = por %p208, %p209
    %p211 = scmp.ne.s32.totalorder %s199, %s200
    %p212 = scmp.eq.s32.totalorder %s22, 1
    %p213 = por %p211, %p212
    %p215 = scmp.ne.s32.totalorder %s200, %s214
    %p216 = scmp.eq.s32.totalorder %s22, 0
    %p217 = por %p215, %p216
    %s219 = sadd.s32 %s218, 1
    %p222 = scmp.eq.s32.totalorder %s16, 1
    %p223 = scmp.ne.s32.totalorder %s218, %s220
    %p224 = scmp.eq.s32.totalorder %s16, 0
    %p225 = por %p223, %p224
    %p226 = scmp.ne.s32.totalorder %s218, %s220
    %p227 = scmp.eq.s32.totalorder %s21, 1
    %p228 = por %p226, %p227
    %p229 = scmp.ne.s32.totalorder %s220, %s221
    %p230 = scmp.eq.s32.totalorder %s21, 0
    %p231 = por %p229, %p230
    %p232 = scmp.ne.s32.totalorder %s220, %s221
    %p233 = scmp.eq.s32.totalorder %s22, 1
    %p234 = por %p232, %p233
    %p236 = scmp.ne.s32.totalorder %s221, %s235
    %p237 = scmp.eq.s32.totalorder %s22, 0
    %p238 = por %p236, %p237
    %s239 = ssub.s32 %s16, %s23
    %p240 = scmp.eq.s32.totalorder %s239, 0
    %s242 = sadd.s32 %s241, 1
    %s243 = scalar_select %p240, %s241, %s242
    %p246 = pneg %p240
    %p247 = scmp.eq.s32.totalorder %s16, 1
    %p248 = por %p246, %p247
    %p249 = scmp.ne.s32.totalorder %s241, %s244
    %p250 = scmp.eq.s32.totalorder %s16, 0
    %p251 = por %p249, %p250
    %p252 = scmp.ne.s32.totalorder %s241, %s244
    %p253 = scmp.eq.s32.totalorder %s21, 1
    %p254 = por %p252, %p253
    %p255 = scmp.ne.s32.totalorder %s244, %s245
    %p256 = scmp.eq.s32.totalorder %s21, 0
    %p257 = por %p255, %p256
    %p258 = scmp.ne.s32.totalorder %s244, %s245
    %p259 = scmp.eq.s32.totalorder %s22, 1
    %p260 = por %p258, %p259
    %p262 = scmp.ne.s32.totalorder %s245, %s261
    %p263 = scmp.eq.s32.totalorder %s22, 0
    %p264 = por %p262, %p263
    %p265 = scmp.le.s32.totalorder 1, %s16
    %p266 = scmp.lt.s32.totalorder %s16, 3
    %p267 = pnand %p265, %p266
    %p268 = pneg %p267
    // Predicated region
    $region9: #{vit_model_forward.1} parent=5 // pred_check
      _
    $region10: #{vit_model_forward.1} parent=5 // pred_check_branch
      %270 = sbr.rel (%p267) target = $region12
    $region11: #{vit_model_forward.1} parent=5 // pred_region
      %s271 = ssub.s32 %s16, 1
      // Predicated region
      $region13: #{vit_model_forward.1} parent=11 // pred_check
        %p272 = pneg %p63
      $region14: #{vit_model_forward.1} parent=11 // pred_check_branch
        %274 = sbr.rel (%p272) target = $region16
      $region15: #{vit_model_forward.1} parent=11 // pred_region
        _
      $region16: #{vit_model_forward.1} parent=11 // pred_fallthru
        _
      // Predicated region
      $region17: #{vit_model_forward.1} parent=11 // pred_check
        %p275 = pneg %p84
      $region18: #{vit_model_forward.1} parent=11 // pred_check_branch
        %277 = sbr.rel (%p275) target = $region20
      $region19: #{vit_model_forward.1} parent=11 // pred_region
        _
      $region20: #{vit_model_forward.1} parent=11 // pred_fallthru
        _
      // Predicated region
      $region21: #{vit_model_forward.1} parent=11 // pred_check
        %p278 = pneg %p105
      $region22: #{vit_model_forward.1} parent=11 // pred_check_branch
        %280 = sbr.rel (%p278) target = $region24
      $region23: #{vit_model_forward.1} parent=11 // pred_region
        _
      $region24: #{vit_model_forward.1} parent=11 // pred_fallthru
        _
      // Predicated region
      $region25: #{vit_model_forward.1} parent=11 // pred_check
        %p281 = pneg %p126
      $region26: #{vit_model_forward.1} parent=11 // pred_check_branch
        %283 = sbr.rel (%p281) target = $region28
      $region27: #{vit_model_forward.1} parent=11 // pred_region
        _
      $region28: #{vit_model_forward.1} parent=11 // pred_fallthru
        _
      // Predicated region
      $region29: #{vit_model_forward.1} parent=11 // pred_check
        %p284 = pneg %p147
      $region30: #{vit_model_forward.1} parent=11 // pred_check_branch
        %286 = sbr.rel (%p284) target = $region32
      $region31: #{vit_model_forward.1} parent=11 // pred_region
        _
      $region32: #{vit_model_forward.1} parent=11 // pred_fallthru
        _
      // Predicated region
      $region33: #{vit_model_forward.1} parent=11 // pred_check
        %p287 = pneg %p168
      $region34: #{vit_model_forward.1} parent=11 // pred_check_branch
        %289 = sbr.rel (%p287) target = $region36
      $region35: #{vit_model_forward.1} parent=11 // pred_region
        _
      $region36: #{vit_model_forward.1} parent=11 // pred_fallthru
        _
      // Predicated region
      $region37: #{vit_model_forward.1} parent=11 // pred_check
        %p290 = pneg %p189
      $region38: #{vit_model_forward.1} parent=11 // pred_check_branch
        %292 = sbr.rel (%p290) target = $region40
      $region39: #{vit_model_forward.1} parent=11 // pred_region
        _
      $region40: #{vit_model_forward.1} parent=11 // pred_fallthru
        _
      // Predicated region
      $region41: #{vit_model_forward.1} parent=11 // pred_check
        %p293 = pneg %p210
      $region42: #{vit_model_forward.1} parent=11 // pred_check_branch
        %295 = sbr.rel (%p293) target = $region44
      $region43: #{vit_model_forward.1} parent=11 // pred_region
        _
      $region44: #{vit_model_forward.1} parent=11 // pred_fallthru
        _
      // Predicated region
      $region45: #{vit_model_forward.1} parent=11 // pred_check
        %p296 = pneg %p231
      $region46: #{vit_model_forward.1} parent=11 // pred_check_branch
        %298 = sbr.rel (%p296) target = $region48
      $region47: #{vit_model_forward.1} parent=11 // pred_region
        _
      $region48: #{vit_model_forward.1} parent=11 // pred_fallthru
        _
    $region12: #{vit_model_forward.1} parent=5 // pred_fallthru
      _
    %p299 = scmp.lt.s32.totalorder %s16, 2
    // Predicated region
    $region49: #{vit_model_forward.1} parent=5 // pred_check
      %p300 = pneg %p299
    $region50: #{vit_model_forward.1} parent=5 // pred_check_branch
      %302 = sbr.rel (%p300) target = $region52
    $region51: #{vit_model_forward.1} parent=5 // pred_region
      // Predicated region
      $region53: #{vit_model_forward.1} parent=51 // pred_check
        %p303 = pneg %p36
      $region54: #{vit_model_forward.1} parent=51 // pred_check_branch
        %305 = sbr.rel (%p303) target = $region56
      $region55: #{vit_model_forward.1} parent=51 // pred_region
        %p306 = scmp.lt.s32.totalorder %s16, 1
        %s307 = scalar_select %p306, %s16, 1
        %s308 = smul.addr %s307, 6
        %s309 = smul.addr %s308, 4
        %s310 = scalar_lea.vmem %s0, %s309
      $region56: #{vit_model_forward.1} parent=51 // pred_fallthru
        _
    $region52: #{vit_model_forward.1} parent=5 // pred_fallthru
      _
    %p311 = scmp.le.s32.totalorder 1, %s16
    %p312 = scmp.lt.s32.totalorder %s16, 3
    %p313 = pnand %p311, %p312
    %p314 = pneg %p313
    // Predicated region
    $region57: #{vit_model_forward.1} parent=5 // pred_check
      _
    $region58: #{vit_model_forward.1} parent=5 // pred_check_branch
      %316 = sbr.rel (%p313) target = $region60
    $region59: #{vit_model_forward.1} parent=5 // pred_region
      %s317 = ssub.s32 %s16, 1
      %p318 = scmp.lt.s32.totalorder %s21, 1
      %s319 = scalar_select %p318, %s21, 1
      %s320 = smul.addr %s319, 6
      %s321 = smul.addr %s320, 4
      %s322 = scalar_lea.vmem %s0, %s321
      %p323 = pneg %p42
      %p324 = pneg %p39
      %p325 = pneg %p63
      %p326 = pneg %p60
      %p327 = pneg %p84
      %p328 = pneg %p81
      %p329 = pneg %p105
      %p330 = pneg %p102
      %p331 = pneg %p126
      %p332 = pneg %p123
      %p333 = pneg %p147
      %p334 = pneg %p144
      %p335 = pneg %p168
      %p336 = pneg %p165
      %p337 = pneg %p189
      %p338 = pneg %p186
      %p339 = pneg %p210
      %p340 = pneg %p207
      %p341 = pneg %p231
      %p342 = pneg %p228
      %p343 = pneg %p257
      %p344 = pneg %p254
      %p345 = scmp.lt.s32.totalorder %s21, 1
      %s346 = scalar_select %p345, %s21, 1
      %s347 = smul.addr %s346, 8
      %s348 = scalar_lea.vmem %s10, %s347
      %p349 = scmp.lt.s32.totalorder %s21, 1
      %s350 = scalar_select %p349, %s21, 1
      %s351 = smul.addr %s350, 6
      %s352 = smul.addr %s351, 4
      %s353 = scalar_lea.vmem %s0, %s352
      %p354 = scmp.lt.s32.totalorder %s21, 1
      %s355 = scalar_select %p354, %s21, 1
      %s356 = smul.addr %s355, 8
      %s357 = scalar_lea.vmem %s10, %s356
      %v359 = vld [vmem:[%s353] sm:$0xff]
      %v360 = vld [vmem:[%s353 + $0x8] sm:$0xf]
      %v361 = vld [vmem:[%s353 + $0xc] sm:$0xff]
      %v362 = vld [vmem:[%s353 + $0x14] sm:$0xf]
      %v363 = vld [vmem:[%s1] sm:$0xf]
      %v364 = vld [vmem:[%s1 + $0x4] sm:$0xf]
      %v365 = vld [vmem:[%s1 + $0x8] sm:$0xf]
      %v366 = vld [vmem:[%s1 + $0xc] sm:$0xf]
      %v367 = vld [vmem:[%s1 + $0x10] sm:$0xf]
      %v368 = vld [vmem:[%s1 + $0x14] sm:$0xf]
      %v369 = vld [vmem:[%s1 + $0x18] sm:$0xf]
      %v370 = vld [vmem:[%s1 + $0x1c] sm:$0xf]
      %v371 = vld [vmem:[%s1 + $0x20] sm:$0xf]
      %v372 = vld [vmem:[%s1 + $0x24] sm:$0xf]
      %v373 = vld [vmem:[%s1 + $0x28] sm:$0xf]
      %v374 = vld [vmem:[%s1 + $0x2c] sm:$0xf]
      %v375 = vld [vmem:[%s1 + $0x30] sm:$0xf]
      %v376 = vld [vmem:[%s1 + $0x34] sm:$0xf]
      %v377 = vld [vmem:[%s1 + $0x38] sm:$0xf]
      %v378 = vld [vmem:[%s1 + $0x3c] sm:$0xf]
      %v379 = vld [vmem:[%s1 + $0x40] sm:$0xf]
      %v380 = vld [vmem:[%s1 + $0x44] sm:$0xf]
      %v381 = vld [vmem:[%s1 + $0x48] sm:$0xf]
      %v382 = vld [vmem:[%s1 + $0x4c] sm:$0xf]
      %v383 = vld [vmem:[%s1 + $0x50] sm:$0xf]
      %v384 = vld [vmem:[%s1 + $0x54] sm:$0xf]
      %v385 = vld [vmem:[%s1 + $0x58] sm:$0xf]
      %v386 = vld [vmem:[%s1 + $0x5c] sm:$0xf]
      %v387 = vld [vmem:[%s1 + $0x60] sm:$0xf]
      %v388 = vld [vmem:[%s1 + $0x64] sm:$0xf]
      %v389 = vld [vmem:[%s1 + $0x68] sm:$0xf]
      %v390 = vld [vmem:[%s1 + $0x6c] sm:$0xf]
      %v391 = vld [vmem:[%s1 + $0x70] sm:$0xf]
      %v392 = vld [vmem:[%s1 + $0x74] sm:$0xf]
      %v393 = vld [vmem:[%s1 + $0x78] sm:$0xf]
      %v394 = vld [vmem:[%s1 + $0x7c] sm:$0xf]
      %v395 = vld [vmem:[%s1 + $0x80] sm:$0xf]
      %v396 = vld [vmem:[%s1 + $0x84] sm:$0xf]
      %v397 = vld [vmem:[%s1 + $0x88] sm:$0xf]
      %v398 = vld [vmem:[%s1 + $0x8c] sm:$0xf]
      %v399 = vld [vmem:[%s1 + $0x90] sm:$0xf]
      %v400 = vld [vmem:[%s1 + $0x94] sm:$0xf]
      %v401 = vld [vmem:[%s1 + $0x98] sm:$0xf]
      %v402 = vld [vmem:[%s1 + $0x9c] sm:$0xf]
      %v403 = vld [vmem:[%s1 + $0xa0] sm:$0xf]
      %v404 = vld [vmem:[%s1 + $0xa4] sm:$0xf]
      %v405 = vld [vmem:[%s1 + $0xa8] sm:$0xf]
      %v406 = vld [vmem:[%s1 + $0xac] sm:$0xf]
      %v407 = vld [vmem:[%s1 + $0xb0] sm:$0xf]
      %v408 = vld [vmem:[%s1 + $0xb4] sm:$0xf]
      %v409 = vld [vmem:[%s1 + $0xb8] sm:$0xf]
      %v410 = vld [vmem:[%s1 + $0xbc] sm:$0xf]
      %v411 = vld [vmem:[%s2] sm:$0xff]
      %v412 = vld [vmem:[%s2 + $0x8] sm:$0xff]
      %v417 = vunpack.c.l.b16 %v359
      %v418 = vunpack.c.h.b16 %v359
      %v419 = vunpack.c.l.b16 %v360
      %v420 = vunpack.c.l.b16 %v361
      %v421 = vunpack.c.h.b16 %v361
      %v422 = vunpack.c.l.b16 %v362
      %v423 = vpack.c.b16 %v420, %v417
      %v424 = vpack.c.b16 %v421, %v418
      %v425 = vpack.c.b16 %v422, %v419
      %v477 = vunpack.c.l.b16 %v363
      %v478 = vunpack.c.l.b16 %v364
      %v479 = vunpack.c.l.b16 %v365
      %v480 = vunpack.c.l.b16 %v366
      %v481 = vunpack.c.l.b16 %v367
      %v482 = vunpack.c.l.b16 %v368
      %v483 = vunpack.c.l.b16 %v369
      %v484 = vunpack.c.l.b16 %v370
      %v485 = vunpack.c.l.b16 %v371
      %v486 = vunpack.c.l.b16 %v372
      %v487 = vunpack.c.l.b16 %v373
      %v488 = vunpack.c.l.b16 %v374
      %v489 = vunpack.c.l.b16 %v375
      %v490 = vunpack.c.l.b16 %v376
      %v491 = vunpack.c.l.b16 %v377
      %v492 = vunpack.c.l.b16 %v378
      %v493 = vunpack.c.l.b16 %v379
      %v494 = vunpack.c.l.b16 %v380
      %v495 = vunpack.c.l.b16 %v381
      %v496 = vunpack.c.l.b16 %v382
      %v497 = vunpack.c.l.b16 %v383
      %v498 = vunpack.c.l.b16 %v384
      %v499 = vunpack.c.l.b16 %v385
      %v500 = vunpack.c.l.b16 %v386
      %v501 = vunpack.c.l.b16 %v387
      %v502 = vunpack.c.l.b16 %v388
      %v503 = vunpack.c.l.b16 %v389
      %v504 = vunpack.c.l.b16 %v390
      %v505 = vunpack.c.l.b16 %v391
      %v506 = vunpack.c.l.b16 %v392
      %v507 = vunpack.c.l.b16 %v393
      %v508 = vunpack.c.l.b16 %v394
      %v509 = vunpack.c.l.b16 %v395
      %v510 = vunpack.c.l.b16 %v396
      %v511 = vunpack.c.l.b16 %v397
      %v512 = vunpack.c.l.b16 %v398
      %v513 = vunpack.c.l.b16 %v399
      %v514 = vunpack.c.l.b16 %v400
      %v515 = vunpack.c.l.b16 %v401
      %v516 = vunpack.c.l.b16 %v402
      %v517 = vunpack.c.l.b16 %v403
      %v518 = vunpack.c.l.b16 %v404
      %v519 = vunpack.c.l.b16 %v405
      %v520 = vunpack.c.l.b16 %v406
      %v521 = vunpack.c.l.b16 %v407
      %v522 = vunpack.c.l.b16 %v408
      %v523 = vunpack.c.l.b16 %v409
      %v524 = vunpack.c.l.b16 %v410
      %v525 = vpack.c.b16 %v478, %v477
      %v526 = vpack.c.b16 %v480, %v479
      %v527 = vpack.c.b16 %v482, %v481
      %v528 = vpack.c.b16 %v484, %v483
      %v529 = vpack.c.b16 %v486, %v485
      %v530 = vpack.c.b16 %v488, %v487
      %v531 = vpack.c.b16 %v490, %v489
      %v532 = vpack.c.b16 %v492, %v491
      %v533 = vpack.c.b16 %v494, %v493
      %v534 = vpack.c.b16 %v496, %v495
      %v535 = vpack.c.b16 %v498, %v497
      %v536 = vpack.c.b16 %v500, %v499
      %v537 = vpack.c.b16 %v502, %v501
      %v538 = vpack.c.b16 %v504, %v503
      %v539 = vpack.c.b16 %v506, %v505
      %v540 = vpack.c.b16 %v508, %v507
      %v541 = vpack.c.b16 %v510, %v509
      %v542 = vpack.c.b16 %v512, %v511
      %v543 = vpack.c.b16 %v514, %v513
      %v544 = vpack.c.b16 %v516, %v515
      %v545 = vpack.c.b16 %v518, %v517
      %v546 = vpack.c.b16 %v520, %v519
      %v547 = vpack.c.b16 %v522, %v521
      %v548 = vpack.c.b16 %v524, %v523
      %573 = vmatpush.bf16.msra.mxu0 %v532
      %574 = vmatpush.bf16.msra.mxu0 %v531
      %575 = vmatpush.bf16.msra.mxu0 %v530
      %576 = vmatpush.bf16.msra.mxu0 %v529
      %577 = vmatpush.bf16.msra.mxu0 %v528
      %578 = vmatpush.bf16.msra.mxu0 %v527
      %579 = vmatpush.bf16.msra.mxu0 %v526
      %580 = vmatpush.bf16.msra.mxu0 %v525
      %581 = vmatmul.bf16.gmra.mxu0 %v423
      %v582 = vpop.f32.mrf.mxu0
      %v583 = vadd.f32 %v411, %v582
      %v584 = vpop.f32.mrf.mxu0
      %v585 = vadd.f32 %v412, %v584
      %586 = vdwg.mxu0
      %587 = vmatpush.bf16.msra.mxu0 %v540
      %588 = vmatpush.bf16.msra.mxu0 %v539
      %589 = vmatpush.bf16.msra.mxu0 %v538
      %590 = vmatpush.bf16.msra.mxu0 %v537
      %591 = vmatpush.bf16.msra.mxu0 %v536
      %592 = vmatpush.bf16.msra.mxu0 %v535
      %593 = vmatpush.bf16.msra.mxu0 %v534
      %594 = vmatpush.bf16.msra.mxu0 %v533
      %595 = vmatmul.bf16.gmra.mxu0 %v424
      %v596 = vpop.f32.mrf.mxu0
      %v597 = vadd.f32 %v583, %v596
      %v598 = vpop.f32.mrf.mxu0
      %v599 = vadd.f32 %v585, %v598
      %600 = vdwg.mxu0
      %601 = vmatpush.bf16.msra.mxu0 %v548
      %602 = vmatpush.bf16.msra.mxu0 %v547
      %603 = vmatpush.bf16.msra.mxu0 %v546
      %604 = vmatpush.bf16.msra.mxu0 %v545
      %605 = vmatpush.bf16.msra.mxu0 %v544
      %606 = vmatpush.bf16.msra.mxu0 %v543
      %607 = vmatpush.bf16.msra.mxu0 %v542
      %608 = vmatpush.bf16.msra.mxu0 %v541
      %609 = vmatmul.bf16.gmra.mxu0 %v425
      %v610 = vpop.f32.mrf.mxu0
      %v611 = vadd.f32 %v597, %v610
      %v612 = vpop.f32.mrf.mxu0
      %v613 = vadd.f32 %v599, %v612
      %614 = vdwg.mxu0
      %v615 = vlaneseq
      %v616 = vand.u32 %v615, 127
      %vm617 = vcmp.lt.s32.totalorder %v616, 9
      %v618 = vld [vmem:[%s3] sm:$0xff]
      %vm619 = vcmask 261120
      %v620 = vsel %vm619, %v611, 0.0
      %621 = vadd.xlane.f32.xlu0 %v620
      %v622 = vpop.xlane.xlu0 %621
      %v623 = vsel %vm619, %v613, 0.0
      %624 = vadd.xlane.f32.xlu0 %v623
      %v625 = vpop.xlane.xlu0 %624
      %v626 = vrcp.pop 32.0
      %v627 = vmul.f32 32.0, %v626
      %v628 = vsub.f32 1.0, %v627
      %v629 = vmul.f32 %v626, %v628
      %v630 = vadd.f32 %v626, %v629
      %vm631 = vweird.f32 %v626
      %v632 = vsel %vm631, %v626, %v630
      %v633 = vmul.f32 %v622, %v632
      %v634 = vmul.f32 %v625, %v632
      %v635 = vsub.f32 %v611, %v633
      %v636 = vsub.f32 %v613, %v634
      %v637 = vmul.f32 %v635, %v635
      %v638 = vmul.f32 %v636, %v636
      %v639 = vsel %vm619, %v637, 0.0
      %640 = vadd.xlane.f32.xlu0 %v639
      %v641 = vpop.xlane.xlu0 %640
      %v642 = vsel %vm619, %v638, 0.0
      %643 = vadd.xlane.f32.xlu0 %v642
      %v644 = vpop.xlane.xlu0 %643
      %v645 = vmul.f32 %v641, %v632
      %v646 = vmul.f32 %v644, %v632
      %v647 = vadd.f32 %v645, 1e-06
      %v648 = vadd.f32 %v646, 1e-06
      %v649 = vrsqrt.pop %v647
      %v650 = vmul.f32 %v649, %v647
      %v651 = vmul.f32 %v650, %v649
      %v652 = vmul.f32 0.5, %v651
      %v653 = vsub.f32 1.5, %v652
      %v654 = vmul.f32 %v649, %v653
      %vm655 = vweird.f32 %v647
      %vm656 = vweird.f32 %v649
      %vm657 = vmor %vm655, %vm656
      %v658 = vsel %vm657, %v649, %v654
      %v659 = vrsqrt.pop %v648
      %v660 = vmul.f32 %v659, %v648
      %v661 = vmul.f32 %v660, %v659
      %v662 = vmul.f32 0.5, %v661
      %v663 = vsub.f32 1.5, %v662
      %v664 = vmul.f32 %v659, %v663
      %vm665 = vweird.f32 %v648
      %vm666 = vweird.f32 %v659
      %vm667 = vmor %vm665, %vm666
      %v668 = vsel %vm667, %v659, %v664
      %v669 = vmul.f32 %v635, %v658
      %v670 = vmul.f32 %v636, %v668
      %v671 = vperm.slane %v618, 0
      %v672 = vmul.f32 %v669, %v671
      %v673 = vmul.f32 %v670, %v671
      %v674 = vperm.slane %v618, 1
      %v675 = vadd.f32 %v672, %v674
      %v676 = vadd.f32 %v673, %v674
      %v677 = vpack.c.bf16 %v676, %v675
      %v678 = vld [vmem:[%s4] sm:$0xf]
      %v679 = vld [vmem:[%s4 + $0x4] sm:$0xf]
      %v680 = vld [vmem:[%s4 + $0x8] sm:$0xf]
      %v681 = vld [vmem:[%s4 + $0xc] sm:$0xf]
      %v682 = vperm.slane %v618, 4
      %v687 = vunpack.c.l.b16 %v678
      %v688 = vunpack.c.l.b16 %v679
      %v689 = vunpack.c.l.b16 %v680
      %v690 = vunpack.c.l.b16 %v681
      %v691 = vpack.c.b16 %v688, %v687
      %v692 = vpack.c.b16 %v690, %v689
      %v696 = vsel %vm619, %v677, 0
      %698 = vmatpush.bf16.msra.mxu0 0
      %699 = vmatpush.bf16.msra.mxu0 0
      %700 = vmatpush.bf16.msra.mxu0 0
      %701 = vmatpush.bf16.msra.mxu0 0
      %702 = vmatpush.bf16.msra.mxu0 0
      %703 = vmatpush.bf16.msra.mxu0 0
      %704 = vmatpush.bf16.msra.mxu0 %v692
      %705 = vmatpush.bf16.msra.mxu0 %v691
      %706 = vmatmul.bf16.gmra.mxu0 %v696
      %v707 = vpop.f32.mrf.mxu0
      %v708 = vadd.f32 %v682, %v707
      %v709 = vpop.f32.mrf.mxu0
      %v710 = vadd.f32 %v682, %v709
      %711 = vdwg.mxu0
      %v712 = vpack.c.bf16 %v710, %v708
      %714 = vrot.lane.b32.xlu0 %v712, 96
      %v715 = vpop.permute.xlu0 %714
      %vm716 = vcmask 64512
      %v718 = vsel %vm716, %v712, 0
      %v721 = vsel %vm716, %v715, 0
      %723 = vmatpush.bf16.xpose.msra.mxu0 0
      %724 = vmatpush.bf16.xpose.msra.mxu0 0
      %725 = vmatpush.bf16.xpose.msra.mxu0 0
      %726 = vmatpush.bf16.xpose.msra.mxu0 0
      %727 = vmatpush.bf16.xpose.msra.mxu0 0
      %728 = vmatpush.bf16.xpose.msra.mxu0 0
      %729 = vmatpush.bf16.xpose.msra.mxu0 0
      %730 = vmatpush.bf16.xpose.msra.mxu0 %v721
      %731 = vmatmul.bf16.gmra.mxu0 %v718
      %v732 = vpop.f32.mrf.mxu0
      %v733 = vadd.f32 0.0, %v732
      %v734 = vpop.f32.mrf.mxu0
      %v735 = vadd.f32 0.0, %v734
      %736 = vdwg.mxu0
      %v737 = vsel %vm617, %v733, -1e+30
      %v738 = vsel %vm617, %v735, -1e+30
      %vm739 = vcmask 130048
      %v740 = vsel %vm739, %v737, -inf
      %741 = vmax.xlane.f32.xlu0 %v740
      %v742 = vpop.xlane.xlu0 %741
      %v743 = vsel %vm739, %v738, -inf
      %744 = vmax.xlane.f32.xlu0 %v743
      %v745 = vpop.xlane.xlu0 %744
      %v746 = vsub.f32 %v737, %v742
      %v747 = vsub.f32 %v738, %v745
      %v748 = vmul.f32 %v746, 1.442695
      %v749 = vpow.pop %v748
      %v750 = vmul.f32 %v747, 1.442695
      %v751 = vpow.pop %v750
      %v752 = vsel %vm739, %v749, 0.0
      %753 = vadd.xlane.f32.xlu0 %v752
      %v754 = vpop.xlane.xlu0 %753
      %v755 = vsel %vm739, %v751, 0.0
      %756 = vadd.xlane.f32.xlu0 %v755
      %v757 = vpop.xlane.xlu0 %756
      %v758 = vrcp.pop %v754
      %v759 = vrcp.pop %v757
      %v760 = vmul.f32 %v749, %v758
      %v761 = vmul.f32 %v751, %v759
      %v762 = vpack.c.bf16 %v761, %v760
      %763 = vrot.lane.b32.xlu0 %v712, 64
      %v764 = vpop.permute.xlu0 %763
      %v767 = vsel %vm739, %v762, 0
      %769 = vmatpush.bf16.msra.mxu0 0
      %770 = vmatpush.bf16.msra.mxu0 0
      %771 = vmatpush.bf16.msra.mxu0 0
      %772 = vmatpush.bf16.msra.mxu0 0
      %773 = vmatpush.bf16.msra.mxu0 0
      %774 = vmatpush.bf16.msra.mxu0 0
      %775 = vmatpush.bf16.msra.mxu0 0
      %776 = vmatpush.bf16.msra.mxu0 %v764
      %777 = vmatmul.bf16.gmra.mxu0 %v767
      %v778 = vpop.f32.mrf.mxu0
      %v779 = vadd.f32 0.0, %v778
      %v780 = vpop.f32.mrf.mxu0
      %v781 = vadd.f32 0.0, %v780
      %782 = vdwg.mxu0
      %783 = vrot.lane.b32.xlu0 %v712, 120
      %v784 = vpop.permute.xlu0 %783
      %785 = vrot.lane.b32.xlu0 %v712, 88
      %v786 = vpop.permute.xlu0 %785
      %v788 = vsel %vm716, %v784, 0
      %v791 = vsel %vm716, %v786, 0
      %793 = vmatpush.bf16.xpose.msra.mxu0 0
      %794 = vmatpush.bf16.xpose.msra.mxu0 0
      %795 = vmatpush.bf16.xpose.msra.mxu0 0
      %796 = vmatpush.bf16.xpose.msra.mxu0 0
      %797 = vmatpush.bf16.xpose.msra.mxu0 0
      %798 = vmatpush.bf16.xpose.msra.mxu0 0
      %799 = vmatpush.bf16.xpose.msra.mxu0 0
      %800 = vmatpush.bf16.xpose.msra.mxu0 %v791
      %801 = vmatmul.bf16.gmra.mxu0 %v788
      %v802 = vpop.f32.mrf.mxu0
      %v803 = vadd.f32 0.0, %v802
      %v804 = vpop.f32.mrf.mxu0
      %v805 = vadd.f32 0.0, %v804
      %806 = vdwg.mxu0
      %v807 = vsel %vm617, %v803, -1e+30
      %v808 = vsel %vm617, %v805, -1e+30
      %v809 = vsel %vm739, %v807, -inf
      %810 = vmax.xlane.f32.xlu0 %v809
      %v811 = vpop.xlane.xlu0 %810
      %v812 = vsel %vm739, %v808, -inf
      %813 = vmax.xlane.f32.xlu0 %v812
      %v814 = vpop.xlane.xlu0 %813
      %v815 = vsub.f32 %v807, %v811
      %v816 = vsub.f32 %v808, %v814
      %v817 = vmul.f32 %v815, 1.442695
      %v818 = vpow.pop %v817
      %v819 = vmul.f32 %v816, 1.442695
      %v820 = vpow.pop %v819
      %v821 = vsel %vm739, %v818, 0.0
      %822 = vadd.xlane.f32.xlu0 %v821
      %v823 = vpop.xlane.xlu0 %822
      %v824 = vsel %vm739, %v820, 0.0
      %825 = vadd.xlane.f32.xlu0 %v824
      %v826 = vpop.xlane.xlu0 %825
      %v827 = vrcp.pop %v823
      %v828 = vrcp.pop %v826
      %v829 = vmul.f32 %v818, %v827
      %v830 = vmul.f32 %v820, %v828
      %v831 = vpack.c.bf16 %v830, %v829
      %832 = vrot.lane.b32.xlu0 %v712, 56
      %v833 = vpop.permute.xlu0 %832
      %v836 = vsel %vm739, %v831, 0
      %838 = vmatpush.bf16.msra.mxu0 0
      %839 = vmatpush.bf16.msra.mxu0 0
      %840 = vmatpush.bf16.msra.mxu0 0
      %841 = vmatpush.bf16.msra.mxu0 0
      %842 = vmatpush.bf16.msra.mxu0 0
      %843 = vmatpush.bf16.msra.mxu0 0
      %844 = vmatpush.bf16.msra.mxu0 0
      %845 = vmatpush.bf16.msra.mxu0 %v833
      %846 = vmatmul.bf16.gmra.mxu0 %v836
      %v847 = vpop.f32.mrf.mxu0
      %v848 = vadd.f32 0.0, %v847
      %v849 = vpop.f32.mrf.mxu0
      %v850 = vadd.f32 0.0, %v849
      %851 = vdwg.mxu0
      %852 = vrot.lane.b32.xlu0 %v712, 112
      %v853 = vpop.permute.xlu0 %852
      %854 = vrot.lane.b32.xlu0 %v712, 80
      %v855 = vpop.permute.xlu0 %854
      %v857 = vsel %vm716, %v853, 0
      %v860 = vsel %vm716, %v855, 0
      %862 = vmatpush.bf16.xpose.msra.mxu0 0
      %863 = vmatpush.bf16.xpose.msra.mxu0 0
      %864 = vmatpush.bf16.xpose.msra.mxu0 0
      %865 = vmatpush.bf16.xpose.msra.mxu0 0
      %866 = vmatpush.bf16.xpose.msra.mxu0 0
      %867 = vmatpush.bf16.xpose.msra.mxu0 0
      %868 = vmatpush.bf16.xpose.msra.mxu0 0
      %869 = vmatpush.bf16.xpose.msra.mxu0 %v860
      %870 = vmatmul.bf16.gmra.mxu0 %v857
      %v871 = vpop.f32.mrf.mxu0
      %v872 = vadd.f32 0.0, %v871
      %v873 = vpop.f32.mrf.mxu0
      %v874 = vadd.f32 0.0, %v873
      %875 = vdwg.mxu0
      %v876 = vsel %vm617, %v872, -1e+30
      %v877 = vsel %vm617, %v874, -1e+30
      %v878 = vsel %vm739, %v876, -inf
      %879 = vmax.xlane.f32.xlu0 %v878
      %v880 = vpop.xlane.xlu0 %879
      %v881 = vsel %vm739, %v877, -inf
      %882 = vmax.xlane.f32.xlu0 %v881
      %v883 = vpop.xlane.xlu0 %882
      %v884 = vsub.f32 %v876, %v880
      %v885 = vsub.f32 %v877, %v883
      %v886 = vmul.f32 %v884, 1.442695
      %v887 = vpow.pop %v886
      %v888 = vmul.f32 %v885, 1.442695
      %v889 = vpow.pop %v888
      %v890 = vsel %vm739, %v887, 0.0
      %891 = vadd.xlane.f32.xlu0 %v890
      %v892 = vpop.xlane.xlu0 %891
      %v893 = vsel %vm739, %v889, 0.0
      %894 = vadd.xlane.f32.xlu0 %v893
      %v895 = vpop.xlane.xlu0 %894
      %v896 = vrcp.pop %v892
      %v897 = vrcp.pop %v895
      %v898 = vmul.f32 %v887, %v896
      %v899 = vmul.f32 %v889, %v897
      %v900 = vpack.c.bf16 %v899, %v898
      %901 = vrot.lane.b32.xlu0 %v712, 48
      %v902 = vpop.permute.xlu0 %901
      %v905 = vsel %vm739, %v900, 0
      %907 = vmatpush.bf16.msra.mxu0 0
      %908 = vmatpush.bf16.msra.mxu0 0
      %909 = vmatpush.bf16.msra.mxu0 0
      %910 = vmatpush.bf16.msra.mxu0 0
      %911 = vmatpush.bf16.msra.mxu0 0
      %912 = vmatpush.bf16.msra.mxu0 0
      %913 = vmatpush.bf16.msra.mxu0 0
      %914 = vmatpush.bf16.msra.mxu0 %v902
      %915 = vmatmul.bf16.gmra.mxu0 %v905
      %v916 = vpop.f32.mrf.mxu0
      %v917 = vadd.f32 0.0, %v916
      %v918 = vpop.f32.mrf.mxu0
      %v919 = vadd.f32 0.0, %v918
      %920 = vdwg.mxu0
      %921 = vrot.lane.b32.xlu0 %v712, 104
      %v922 = vpop.permute.xlu0 %921
      %923 = vrot.lane.b32.xlu0 %v712, 72
      %v924 = vpop.permute.xlu0 %923
      %v926 = vsel %vm716, %v922, 0
      %v929 = vsel %vm716, %v924, 0
      %931 = vmatpush.bf16.xpose.msra.mxu0 0
      %932 = vmatpush.bf16.xpose.msra.mxu0 0
      %933 = vmatpush.bf16.xpose.msra.mxu0 0
      %934 = vmatpush.bf16.xpose.msra.mxu0 0
      %935 = vmatpush.bf16.xpose.msra.mxu0 0
      %936 = vmatpush.bf16.xpose.msra.mxu0 0
      %937 = vmatpush.bf16.xpose.msra.mxu0 0
      %938 = vmatpush.bf16.xpose.msra.mxu0 %v929
      %939 = vmatmul.bf16.gmra.mxu0 %v926
      %v940 = vpop.f32.mrf.mxu0
      %v941 = vadd.f32 0.0, %v940
      %v942 = vpop.f32.mrf.mxu0
      %v943 = vadd.f32 0.0, %v942
      %944 = vdwg.mxu0
      %v945 = vsel %vm617, %v941, -1e+30
      %v946 = vsel %vm617, %v943, -1e+30
      %v947 = vsel %vm739, %v945, -inf
      %948 = vmax.xlane.f32.xlu0 %v947
      %v949 = vpop.xlane.xlu0 %948
      %v950 = vsel %vm739, %v946, -inf
      %951 = vmax.xlane.f32.xlu0 %v950
      %v952 = vpop.xlane.xlu0 %951
      %v953 = vsub.f32 %v945, %v949
      %v954 = vsub.f32 %v946, %v952
      %v955 = vmul.f32 %v953, 1.442695
      %v956 = vpow.pop %v955
      %v957 = vmul.f32 %v954, 1.442695
      %v958 = vpow.pop %v957
      %v959 = vsel %vm739, %v956, 0.0
      %960 = vadd.xlane.f32.xlu0 %v959
      %v961 = vpop.xlane.xlu0 %960
      %v962 = vsel %vm739, %v958, 0.0
      %963 = vadd.xlane.f32.xlu0 %v962
      %v964 = vpop.xlane.xlu0 %963
      %v965 = vrcp.pop %v961
      %v966 = vrcp.pop %v964
      %v967 = vmul.f32 %v956, %v965
      %v968 = vmul.f32 %v958, %v966
      %v969 = vpack.c.bf16 %v968, %v967
      %970 = vrot.lane.b32.xlu0 %v712, 40
      %v971 = vpop.permute.xlu0 %970
      %v974 = vsel %vm739, %v969, 0
      %976 = vmatpush.bf16.msra.mxu0 0
      %977 = vmatpush.bf16.msra.mxu0 0
      %978 = vmatpush.bf16.msra.mxu0 0
      %979 = vmatpush.bf16.msra.mxu0 0
      %980 = vmatpush.bf16.msra.mxu0 0
      %981 = vmatpush.bf16.msra.mxu0 0
      %982 = vmatpush.bf16.msra.mxu0 0
      %983 = vmatpush.bf16.msra.mxu0 %v971
      %984 = vmatmul.bf16.gmra.mxu0 %v974
      %v985 = vpop.f32.mrf.mxu0
      %v986 = vadd.f32 0.0, %v985
      %v987 = vpop.f32.mrf.mxu0
      %v988 = vadd.f32 0.0, %v987
      %989 = vdwg.mxu0
      %992 = vrot.lane.b32.xlu0 %v848, 8
      %v993 = vpop.permute.xlu0 %992
      %994 = vrot.lane.b32.xlu0 %v850, 8
      %v995 = vpop.permute.xlu0 %994
      %1000 = vrot.lane.b32.xlu0 %v917, 16
      %v1001 = vpop.permute.xlu0 %1000
      %1002 = vrot.lane.b32.xlu0 %v919, 16
      %v1003 = vpop.permute.xlu0 %1002
      %1008 = vrot.lane.b32.xlu0 %v986, 24
      %v1009 = vpop.permute.xlu0 %1008
      %1010 = vrot.lane.b32.xlu0 %v988, 24
      %v1011 = vpop.permute.xlu0 %1010
      %v1014 = vsel %vm716, %v779, %v993
      %v1015 = vsel %vm716, %v781, %v995
      %v1016 = vsel %vm739, %v1014, %v1001
      %v1017 = vsel %vm739, %v1015, %v1003
      %vm1018 = vcmask 195584
      %v1019 = vsel %vm1018, %v1016, %v1009
      %v1020 = vsel %vm1018, %v1017, %v1011
      %v1021 = vpack.c.bf16 %v1020, %v1019
      %v1022 = vld [vmem:[%s5] sm:$0xf]
      %v1023 = vld [vmem:[%s5 + $0x4] sm:$0xf]
      %v1024 = vld [vmem:[%s5 + $0x8] sm:$0xf]
      %v1025 = vld [vmem:[%s5 + $0xc] sm:$0xf]
      %v1026 = vperm.slane %v618, 5
      %v1031 = vunpack.c.l.b16 %v1022
      %v1032 = vunpack.c.l.b16 %v1023
      %v1033 = vunpack.c.l.b16 %v1024
      %v1034 = vunpack.c.l.b16 %v1025
      %v1035 = vpack.c.b16 %v1032, %v1031
      %v1036 = vpack.c.b16 %v1034, %v1033
      %v1040 = vsel %vm619, %v1021, 0
      %1042 = vmatpush.bf16.msra.mxu0 0
      %1043 = vmatpush.bf16.msra.mxu0 0
      %1044 = vmatpush.bf16.msra.mxu0 0
      %1045 = vmatpush.bf16.msra.mxu0 0
      %1046 = vmatpush.bf16.msra.mxu0 0
      %1047 = vmatpush.bf16.msra.mxu0 0
      %1048 = vmatpush.bf16.msra.mxu0 %v1036
      %1049 = vmatpush.bf16.msra.mxu0 %v1035
      %1050 = vmatmul.bf16.gmra.mxu0 %v1040
      %v1051 = vpop.f32.mrf.mxu0
      %v1052 = vadd.f32 %v1026, %v1051
      %v1053 = vpop.f32.mrf.mxu0
      %v1054 = vadd.f32 %v1026, %v1053
      %1055 = vdwg.mxu0
      %v1056 = vadd.f32 %v611, %v1052
      %v1057 = vadd.f32 %v613, %v1054
      %v1058 = vsel %vm619, %v1056, 0.0
      %1059 = vadd.xlane.f32.xlu0 %v1058
      %v1060 = vpop.xlane.xlu0 %1059
      %v1061 = vsel %vm619, %v1057, 0.0
      %1062 = vadd.xlane.f32.xlu0 %v1061
      %v1063 = vpop.xlane.xlu0 %1062
      %v1064 = vmul.f32 %v1060, %v632
      %v1065 = vmul.f32 %v1063, %v632
      %v1066 = vsub.f32 %v1056, %v1064
      %v1067 = vsub.f32 %v1057, %v1065
      %v1068 = vmul.f32 %v1066, %v1066
      %v1069 = vmul.f32 %v1067, %v1067
      %v1070 = vsel %vm619, %v1068, 0.0
      %1071 = vadd.xlane.f32.xlu0 %v1070
      %v1072 = vpop.xlane.xlu0 %1071
      %v1073 = vsel %vm619, %v1069, 0.0
      %1074 = vadd.xlane.f32.xlu0 %v1073
      %v1075 = vpop.xlane.xlu0 %1074
      %v1076 = vmul.f32 %v1072, %v632
      %v1077 = vmul.f32 %v1075, %v632
      %v1078 = vadd.f32 %v1076, 1e-06
      %v1079 = vadd.f32 %v1077, 1e-06
      %v1080 = vrsqrt.pop %v1078
      %v1081 = vmul.f32 %v1080, %v1078
      %v1082 = vmul.f32 %v1081, %v1080
      %v1083 = vmul.f32 0.5, %v1082
      %v1084 = vsub.f32 1.5, %v1083
      %v1085 = vmul.f32 %v1080, %v1084
      %vm1086 = vweird.f32 %v1078
      %vm1087 = vweird.f32 %v1080
      %vm1088 = vmor %vm1086, %vm1087
      %v1089 = vsel %vm1088, %v1080, %v1085
      %v1090 = vrsqrt.pop %v1079
      %v1091 = vmul.f32 %v1090, %v1079
      %v1092 = vmul.f32 %v1091, %v1090
      %v1093 = vmul.f32 0.5, %v1092
      %v1094 = vsub.f32 1.5, %v1093
      %v1095 = vmul.f32 %v1090, %v1094
      %vm1096 = vweird.f32 %v1079
      %vm1097 = vweird.f32 %v1090
      %vm1098 = vmor %vm1096, %vm1097
      %v1099 = vsel %vm1098, %v1090, %v1095
      %v1100 = vmul.f32 %v1066, %v1089
      %v1101 = vmul.f32 %v1067, %v1099
      %v1102 = vperm.slane %v618, 2
      %v1103 = vmul.f32 %v1100, %v1102
      %v1104 = vmul.f32 %v1101, %v1102
      %v1105 = vperm.slane %v618, 3
      %v1106 = vadd.f32 %v1103, %v1105
      %v1107 = vadd.f32 %v1104, %v1105
      %v1108 = vpack.c.bf16 %v1107, %v1106
      %v1109 = vld [vmem:[%s6] sm:$0xf]
      %v1110 = vld [vmem:[%s6 + $0x4] sm:$0xf]
      %v1111 = vld [vmem:[%s6 + $0x8] sm:$0xf]
      %v1112 = vld [vmem:[%s6 + $0xc] sm:$0xf]
      %v1113 = vperm.slane %v618, 6
      %v1118 = vunpack.c.l.b16 %v1109
      %v1119 = vunpack.c.l.b16 %v1110
      %v1120 = vunpack.c.l.b16 %v1111
      %v1121 = vunpack.c.l.b16 %v1112
      %v1122 = vpack.c.b16 %v1119, %v1118
      %v1123 = vpack.c.b16 %v1121, %v1120
      %v1127 = vsel %vm619, %v1108, 0
      %1129 = vmatpush.bf16.msra.mxu0 0
      %1130 = vmatpush.bf16.msra.mxu0 0
      %1131 = vmatpush.bf16.msra.mxu0 0
      %1132 = vmatpush.bf16.msra.mxu0 0
      %1133 = vmatpush.bf16.msra.mxu0 0
      %1134 = vmatpush.bf16.msra.mxu0 0
      %1135 = vmatpush.bf16.msra.mxu0 %v1123
      %1136 = vmatpush.bf16.msra.mxu0 %v1122
      %1137 = vmatmul.bf16.gmra.mxu0 %v1127
      %v1138 = vpop.f32.mrf.mxu0
      %v1139 = vadd.f32 %v1113, %v1138
      %v1140 = vpop.f32.mrf.mxu0
      %v1141 = vadd.f32 %v1113, %v1140
      %1142 = vdwg.mxu0
      %v1143 = vmul.f32 %v1139, 0.5
      %v1144 = vmul.f32 %v1141, 0.5
      %v1145 = vmul.f32 %v1139, 0.7978846
      %v1146 = vmul.f32 %v1141, 0.7978846
      %v1147 = vmul.f32 %v1139, 0.044715
      %v1148 = vmul.f32 %v1141, 0.044715
      %v1149 = vmul.f32 %v1147, %v1139
      %v1150 = vmul.f32 %v1148, %v1141
      %v1151 = vadd.f32 %v1149, 1.0
      %v1152 = vadd.f32 %v1150, 1.0
      %v1153 = vmul.f32 %v1145, %v1151
      %v1154 = vmul.f32 %v1146, %v1152
      %v1155 = vtanh.pop %v1153
      %v1156 = vtanh.pop %v1154
      %v1157 = vadd.f32 %v1155, 1.0
      %v1158 = vadd.f32 %v1156, 1.0
      %v1159 = vmul.f32 %v1143, %v1157
      %v1160 = vmul.f32 %v1144, %v1158
      %v1161 = vpack.c.bf16 %v1160, %v1159
      %v1162 = vld [vmem:[%s7] sm:$0xf]
      %v1163 = vld [vmem:[%s7 + $0x4] sm:$0xf]
      %v1164 = vld [vmem:[%s7 + $0x8] sm:$0xf]
      %v1165 = vld [vmem:[%s7 + $0xc] sm:$0xf]
      %v1166 = vld [vmem:[%s7 + $0x10] sm:$0xf]
      %v1167 = vld [vmem:[%s7 + $0x14] sm:$0xf]
      %v1168 = vld [vmem:[%s7 + $0x18] sm:$0xf]
      %v1169 = vld [vmem:[%s7 + $0x1c] sm:$0xf]
      %v1170 = vperm.slane %v618, 7
      %v1179 = vunpack.c.l.b16 %v1162
      %v1180 = vunpack.c.l.b16 %v1163
      %v1181 = vunpack.c.l.b16 %v1164
      %v1182 = vunpack.c.l.b16 %v1165
      %v1183 = vunpack.c.l.b16 %v1166
      %v1184 = vunpack.c.l.b16 %v1167
      %v1185 = vunpack.c.l.b16 %v1168
      %v1186 = vunpack.c.l.b16 %v1169
      %v1187 = vpack.c.b16 %v1180, %v1179
      %v1188 = vpack.c.b16 %v1182, %v1181
      %v1189 = vpack.c.b16 %v1184, %v1183
      %v1190 = vpack.c.b16 %v1186, %v1185
      %vm1195 = vcmask 523264
      %v1197 = vsel %vm1195, %v1161, 0
      %1199 = vmatpush.bf16.msra.mxu0 0
      %1200 = vmatpush.bf16.msra.mxu0 0
      %1201 = vmatpush.bf16.msra.mxu0 0
      %1202 = vmatpush.bf16.msra.mxu0 0
      %1203 = vmatpush.bf16.msra.mxu0 %v1190
      %1204 = vmatpush.bf16.msra.mxu0 %v1189
      %1205 = vmatpush.bf16.msra.mxu0 %v1188
      %1206 = vmatpush.bf16.msra.mxu0 %v1187
      %1207 = vmatmul.bf16.gmra.mxu0 %v1197
      %v1208 = vpop.f32.mrf.mxu0
      %v1209 = vadd.f32 %v1170, %v1208
      %v1210 = vpop.f32.mrf.mxu0
      %v1211 = vadd.f32 %v1170, %v1210
      %1212 = vdwg.mxu0
      %v1213 = vadd.f32 %v1056, %v1209
      %v1214 = vadd.f32 %v1057, %v1211
      %s1215 = scalar_lea.vmem %s3, 8
      %v1216 = vld [vmem:[%s1215] sm:$0xff]
      %v1217 = vsel %vm619, %v1213, 0.0
      %1218 = vadd.xlane.f32.xlu0 %v1217
      %v1219 = vpop.xlane.xlu0 %1218
      %v1220 = vsel %vm619, %v1214, 0.0
      %1221 = vadd.xlane.f32.xlu0 %v1220
      %v1222 = vpop.xlane.xlu0 %1221
      %v1223 = vmul.f32 %v1219, %v632
      %v1224 = vmul.f32 %v1222, %v632
      %v1225 = vsub.f32 %v1213, %v1223
      %v1226 = vsub.f32 %v1214, %v1224
      %v1227 = vmul.f32 %v1225, %v1225
      %v1228 = vmul.f32 %v1226, %v1226
      %v1229 = vsel %vm619, %v1227, 0.0
      %1230 = vadd.xlane.f32.xlu0 %v1229
      %v1231 = vpop.xlane.xlu0 %1230
      %v1232 = vsel %vm619, %v1228, 0.0
      %1233 = vadd.xlane.f32.xlu0 %v1232
      %v1234 = vpop.xlane.xlu0 %1233
      %v1235 = vmul.f32 %v1231, %v632
      %v1236 = vmul.f32 %v1234, %v632
      %v1237 = vadd.f32 %v1235, 1e-06
      %v1238 = vadd.f32 %v1236, 1e-06
      %v1239 = vrsqrt.pop %v1237
      %v1240 = vmul.f32 %v1239, %v1237
      %v1241 = vmul.f32 %v1240, %v1239
      %v1242 = vmul.f32 0.5, %v1241
      %v1243 = vsub.f32 1.5, %v1242
      %v1244 = vmul.f32 %v1239, %v1243
      %vm1245 = vweird.f32 %v1237
      %vm1246 = vweird.f32 %v1239
      %vm1247 = vmor %vm1245, %vm1246
      %v1248 = vsel %vm1247, %v1239, %v1244
      %v1249 = vrsqrt.pop %v1238
      %v1250 = vmul.f32 %v1249, %v1238
      %v1251 = vmul.f32 %v1250, %v1249
      %v1252 = vmul.f32 0.5, %v1251
      %v1253 = vsub.f32 1.5, %v1252
      %v1254 = vmul.f32 %v1249, %v1253
      %vm1255 = vweird.f32 %v1238
      %vm1256 = vweird.f32 %v1249
      %vm1257 = vmor %vm1255, %vm1256
      %v1258 = vsel %vm1257, %v1249, %v1254
      %v1259 = vmul.f32 %v1225, %v1248
      %v1260 = vmul.f32 %v1226, %v1258
      %v1261 = vperm.slane %v1216, 0
      %v1262 = vmul.f32 %v1259, %v1261
      %v1263 = vmul.f32 %v1260, %v1261
      %v1264 = vperm.slane %v1216, 1
      %v1265 = vadd.f32 %v1262, %v1264
      %v1266 = vadd.f32 %v1263, %v1264
      %v1267 = vpack.c.bf16 %v1266, %v1265
      %s1268 = scalar_lea.vmem %s4, 16
      %v1269 = vld [vmem:[%s1268] sm:$0xf]
      %v1270 = vld [vmem:[%s1268 + $0x4] sm:$0xf]
      %v1271 = vld [vmem:[%s1268 + $0x8] sm:$0xf]
      %v1272 = vld [vmem:[%s1268 + $0xc] sm:$0xf]
      %v1273 = vperm.slane %v1216, 4
      %v1278 = vunpack.c.l.b16 %v1269
      %v1279 = vunpack.c.l.b16 %v1270
      %v1280 = vunpack.c.l.b16 %v1271
      %v1281 = vunpack.c.l.b16 %v1272
      %v1282 = vpack.c.b16 %v1279, %v1278
      %v1283 = vpack.c.b16 %v1281, %v1280
      %v1287 = vsel %vm619, %v1267, 0
      %1289 = vmatpush.bf16.msra.mxu0 0
      %1290 = vmatpush.bf16.msra.mxu0 0
      %1291 = vmatpush.bf16.msra.mxu0 0
      %1292 = vmatpush.bf16.msra.mxu0 0
      %1293 = vmatpush.bf16.msra.mxu0 0
      %1294 = vmatpush.bf16.msra.mxu0 0
      %1295 = vmatpush.bf16.msra.mxu0 %v1283
      %1296 = vmatpush.bf16.msra.mxu0 %v1282
      %1297 = vmatmul.bf16.gmra.mxu0 %v1287
      %v1298 = vpop.f32.mrf.mxu0
      %v1299 = vadd.f32 %v1273, %v1298
      %v1300 = vpop.f32.mrf.mxu0
      %v1301 = vadd.f32 %v1273, %v1300
      %1302 = vdwg.mxu0
      %v1303 = vpack.c.bf16 %v1301, %v1299
      %1305 = vrot.lane.b32.xlu0 %v1303, 96
      %v1306 = vpop.permute.xlu0 %1305
      %v1308 = vsel %vm716, %v1303, 0
      %v1311 = vsel %vm716, %v1306, 0
      %1313 = vmatpush.bf16.xpose.msra.mxu0 0
      %1314 = vmatpush.bf16.xpose.msra.mxu0 0
      %1315 = vmatpush.bf16.xpose.msra.mxu0 0
      %1316 = vmatpush.bf16.xpose.msra.mxu0 0
      %1317 = vmatpush.bf16.xpose.msra.mxu0 0
      %1318 = vmatpush.bf16.xpose.msra.mxu0 0
      %1319 = vmatpush.bf16.xpose.msra.mxu0 0
      %1320 = vmatpush.bf16.xpose.msra.mxu0 %v1311
      %1321 = vmatmul.bf16.gmra.mxu0 %v1308
      %v1322 = vpop.f32.mrf.mxu0
      %v1323 = vadd.f32 0.0, %v1322
      %v1324 = vpop.f32.mrf.mxu0
      %v1325 = vadd.f32 0.0, %v1324
      %1326 = vdwg.mxu0
      %v1327 = vsel %vm617, %v1323, -1e+30
      %v1328 = vsel %vm617, %v1325, -1e+30
      %v1329 = vsel %vm739, %v1327, -inf
      %1330 = vmax.xlane.f32.xlu0 %v1329
      %v1331 = vpop.xlane.xlu0 %1330
      %v1332 = vsel %vm739, %v1328, -inf
      %1333 = vmax.xlane.f32.xlu0 %v1332
      %v1334 = vpop.xlane.xlu0 %1333
      %v1335 = vsub.f32 %v1327, %v1331
      %v1336 = vsub.f32 %v1328, %v1334
      %v1337 = vmul.f32 %v1335, 1.442695
      %v1338 = vpow.pop %v1337
      %v1339 = vmul.f32 %v1336, 1.442695
      %v1340 = vpow.pop %v1339
      %v1341 = vsel %vm739, %v1338, 0.0
      %1342 = vadd.xlane.f32.xlu0 %v1341
      %v1343 = vpop.xlane.xlu0 %1342
      %v1344 = vsel %vm739, %v1340, 0.0
      %1345 = vadd.xlane.f32.xlu0 %v1344
      %v1346 = vpop.xlane.xlu0 %1345
      %v1347 = vrcp.pop %v1343
      %v1348 = vrcp.pop %v1346
      %v1349 = vmul.f32 %v1338, %v1347
      %v1350 = vmul.f32 %v1340, %v1348
      %v1351 = vpack.c.bf16 %v1350, %v1349
      %1352 = vrot.lane.b32.xlu0 %v1303, 64
      %v1353 = vpop.permute.xlu0 %1352
      %v1356 = vsel %vm739, %v1351, 0
      %1358 = vmatpush.bf16.msra.mxu0 0
      %1359 = vmatpush.bf16.msra.mxu0 0
      %1360 = vmatpush.bf16.msra.mxu0 0
      %1361 = vmatpush.bf16.msra.mxu0 0
      %1362 = vmatpush.bf16.msra.mxu0 0
      %1363 = vmatpush.bf16.msra.mxu0 0
      %1364 = vmatpush.bf16.msra.mxu0 0
      %1365 = vmatpush.bf16.msra.mxu0 %v1353
      %1366 = vmatmul.bf16.gmra.mxu0 %v1356
      %v1367 = vpop.f32.mrf.mxu0
      %v1368 = vadd.f32 0.0, %v1367
      %v1369 = vpop.f32.mrf.mxu0
      %v1370 = vadd.f32 0.0, %v1369
      %1371 = vdwg.mxu0
      %1372 = vrot.lane.b32.xlu0 %v1303, 120
      %v1373 = vpop.permute.xlu0 %1372
      %1374 = vrot.lane.b32.xlu0 %v1303, 88
      %v1375 = vpop.permute.xlu0 %1374
      %v1377 = vsel %vm716, %v1373, 0
      %v1380 = vsel %vm716, %v1375, 0
      %1382 = vmatpush.bf16.xpose.msra.mxu0 0
      %1383 = vmatpush.bf16.xpose.msra.mxu0 0
      %1384 = vmatpush.bf16.xpose.msra.mxu0 0
      %1385 = vmatpush.bf16.xpose.msra.mxu0 0
      %1386 = vmatpush.bf16.xpose.msra.mxu0 0
      %1387 = vmatpush.bf16.xpose.msra.mxu0 0
      %1388 = vmatpush.bf16.xpose.msra.mxu0 0
      %1389 = vmatpush.bf16.xpose.msra.mxu0 %v1380
      %1390 = vmatmul.bf16.gmra.mxu0 %v1377
      %v1391 = vpop.f32.mrf.mxu0
      %v1392 = vadd.f32 0.0, %v1391
      %v1393 = vpop.f32.mrf.mxu0
      %v1394 = vadd.f32 0.0, %v1393
      %1395 = vdwg.mxu0
      %v1396 = vsel %vm617, %v1392, -1e+30
      %v1397 = vsel %vm617, %v1394, -1e+30
      %v1398 = vsel %vm739, %v1396, -inf
      %1399 = vmax.xlane.f32.xlu0 %v1398
      %v1400 = vpop.xlane.xlu0 %1399
      %v1401 = vsel %vm739, %v1397, -inf
      %1402 = vmax.xlane.f32.xlu0 %v1401
      %v1403 = vpop.xlane.xlu0 %1402
      %v1404 = vsub.f32 %v1396, %v1400
      %v1405 = vsub.f32 %v1397, %v1403
      %v1406 = vmul.f32 %v1404, 1.442695
      %v1407 = vpow.pop %v1406
      %v1408 = vmul.f32 %v1405, 1.442695
      %v1409 = vpow.pop %v1408
      %v1410 = vsel %vm739, %v1407, 0.0
      %1411 = vadd.xlane.f32.xlu0 %v1410
      %v1412 = vpop.xlane.xlu0 %1411
      %v1413 = vsel %vm739, %v1409, 0.0
      %1414 = vadd.xlane.f32.xlu0 %v1413
      %v1415 = vpop.xlane.xlu0 %1414
      %v1416 = vrcp.pop %v1412
      %v1417 = vrcp.pop %v1415
      %v1418 = vmul.f32 %v1407, %v1416
      %v1419 = vmul.f32 %v1409, %v1417
      %v1420 = vpack.c.bf16 %v1419, %v1418
      %1421 = vrot.lane.b32.xlu0 %v1303, 56
      %v1422 = vpop.permute.xlu0 %1421
      %v1425 = vsel %vm739, %v1420, 0
      %1427 = vmatpush.bf16.msra.mxu0 0
      %1428 = vmatpush.bf16.msra.mxu0 0
      %1429 = vmatpush.bf16.msra.mxu0 0
      %1430 = vmatpush.bf16.msra.mxu0 0
      %1431 = vmatpush.bf16.msra.mxu0 0
      %1432 = vmatpush.bf16.msra.mxu0 0
      %1433 = vmatpush.bf16.msra.mxu0 0
      %1434 = vmatpush.bf16.msra.mxu0 %v1422
      %1435 = vmatmul.bf16.gmra.mxu0 %v1425
      %v1436 = vpop.f32.mrf.mxu0
      %v1437 = vadd.f32 0.0, %v1436
      %v1438 = vpop.f32.mrf.mxu0
      %v1439 = vadd.f32 0.0, %v1438
      %1440 = vdwg.mxu0
      %1441 = vrot.lane.b32.xlu0 %v1303, 112
      %v1442 = vpop.permute.xlu0 %1441
      %1443 = vrot.lane.b32.xlu0 %v1303, 80
      %v1444 = vpop.permute.xlu0 %1443
      %v1446 = vsel %vm716, %v1442, 0
      %v1449 = vsel %vm716, %v1444, 0
      %1451 = vmatpush.bf16.xpose.msra.mxu0 0
      %1452 = vmatpush.bf16.xpose.msra.mxu0 0
      %1453 = vmatpush.bf16.xpose.msra.mxu0 0
      %1454 = vmatpush.bf16.xpose.msra.mxu0 0
      %1455 = vmatpush.bf16.xpose.msra.mxu0 0
      %1456 = vmatpush.bf16.xpose.msra.mxu0 0
      %1457 = vmatpush.bf16.xpose.msra.mxu0 0
      %1458 = vmatpush.bf16.xpose.msra.mxu0 %v1449
      %1459 = vmatmul.bf16.gmra.mxu0 %v1446
      %v1460 = vpop.f32.mrf.mxu0
      %v1461 = vadd.f32 0.0, %v1460
      %v1462 = vpop.f32.mrf.mxu0
      %v1463 = vadd.f32 0.0, %v1462
      %1464 = vdwg.mxu0
      %v1465 = vsel %vm617, %v1461, -1e+30
      %v1466 = vsel %vm617, %v1463, -1e+30
      %v1467 = vsel %vm739, %v1465, -inf
      %1468 = vmax.xlane.f32.xlu0 %v1467
      %v1469 = vpop.xlane.xlu0 %1468
      %v1470 = vsel %vm739, %v1466, -inf
      %1471 = vmax.xlane.f32.xlu0 %v1470
      %v1472 = vpop.xlane.xlu0 %1471
      %v1473 = vsub.f32 %v1465, %v1469
      %v1474 = vsub.f32 %v1466, %v1472
      %v1475 = vmul.f32 %v1473, 1.442695
      %v1476 = vpow.pop %v1475
      %v1477 = vmul.f32 %v1474, 1.442695
      %v1478 = vpow.pop %v1477
      %v1479 = vsel %vm739, %v1476, 0.0
      %1480 = vadd.xlane.f32.xlu0 %v1479
      %v1481 = vpop.xlane.xlu0 %1480
      %v1482 = vsel %vm739, %v1478, 0.0
      %1483 = vadd.xlane.f32.xlu0 %v1482
      %v1484 = vpop.xlane.xlu0 %1483
      %v1485 = vrcp.pop %v1481
      %v1486 = vrcp.pop %v1484
      %v1487 = vmul.f32 %v1476, %v1485
      %v1488 = vmul.f32 %v1478, %v1486
      %v1489 = vpack.c.bf16 %v1488, %v1487
      %1490 = vrot.lane.b32.xlu0 %v1303, 48
      %v1491 = vpop.permute.xlu0 %1490
      %v1494 = vsel %vm739, %v1489, 0
      %1496 = vmatpush.bf16.msra.mxu0 0
      %1497 = vmatpush.bf16.msra.mxu0 0
      %1498 = vmatpush.bf16.msra.mxu0 0
      %1499 = vmatpush.bf16.msra.mxu0 0
      %1500 = vmatpush.bf16.msra.mxu0 0
      %1501 = vmatpush.bf16.msra.mxu0 0
      %1502 = vmatpush.bf16.msra.mxu0 0
      %1503 = vmatpush.bf16.msra.mxu0 %v1491
      %1504 = vmatmul.bf16.gmra.mxu0 %v1494
      %v1505 = vpop.f32.mrf.mxu0
      %v1506 = vadd.f32 0.0, %v1505
      %v1507 = vpop.f32.mrf.mxu0
      %v1508 = vadd.f32 0.0, %v1507
      %1509 = vdwg.mxu0
      %1510 = vrot.lane.b32.xlu0 %v1303, 104
      %v1511 = vpop.permute.xlu0 %1510
      %1512 = vrot.lane.b32.xlu0 %v1303, 72
      %v1513 = vpop.permute.xlu0 %1512
      %v1515 = vsel %vm716, %v1511, 0
      %v1518 = vsel %vm716, %v1513, 0
      %1520 = vmatpush.bf16.xpose.msra.mxu0 0
      %1521 = vmatpush.bf16.xpose.msra.mxu0 0
      %1522 = vmatpush.bf16.xpose.msra.mxu0 0
      %1523 = vmatpush.bf16.xpose.msra.mxu0 0
      %1524 = vmatpush.bf16.xpose.msra.mxu0 0
      %1525 = vmatpush.bf16.xpose.msra.mxu0 0
      %1526 = vmatpush.bf16.xpose.msra.mxu0 0
      %1527 = vmatpush.bf16.xpose.msra.mxu0 %v1518
      %1528 = vmatmul.bf16.gmra.mxu0 %v1515
      %v1529 = vpop.f32.mrf.mxu0
      %v1530 = vadd.f32 0.0, %v1529
      %v1531 = vpop.f32.mrf.mxu0
      %v1532 = vadd.f32 0.0, %v1531
      %1533 = vdwg.mxu0
      %v1534 = vsel %vm617, %v1530, -1e+30
      %v1535 = vsel %vm617, %v1532, -1e+30
      %v1536 = vsel %vm739, %v1534, -inf
      %1537 = vmax.xlane.f32.xlu0 %v1536
      %v1538 = vpop.xlane.xlu0 %1537
      %v1539 = vsel %vm739, %v1535, -inf
      %1540 = vmax.xlane.f32.xlu0 %v1539
      %v1541 = vpop.xlane.xlu0 %1540
      %v1542 = vsub.f32 %v1534, %v1538
      %v1543 = vsub.f32 %v1535, %v1541
      %v1544 = vmul.f32 %v1542, 1.442695
      %v1545 = vpow.pop %v1544
      %v1546 = vmul.f32 %v1543, 1.442695
      %v1547 = vpow.pop %v1546
      %v1548 = vsel %vm739, %v1545, 0.0
      %1549 = vadd.xlane.f32.xlu0 %v1548
      %v1550 = vpop.xlane.xlu0 %1549
      %v1551 = vsel %vm739, %v1547, 0.0
      %1552 = vadd.xlane.f32.xlu0 %v1551
      %v1553 = vpop.xlane.xlu0 %1552
      %v1554 = vrcp.pop %v1550
      %v1555 = vrcp.pop %v1553
      %v1556 = vmul.f32 %v1545, %v1554
      %v1557 = vmul.f32 %v1547, %v1555
      %v1558 = vpack.c.bf16 %v1557, %v1556
      %1559 = vrot.lane.b32.xlu0 %v1303, 40
      %v1560 = vpop.permute.xlu0 %1559
      %v1563 = vsel %vm739, %v1558, 0
      %1565 = vmatpush.bf16.msra.mxu0 0
      %1566 = vmatpush.bf16.msra.mxu0 0
      %1567 = vmatpush.bf16.msra.mxu0 0
      %1568 = vmatpush.bf16.msra.mxu0 0
      %1569 = vmatpush.bf16.msra.mxu0 0
      %1570 = vmatpush.bf16.msra.mxu0 0
      %1571 = vmatpush.bf16.msra.mxu0 0
      %1572 = vmatpush.bf16.msra.mxu0 %v1560
      %1573 = vmatmul.bf16.gmra.mxu0 %v1563
      %v1574 = vpop.f32.mrf.mxu0
      %v1575 = vadd.f32 0.0, %v1574
      %v1576 = vpop.f32.mrf.mxu0
      %v1577 = vadd.f32 0.0, %v1576
      %1578 = vdwg.mxu0
      %1581 = vrot.lane.b32.xlu0 %v1437, 8
      %v1582 = vpop.permute.xlu0 %1581
      %1583 = vrot.lane.b32.xlu0 %v1439, 8
      %v1584 = vpop.permute.xlu0 %1583
      %1589 = vrot.lane.b32.xlu0 %v1506, 16
      %v1590 = vpop.permute.xlu0 %1589
      %1591 = vrot.lane.b32.xlu0 %v1508, 16
      %v1592 = vpop.permute.xlu0 %1591
      %1597 = vrot.lane.b32.xlu0 %v1575, 24
      %v1598 = vpop.permute.xlu0 %1597
      %1599 = vrot.lane.b32.xlu0 %v1577, 24
      %v1600 = vpop.permute.xlu0 %1599
      %v1603 = vsel %vm716, %v1368, %v1582
      %v1604 = vsel %vm716, %v1370, %v1584
      %v1605 = vsel %vm739, %v1603, %v1590
      %v1606 = vsel %vm739, %v1604, %v1592
      %v1607 = vsel %vm1018, %v1605, %v1598
      %v1608 = vsel %vm1018, %v1606, %v1600
      %v1609 = vpack.c.bf16 %v1608, %v1607
      %s1610 = scalar_lea.vmem %s5, 16
      %v1611 = vld [vmem:[%s1610] sm:$0xf]
      %v1612 = vld [vmem:[%s1610 + $0x4] sm:$0xf]
      %v1613 = vld [vmem:[%s1610 + $0x8] sm:$0xf]
      %v1614 = vld [vmem:[%s1610 + $0xc] sm:$0xf]
      %v1615 = vperm.slane %v1216, 5
      %v1620 = vunpack.c.l.b16 %v1611
      %v1621 = vunpack.c.l.b16 %v1612
      %v1622 = vunpack.c.l.b16 %v1613
      %v1623 = vunpack.c.l.b16 %v1614
      %v1624 = vpack.c.b16 %v1621, %v1620
      %v1625 = vpack.c.b16 %v1623, %v1622
      %v1629 = vsel %vm619, %v1609, 0
      %1631 = vmatpush.bf16.msra.mxu0 0
      %1632 = vmatpush.bf16.msra.mxu0 0
      %1633 = vmatpush.bf16.msra.mxu0 0
      %1634 = vmatpush.bf16.msra.mxu0 0
      %1635 = vmatpush.bf16.msra.mxu0 0
      %1636 = vmatpush.bf16.msra.mxu0 0
      %1637 = vmatpush.bf16.msra.mxu0 %v1625
      %1638 = vmatpush.bf16.msra.mxu0 %v1624
      %1639 = vmatmul.bf16.gmra.mxu0 %v1629
      %v1640 = vpop.f32.mrf.mxu0
      %v1641 = vadd.f32 %v1615, %v1640
      %v1642 = vpop.f32.mrf.mxu0
      %v1643 = vadd.f32 %v1615, %v1642
      %1644 = vdwg.mxu0
      %v1645 = vadd.f32 %v1213, %v1641
      %v1646 = vadd.f32 %v1214, %v1643
      %v1647 = vsel %vm619, %v1645, 0.0
      %1648 = vadd.xlane.f32.xlu0 %v1647
      %v1649 = vpop.xlane.xlu0 %1648
      %v1650 = vsel %vm619, %v1646, 0.0
      %1651 = vadd.xlane.f32.xlu0 %v1650
      %v1652 = vpop.xlane.xlu0 %1651
      %v1653 = vmul.f32 %v1649, %v632
      %v1654 = vmul.f32 %v1652, %v632
      %v1655 = vsub.f32 %v1645, %v1653
      %v1656 = vsub.f32 %v1646, %v1654
      %v1657 = vmul.f32 %v1655, %v1655
      %v1658 = vmul.f32 %v1656, %v1656
      %v1659 = vsel %vm619, %v1657, 0.0
      %1660 = vadd.xlane.f32.xlu0 %v1659
      %v1661 = vpop.xlane.xlu0 %1660
      %v1662 = vsel %vm619, %v1658, 0.0
      %1663 = vadd.xlane.f32.xlu0 %v1662
      %v1664 = vpop.xlane.xlu0 %1663
      %v1665 = vmul.f32 %v1661, %v632
      %v1666 = vmul.f32 %v1664, %v632
      %v1667 = vadd.f32 %v1665, 1e-06
      %v1668 = vadd.f32 %v1666, 1e-06
      %v1669 = vrsqrt.pop %v1667
      %v1670 = vmul.f32 %v1669, %v1667
      %v1671 = vmul.f32 %v1670, %v1669
      %v1672 = vmul.f32 0.5, %v1671
      %v1673 = vsub.f32 1.5, %v1672
      %v1674 = vmul.f32 %v1669, %v1673
      %vm1675 = vweird.f32 %v1667
      %vm1676 = vweird.f32 %v1669
      %vm1677 = vmor %vm1675, %vm1676
      %v1678 = vsel %vm1677, %v1669, %v1674
      %v1679 = vrsqrt.pop %v1668
      %v1680 = vmul.f32 %v1679, %v1668
      %v1681 = vmul.f32 %v1680, %v1679
      %v1682 = vmul.f32 0.5, %v1681
      %v1683 = vsub.f32 1.5, %v1682
      %v1684 = vmul.f32 %v1679, %v1683
      %vm1685 = vweird.f32 %v1668
      %vm1686 = vweird.f32 %v1679
      %vm1687 = vmor %vm1685, %vm1686
      %v1688 = vsel %vm1687, %v1679, %v1684
      %v1689 = vmul.f32 %v1655, %v1678
      %v1690 = vmul.f32 %v1656, %v1688
      %v1691 = vperm.slane %v1216, 2
      %v1692 = vmul.f32 %v1689, %v1691
      %v1693 = vmul.f32 %v1690, %v1691
      %v1694 = vperm.slane %v1216, 3
      %v1695 = vadd.f32 %v1692, %v1694
      %v1696 = vadd.f32 %v1693, %v1694
      %v1697 = vpack.c.bf16 %v1696, %v1695
      %s1698 = scalar_lea.vmem %s6, 16
      %v1699 = vld [vmem:[%s1698] sm:$0xf]
      %v1700 = vld [vmem:[%s1698 + $0x4] sm:$0xf]
      %v1701 = vld [vmem:[%s1698 + $0x8] sm:$0xf]
      %v1702 = vld [vmem:[%s1698 + $0xc] sm:$0xf]
      %v1703 = vperm.slane %v1216, 6
      %v1708 = vunpack.c.l.b16 %v1699
      %v1709 = vunpack.c.l.b16 %v1700
      %v1710 = vunpack.c.l.b16 %v1701
      %v1711 = vunpack.c.l.b16 %v1702
      %v1712 = vpack.c.b16 %v1709, %v1708
      %v1713 = vpack.c.b16 %v1711, %v1710
      %v1717 = vsel %vm619, %v1697, 0
      %1719 = vmatpush.bf16.msra.mxu0 0
      %1720 = vmatpush.bf16.msra.mxu0 0
      %1721 = vmatpush.bf16.msra.mxu0 0
      %1722 = vmatpush.bf16.msra.mxu0 0
      %1723 = vmatpush.bf16.msra.mxu0 0
      %1724 = vmatpush.bf16.msra.mxu0 0
      %1725 = vmatpush.bf16.msra.mxu0 %v1713
      %1726 = vmatpush.bf16.msra.mxu0 %v1712
      %1727 = vmatmul.bf16.gmra.mxu0 %v1717
      %v1728 = vpop.f32.mrf.mxu0
      %v1729 = vadd.f32 %v1703, %v1728
      %v1730 = vpop.f32.mrf.mxu0
      %v1731 = vadd.f32 %v1703, %v1730
      %1732 = vdwg.mxu0
      %v1733 = vmul.f32 %v1729, 0.5
      %v1734 = vmul.f32 %v1731, 0.5
      %v1735 = vmul.f32 %v1729, 0.7978846
      %v1736 = vmul.f32 %v1731, 0.7978846
      %v1737 = vmul.f32 %v1729, 0.044715
      %v1738 = vmul.f32 %v1731, 0.044715
      %v1739 = vmul.f32 %v1737, %v1729
      %v1740 = vmul.f32 %v1738, %v1731
      %v1741 = vadd.f32 %v1739, 1.0
      %v1742 = vadd.f32 %v1740, 1.0
      %v1743 = vmul.f32 %v1735, %v1741
      %v1744 = vmul.f32 %v1736, %v1742
      %v1745 = vtanh.pop %v1743
      %v1746 = vtanh.pop %v1744
      %v1747 = vadd.f32 %v1745, 1.0
      %v1748 = vadd.f32 %v1746, 1.0
      %v1749 = vmul.f32 %v1733, %v1747
      %v1750 = vmul.f32 %v1734, %v1748
      %v1751 = vpack.c.bf16 %v1750, %v1749
      %s1752 = scalar_lea.vmem %s7, 32
      %v1753 = vld [vmem:[%s1752] sm:$0xf]
      %v1754 = vld [vmem:[%s1752 + $0x4] sm:$0xf]
      %v1755 = vld [vmem:[%s1752 + $0x8] sm:$0xf]
      %v1756 = vld [vmem:[%s1752 + $0xc] sm:$0xf]
      %v1757 = vld [vmem:[%s1752 + $0x10] sm:$0xf]
      %v1758 = vld [vmem:[%s1752 + $0x14] sm:$0xf]
      %v1759 = vld [vmem:[%s1752 + $0x18] sm:$0xf]
      %v1760 = vld [vmem:[%s1752 + $0x1c] sm:$0xf]
      %v1761 = vperm.slane %v1216, 7
      %v1770 = vunpack.c.l.b16 %v1753
      %v1771 = vunpack.c.l.b16 %v1754
      %v1772 = vunpack.c.l.b16 %v1755
      %v1773 = vunpack.c.l.b16 %v1756
      %v1774 = vunpack.c.l.b16 %v1757
      %v1775 = vunpack.c.l.b16 %v1758
      %v1776 = vunpack.c.l.b16 %v1759
      %v1777 = vunpack.c.l.b16 %v1760
      %v1778 = vpack.c.b16 %v1771, %v1770
      %v1779 = vpack.c.b16 %v1773, %v1772
      %v1780 = vpack.c.b16 %v1775, %v1774
      %v1781 = vpack.c.b16 %v1777, %v1776
      %v1787 = vsel %vm1195, %v1751, 0
      %1789 = vmatpush.bf16.msra.mxu0 0
      %1790 = vmatpush.bf16.msra.mxu0 0
      %1791 = vmatpush.bf16.msra.mxu0 0
      %1792 = vmatpush.bf16.msra.mxu0 0
      %1793 = vmatpush.bf16.msra.mxu0 %v1781
      %1794 = vmatpush.bf16.msra.mxu0 %v1780
      %1795 = vmatpush.bf16.msra.mxu0 %v1779
      %1796 = vmatpush.bf16.msra.mxu0 %v1778
      %1797 = vmatmul.bf16.gmra.mxu0 %v1787
      %v1798 = vpop.f32.mrf.mxu0
      %v1799 = vadd.f32 %v1761, %v1798
      %v1800 = vpop.f32.mrf.mxu0
      %v1801 = vadd.f32 %v1761, %v1800
      %1802 = vdwg.mxu0
      %v1803 = vadd.f32 %v1645, %v1799
      %v1804 = vadd.f32 %v1646, %v1801
      %s1805 = scalar_lea.vmem %s3, 16
      %v1806 = vld [vmem:[%s1805] sm:$0xff]
      %v1807 = vsel %vm619, %v1803, 0.0
      %1808 = vadd.xlane.f32.xlu0 %v1807
      %v1809 = vpop.xlane.xlu0 %1808
      %v1810 = vsel %vm619, %v1804, 0.0
      %1811 = vadd.xlane.f32.xlu0 %v1810
      %v1812 = vpop.xlane.xlu0 %1811
      %v1813 = vmul.f32 %v1809, %v632
      %v1814 = vmul.f32 %v1812, %v632
      %v1815 = vsub.f32 %v1803, %v1813
      %v1816 = vsub.f32 %v1804, %v1814
      %v1817 = vmul.f32 %v1815, %v1815
      %v1818 = vmul.f32 %v1816, %v1816
      %v1819 = vsel %vm619, %v1817, 0.0
      %1820 = vadd.xlane.f32.xlu0 %v1819
      %v1821 = vpop.xlane.xlu0 %1820
      %v1822 = vsel %vm619, %v1818, 0.0
      %1823 = vadd.xlane.f32.xlu0 %v1822
      %v1824 = vpop.xlane.xlu0 %1823
      %v1825 = vmul.f32 %v1821, %v632
      %v1826 = vmul.f32 %v1824, %v632
      %v1827 = vadd.f32 %v1825, 1e-06
      %v1828 = vadd.f32 %v1826, 1e-06
      %v1829 = vrsqrt.pop %v1827
      %v1830 = vmul.f32 %v1829, %v1827
      %v1831 = vmul.f32 %v1830, %v1829
      %v1832 = vmul.f32 0.5, %v1831
      %v1833 = vsub.f32 1.5, %v1832
      %v1834 = vmul.f32 %v1829, %v1833
      %vm1835 = vweird.f32 %v1827
      %vm1836 = vweird.f32 %v1829
      %vm1837 = vmor %vm1835, %vm1836
      %v1838 = vsel %vm1837, %v1829, %v1834
      %v1839 = vrsqrt.pop %v1828
      %v1840 = vmul.f32 %v1839, %v1828
      %v1841 = vmul.f32 %v1840, %v1839
      %v1842 = vmul.f32 0.5, %v1841
      %v1843 = vsub.f32 1.5, %v1842
      %v1844 = vmul.f32 %v1839, %v1843
      %vm1845 = vweird.f32 %v1828
      %vm1846 = vweird.f32 %v1839
      %vm1847 = vmor %vm1845, %vm1846
      %v1848 = vsel %vm1847, %v1839, %v1844
      %v1849 = vmul.f32 %v1815, %v1838
      %v1850 = vmul.f32 %v1816, %v1848
      %v1851 = vperm.slane %v1806, 0
      %v1852 = vmul.f32 %v1849, %v1851
      %v1853 = vmul.f32 %v1850, %v1851
      %v1854 = vperm.slane %v1806, 1
      %v1855 = vadd.f32 %v1852, %v1854
      %v1856 = vadd.f32 %v1853, %v1854
      %v1857 = vpack.c.bf16 %v1856, %v1855
      %s1858 = scalar_lea.vmem %s4, 32
      %v1859 = vld [vmem:[%s1858] sm:$0xf]
      %v1860 = vld [vmem:[%s1858 + $0x4] sm:$0xf]
      %v1861 = vld [vmem:[%s1858 + $0x8] sm:$0xf]
      %v1862 = vld [vmem:[%s1858 + $0xc] sm:$0xf]
      %v1863 = vperm.slane %v1806, 4
      %v1868 = vunpack.c.l.b16 %v1859
      %v1869 = vunpack.c.l.b16 %v1860
      %v1870 = vunpack.c.l.b16 %v1861
      %v1871 = vunpack.c.l.b16 %v1862
      %v1872 = vpack.c.b16 %v1869, %v1868
      %v1873 = vpack.c.b16 %v1871, %v1870
      %v1877 = vsel %vm619, %v1857, 0
      %1879 = vmatpush.bf16.msra.mxu0 0
      %1880 = vmatpush.bf16.msra.mxu0 0
      %1881 = vmatpush.bf16.msra.mxu0 0
      %1882 = vmatpush.bf16.msra.mxu0 0
      %1883 = vmatpush.bf16.msra.mxu0 0
      %1884 = vmatpush.bf16.msra.mxu0 0
      %1885 = vmatpush.bf16.msra.mxu0 %v1873
      %1886 = vmatpush.bf16.msra.mxu0 %v1872
      %1887 = vmatmul.bf16.gmra.mxu0 %v1877
      %v1888 = vpop.f32.mrf.mxu0
      %v1889 = vadd.f32 %v1863, %v1888
      %v1890 = vpop.f32.mrf.mxu0
      %v1891 = vadd.f32 %v1863, %v1890
      %1892 = vdwg.mxu0
      %v1893 = vpack.c.bf16 %v1891, %v1889
      %1895 = vrot.lane.b32.xlu0 %v1893, 96
      %v1896 = vpop.permute.xlu0 %1895
      %v1898 = vsel %vm716, %v1893, 0
      %v1901 = vsel %vm716, %v1896, 0
      %1903 = vmatpush.bf16.xpose.msra.mxu0 0
      %1904 = vmatpush.bf16.xpose.msra.mxu0 0
      %1905 = vmatpush.bf16.xpose.msra.mxu0 0
      %1906 = vmatpush.bf16.xpose.msra.mxu0 0
      %1907 = vmatpush.bf16.xpose.msra.mxu0 0
      %1908 = vmatpush.bf16.xpose.msra.mxu0 0
      %1909 = vmatpush.bf16.xpose.msra.mxu0 0
      %1910 = vmatpush.bf16.xpose.msra.mxu0 %v1901
      %1911 = vmatmul.bf16.gmra.mxu0 %v1898
      %v1912 = vpop.f32.mrf.mxu0
      %v1913 = vadd.f32 0.0, %v1912
      %v1914 = vpop.f32.mrf.mxu0
      %v1915 = vadd.f32 0.0, %v1914
      %1916 = vdwg.mxu0
      %v1917 = vsel %vm617, %v1913, -1e+30
      %v1918 = vsel %vm617, %v1915, -1e+30
      %v1919 = vsel %vm739, %v1917, -inf
      %1920 = vmax.xlane.f32.xlu0 %v1919
      %v1921 = vpop.xlane.xlu0 %1920
      %v1922 = vsel %vm739, %v1918, -inf
      %1923 = vmax.xlane.f32.xlu0 %v1922
      %v1924 = vpop.xlane.xlu0 %1923
      %v1925 = vsub.f32 %v1917, %v1921
      %v1926 = vsub.f32 %v1918, %v1924
      %v1927 = vmul.f32 %v1925, 1.442695
      %v1928 = vpow.pop %v1927
      %v1929 = vmul.f32 %v1926, 1.442695
      %v1930 = vpow.pop %v1929
      %v1931 = vsel %vm739, %v1928, 0.0
      %1932 = vadd.xlane.f32.xlu0 %v1931
      %v1933 = vpop.xlane.xlu0 %1932
      %v1934 = vsel %vm739, %v1930, 0.0
      %1935 = vadd.xlane.f32.xlu0 %v1934
      %v1936 = vpop.xlane.xlu0 %1935
      %v1937 = vrcp.pop %v1933
      %v1938 = vrcp.pop %v1936
      %v1939 = vmul.f32 %v1928, %v1937
      %v1940 = vmul.f32 %v1930, %v1938
      %v1941 = vpack.c.bf16 %v1940, %v1939
      %1942 = vrot.lane.b32.xlu0 %v1893, 64
      %v1943 = vpop.permute.xlu0 %1942
      %v1946 = vsel %vm739, %v1941, 0
      %1948 = vmatpush.bf16.msra.mxu0 0
      %1949 = vmatpush.bf16.msra.mxu0 0
      %1950 = vmatpush.bf16.msra.mxu0 0
      %1951 = vmatpush.bf16.msra.mxu0 0
      %1952 = vmatpush.bf16.msra.mxu0 0
      %1953 = vmatpush.bf16.msra.mxu0 0
      %1954 = vmatpush.bf16.msra.mxu0 0
      %1955 = vmatpush.bf16.msra.mxu0 %v1943
      %1956 = vmatmul.bf16.gmra.mxu0 %v1946
      %v1957 = vpop.f32.mrf.mxu0
      %v1958 = vadd.f32 0.0, %v1957
      %v1959 = vpop.f32.mrf.mxu0
      %v1960 = vadd.f32 0.0, %v1959
      %1961 = vdwg.mxu0
      %1962 = vrot.lane.b32.xlu0 %v1893, 120
      %v1963 = vpop.permute.xlu0 %1962
      %1964 = vrot.lane.b32.xlu0 %v1893, 88
      %v1965 = vpop.permute.xlu0 %1964
      %v1967 = vsel %vm716, %v1963, 0
      %v1970 = vsel %vm716, %v1965, 0
      %1972 = vmatpush.bf16.xpose.msra.mxu0 0
      %1973 = vmatpush.bf16.xpose.msra.mxu0 0
      %1974 = vmatpush.bf16.xpose.msra.mxu0 0
      %1975 = vmatpush.bf16.xpose.msra.mxu0 0
      %1976 = vmatpush.bf16.xpose.msra.mxu0 0
      %1977 = vmatpush.bf16.xpose.msra.mxu0 0
      %1978 = vmatpush.bf16.xpose.msra.mxu0 0
      %1979 = vmatpush.bf16.xpose.msra.mxu0 %v1970
      %1980 = vmatmul.bf16.gmra.mxu0 %v1967
      %v1981 = vpop.f32.mrf.mxu0
      %v1982 = vadd.f32 0.0, %v1981
      %v1983 = vpop.f32.mrf.mxu0
      %v1984 = vadd.f32 0.0, %v1983
      %1985 = vdwg.mxu0
      %v1986 = vsel %vm617, %v1982, -1e+30
      %v1987 = vsel %vm617, %v1984, -1e+30
      %v1988 = vsel %vm739, %v1986, -inf
      %1989 = vmax.xlane.f32.xlu0 %v1988
      %v1990 = vpop.xlane.xlu0 %1989
      %v1991 = vsel %vm739, %v1987, -inf
      %1992 = vmax.xlane.f32.xlu0 %v1991
      %v1993 = vpop.xlane.xlu0 %1992
      %v1994 = vsub.f32 %v1986, %v1990
      %v1995 = vsub.f32 %v1987, %v1993
      %v1996 = vmul.f32 %v1994, 1.442695
      %v1997 = vpow.pop %v1996
      %v1998 = vmul.f32 %v1995, 1.442695
      %v1999 = vpow.pop %v1998
      %v2000 = vsel %vm739, %v1997, 0.0
      %2001 = vadd.xlane.f32.xlu0 %v2000
      %v2002 = vpop.xlane.xlu0 %2001
      %v2003 = vsel %vm739, %v1999, 0.0
      %2004 = vadd.xlane.f32.xlu0 %v2003
      %v2005 = vpop.xlane.xlu0 %2004
      %v2006 = vrcp.pop %v2002
      %v2007 = vrcp.pop %v2005
      %v2008 = vmul.f32 %v1997, %v2006
      %v2009 = vmul.f32 %v1999, %v2007
      %v2010 = vpack.c.bf16 %v2009, %v2008
      %2011 = vrot.lane.b32.xlu0 %v1893, 56
      %v2012 = vpop.permute.xlu0 %2011
      %v2015 = vsel %vm739, %v2010, 0
      %2017 = vmatpush.bf16.msra.mxu0 0
      %2018 = vmatpush.bf16.msra.mxu0 0
      %2019 = vmatpush.bf16.msra.mxu0 0
      %2020 = vmatpush.bf16.msra.mxu0 0
      %2021 = vmatpush.bf16.msra.mxu0 0
      %2022 = vmatpush.bf16.msra.mxu0 0
      %2023 = vmatpush.bf16.msra.mxu0 0
      %2024 = vmatpush.bf16.msra.mxu0 %v2012
      %2025 = vmatmul.bf16.gmra.mxu0 %v2015
      %v2026 = vpop.f32.mrf.mxu0
      %v2027 = vadd.f32 0.0, %v2026
      %v2028 = vpop.f32.mrf.mxu0
      %v2029 = vadd.f32 0.0, %v2028
      %2030 = vdwg.mxu0
      %2031 = vrot.lane.b32.xlu0 %v1893, 112
      %v2032 = vpop.permute.xlu0 %2031
      %2033 = vrot.lane.b32.xlu0 %v1893, 80
      %v2034 = vpop.permute.xlu0 %2033
      %v2036 = vsel %vm716, %v2032, 0
      %v2039 = vsel %vm716, %v2034, 0
      %2041 = vmatpush.bf16.xpose.msra.mxu0 0
      %2042 = vmatpush.bf16.xpose.msra.mxu0 0
      %2043 = vmatpush.bf16.xpose.msra.mxu0 0
      %2044 = vmatpush.bf16.xpose.msra.mxu0 0
      %2045 = vmatpush.bf16.xpose.msra.mxu0 0
      %2046 = vmatpush.bf16.xpose.msra.mxu0 0
      %2047 = vmatpush.bf16.xpose.msra.mxu0 0
      %2048 = vmatpush.bf16.xpose.msra.mxu0 %v2039
      %2049 = vmatmul.bf16.gmra.mxu0 %v2036
      %v2050 = vpop.f32.mrf.mxu0
      %v2051 = vadd.f32 0.0, %v2050
      %v2052 = vpop.f32.mrf.mxu0
      %v2053 = vadd.f32 0.0, %v2052
      %2054 = vdwg.mxu0
      %v2055 = vsel %vm617, %v2051, -1e+30
      %v2056 = vsel %vm617, %v2053, -1e+30
      %v2057 = vsel %vm739, %v2055, -inf
      %2058 = vmax.xlane.f32.xlu0 %v2057
      %v2059 = vpop.xlane.xlu0 %2058
      %v2060 = vsel %vm739, %v2056, -inf
      %2061 = vmax.xlane.f32.xlu0 %v2060
      %v2062 = vpop.xlane.xlu0 %2061
      %v2063 = vsub.f32 %v2055, %v2059
      %v2064 = vsub.f32 %v2056, %v2062
      %v2065 = vmul.f32 %v2063, 1.442695
      %v2066 = vpow.pop %v2065
      %v2067 = vmul.f32 %v2064, 1.442695
      %v2068 = vpow.pop %v2067
      %v2069 = vsel %vm739, %v2066, 0.0
      %2070 = vadd.xlane.f32.xlu0 %v2069
      %v2071 = vpop.xlane.xlu0 %2070
      %v2072 = vsel %vm739, %v2068, 0.0
      %2073 = vadd.xlane.f32.xlu0 %v2072
      %v2074 = vpop.xlane.xlu0 %2073
      %v2075 = vrcp.pop %v2071
      %v2076 = vrcp.pop %v2074
      %v2077 = vmul.f32 %v2066, %v2075
      %v2078 = vmul.f32 %v2068, %v2076
      %v2079 = vpack.c.bf16 %v2078, %v2077
      %2080 = vrot.lane.b32.xlu0 %v1893, 48
      %v2081 = vpop.permute.xlu0 %2080
      %v2084 = vsel %vm739, %v2079, 0
      %2086 = vmatpush.bf16.msra.mxu0 0
      %2087 = vmatpush.bf16.msra.mxu0 0
      %2088 = vmatpush.bf16.msra.mxu0 0
      %2089 = vmatpush.bf16.msra.mxu0 0
      %2090 = vmatpush.bf16.msra.mxu0 0
      %2091 = vmatpush.bf16.msra.mxu0 0
      %2092 = vmatpush.bf16.msra.mxu0 0
      %2093 = vmatpush.bf16.msra.mxu0 %v2081
      %2094 = vmatmul.bf16.gmra.mxu0 %v2084
      %v2095 = vpop.f32.mrf.mxu0
      %v2096 = vadd.f32 0.0, %v2095
      %v2097 = vpop.f32.mrf.mxu0
      %v2098 = vadd.f32 0.0, %v2097
      %2099 = vdwg.mxu0
      %2100 = vrot.lane.b32.xlu0 %v1893, 104
      %v2101 = vpop.permute.xlu0 %2100
      %2102 = vrot.lane.b32.xlu0 %v1893, 72
      %v2103 = vpop.permute.xlu0 %2102
      %v2105 = vsel %vm716, %v2101, 0
      %v2108 = vsel %vm716, %v2103, 0
      %2110 = vmatpush.bf16.xpose.msra.mxu0 0
      %2111 = vmatpush.bf16.xpose.msra.mxu0 0
      %2112 = vmatpush.bf16.xpose.msra.mxu0 0
      %2113 = vmatpush.bf16.xpose.msra.mxu0 0
      %2114 = vmatpush.bf16.xpose.msra.mxu0 0
      %2115 = vmatpush.bf16.xpose.msra.mxu0 0
      %2116 = vmatpush.bf16.xpose.msra.mxu0 0
      %2117 = vmatpush.bf16.xpose.msra.mxu0 %v2108
      %2118 = vmatmul.bf16.gmra.mxu0 %v2105
      %v2119 = vpop.f32.mrf.mxu0
      %v2120 = vadd.f32 0.0, %v2119
      %v2121 = vpop.f32.mrf.mxu0
      %v2122 = vadd.f32 0.0, %v2121
      %2123 = vdwg.mxu0
      %v2124 = vsel %vm617, %v2120, -1e+30
      %v2125 = vsel %vm617, %v2122, -1e+30
      %v2126 = vsel %vm739, %v2124, -inf
      %2127 = vmax.xlane.f32.xlu0 %v2126
      %v2128 = vpop.xlane.xlu0 %2127
      %v2129 = vsel %vm739, %v2125, -inf
      %2130 = vmax.xlane.f32.xlu0 %v2129
      %v2131 = vpop.xlane.xlu0 %2130
      %v2132 = vsub.f32 %v2124, %v2128
      %v2133 = vsub.f32 %v2125, %v2131
      %v2134 = vmul.f32 %v2132, 1.442695
      %v2135 = vpow.pop %v2134
      %v2136 = vmul.f32 %v2133, 1.442695
      %v2137 = vpow.pop %v2136
      %v2138 = vsel %vm739, %v2135, 0.0
      %2139 = vadd.xlane.f32.xlu0 %v2138
      %v2140 = vpop.xlane.xlu0 %2139
      %v2141 = vsel %vm739, %v2137, 0.0
      %2142 = vadd.xlane.f32.xlu0 %v2141
      %v2143 = vpop.xlane.xlu0 %2142
      %v2144 = vrcp.pop %v2140
      %v2145 = vrcp.pop %v2143
      %v2146 = vmul.f32 %v2135, %v2144
      %v2147 = vmul.f32 %v2137, %v2145
      %v2148 = vpack.c.bf16 %v2147, %v2146
      %2149 = vrot.lane.b32.xlu0 %v1893, 40
      %v2150 = vpop.permute.xlu0 %2149
      %v2153 = vsel %vm739, %v2148, 0
      %2155 = vmatpush.bf16.msra.mxu0 0
      %2156 = vmatpush.bf16.msra.mxu0 0
      %2157 = vmatpush.bf16.msra.mxu0 0
      %2158 = vmatpush.bf16.msra.mxu0 0
      %2159 = vmatpush.bf16.msra.mxu0 0
      %2160 = vmatpush.bf16.msra.mxu0 0
      %2161 = vmatpush.bf16.msra.mxu0 0
      %2162 = vmatpush.bf16.msra.mxu0 %v2150
      %2163 = vmatmul.bf16.gmra.mxu0 %v2153
      %v2164 = vpop.f32.mrf.mxu0
      %v2165 = vadd.f32 0.0, %v2164
      %v2166 = vpop.f32.mrf.mxu0
      %v2167 = vadd.f32 0.0, %v2166
      %2168 = vdwg.mxu0
      %2171 = vrot.lane.b32.xlu0 %v2027, 8
      %v2172 = vpop.permute.xlu0 %2171
      %2173 = vrot.lane.b32.xlu0 %v2029, 8
      %v2174 = vpop.permute.xlu0 %2173
      %2179 = vrot.lane.b32.xlu0 %v2096, 16
      %v2180 = vpop.permute.xlu0 %2179
      %2181 = vrot.lane.b32.xlu0 %v2098, 16
      %v2182 = vpop.permute.xlu0 %2181
      %2187 = vrot.lane.b32.xlu0 %v2165, 24
      %v2188 = vpop.permute.xlu0 %2187
      %2189 = vrot.lane.b32.xlu0 %v2167, 24
      %v2190 = vpop.permute.xlu0 %2189
      %v2193 = vsel %vm716, %v1958, %v2172
      %v2194 = vsel %vm716, %v1960, %v2174
      %v2195 = vsel %vm739, %v2193, %v2180
      %v2196 = vsel %vm739, %v2194, %v2182
      %v2197 = vsel %vm1018, %v2195, %v2188
      %v2198 = vsel %vm1018, %v2196, %v2190
      %v2199 = vpack.c.bf16 %v2198, %v2197
      %s2200 = scalar_lea.vmem %s5, 32
      %v2201 = vld [vmem:[%s2200] sm:$0xf]
      %v2202 = vld [vmem:[%s2200 + $0x4] sm:$0xf]
      %v2203 = vld [vmem:[%s2200 + $0x8] sm:$0xf]
      %v2204 = vld [vmem:[%s2200 + $0xc] sm:$0xf]
      %v2205 = vperm.slane %v1806, 5
      %v2210 = vunpack.c.l.b16 %v2201
      %v2211 = vunpack.c.l.b16 %v2202
      %v2212 = vunpack.c.l.b16 %v2203
      %v2213 = vunpack.c.l.b16 %v2204
      %v2214 = vpack.c.b16 %v2211, %v2210
      %v2215 = vpack.c.b16 %v2213, %v2212
      %v2219 = vsel %vm619, %v2199, 0
      %2221 = vmatpush.bf16.msra.mxu0 0
      %2222 = vmatpush.bf16.msra.mxu0 0
      %2223 = vmatpush.bf16.msra.mxu0 0
      %2224 = vmatpush.bf16.msra.mxu0 0
      %2225 = vmatpush.bf16.msra.mxu0 0
      %2226 = vmatpush.bf16.msra.mxu0 0
      %2227 = vmatpush.bf16.msra.mxu0 %v2215
      %2228 = vmatpush.bf16.msra.mxu0 %v2214
      %2229 = vmatmul.bf16.gmra.mxu0 %v2219
      %v2230 = vpop.f32.mrf.mxu0
      %v2231 = vadd.f32 %v2205, %v2230
      %v2232 = vpop.f32.mrf.mxu0
      %v2233 = vadd.f32 %v2205, %v2232
      %2234 = vdwg.mxu0
      %v2235 = vadd.f32 %v1803, %v2231
      %v2236 = vadd.f32 %v1804, %v2233
      %v2237 = vsel %vm619, %v2235, 0.0
      %2238 = vadd.xlane.f32.xlu0 %v2237
      %v2239 = vpop.xlane.xlu0 %2238
      %v2240 = vsel %vm619, %v2236, 0.0
      %2241 = vadd.xlane.f32.xlu0 %v2240
      %v2242 = vpop.xlane.xlu0 %2241
      %v2243 = vmul.f32 %v2239, %v632
      %v2244 = vmul.f32 %v2242, %v632
      %v2245 = vsub.f32 %v2235, %v2243
      %v2246 = vsub.f32 %v2236, %v2244
      %v2247 = vmul.f32 %v2245, %v2245
      %v2248 = vmul.f32 %v2246, %v2246
      %v2249 = vsel %vm619, %v2247, 0.0
      %2250 = vadd.xlane.f32.xlu0 %v2249
      %v2251 = vpop.xlane.xlu0 %2250
      %v2252 = vsel %vm619, %v2248, 0.0
      %2253 = vadd.xlane.f32.xlu0 %v2252
      %v2254 = vpop.xlane.xlu0 %2253
      %v2255 = vmul.f32 %v2251, %v632
      %v2256 = vmul.f32 %v2254, %v632
      %v2257 = vadd.f32 %v2255, 1e-06
      %v2258 = vadd.f32 %v2256, 1e-06
      %v2259 = vrsqrt.pop %v2257
      %v2260 = vmul.f32 %v2259, %v2257
      %v2261 = vmul.f32 %v2260, %v2259
      %v2262 = vmul.f32 0.5, %v2261
      %v2263 = vsub.f32 1.5, %v2262
      %v2264 = vmul.f32 %v2259, %v2263
      %vm2265 = vweird.f32 %v2257
      %vm2266 = vweird.f32 %v2259
      %vm2267 = vmor %vm2265, %vm2266
      %v2268 = vsel %vm2267, %v2259, %v2264
      %v2269 = vrsqrt.pop %v2258
      %v2270 = vmul.f32 %v2269, %v2258
      %v2271 = vmul.f32 %v2270, %v2269
      %v2272 = vmul.f32 0.5, %v2271
      %v2273 = vsub.f32 1.5, %v2272
      %v2274 = vmul.f32 %v2269, %v2273
      %vm2275 = vweird.f32 %v2258
      %vm2276 = vweird.f32 %v2269
      %vm2277 = vmor %vm2275, %vm2276
      %v2278 = vsel %vm2277, %v2269, %v2274
      %v2279 = vmul.f32 %v2245, %v2268
      %v2280 = vmul.f32 %v2246, %v2278
      %v2281 = vperm.slane %v1806, 2
      %v2282 = vmul.f32 %v2279, %v2281
      %v2283 = vmul.f32 %v2280, %v2281
      %v2284 = vperm.slane %v1806, 3
      %v2285 = vadd.f32 %v2282, %v2284
      %v2286 = vadd.f32 %v2283, %v2284
      %v2287 = vpack.c.bf16 %v2286, %v2285
      %s2288 = scalar_lea.vmem %s6, 32
      %v2289 = vld [vmem:[%s2288] sm:$0xf]
      %v2290 = vld [vmem:[%s2288 + $0x4] sm:$0xf]
      %v2291 = vld [vmem:[%s2288 + $0x8] sm:$0xf]
      %v2292 = vld [vmem:[%s2288 + $0xc] sm:$0xf]
      %v2293 = vperm.slane %v1806, 6
      %v2298 = vunpack.c.l.b16 %v2289
      %v2299 = vunpack.c.l.b16 %v2290
      %v2300 = vunpack.c.l.b16 %v2291
      %v2301 = vunpack.c.l.b16 %v2292
      %v2302 = vpack.c.b16 %v2299, %v2298
      %v2303 = vpack.c.b16 %v2301, %v2300
      %v2307 = vsel %vm619, %v2287, 0
      %2309 = vmatpush.bf16.msra.mxu0 0
      %2310 = vmatpush.bf16.msra.mxu0 0
      %2311 = vmatpush.bf16.msra.mxu0 0
      %2312 = vmatpush.bf16.msra.mxu0 0
      %2313 = vmatpush.bf16.msra.mxu0 0
      %2314 = vmatpush.bf16.msra.mxu0 0
      %2315 = vmatpush.bf16.msra.mxu0 %v2303
      %2316 = vmatpush.bf16.msra.mxu0 %v2302
      %2317 = vmatmul.bf16.gmra.mxu0 %v2307
      %v2318 = vpop.f32.mrf.mxu0
      %v2319 = vadd.f32 %v2293, %v2318
      %v2320 = vpop.f32.mrf.mxu0
      %v2321 = vadd.f32 %v2293, %v2320
      %2322 = vdwg.mxu0
      %v2323 = vmul.f32 %v2319, 0.5
      %v2324 = vmul.f32 %v2321, 0.5
      %v2325 = vmul.f32 %v2319, 0.7978846
      %v2326 = vmul.f32 %v2321, 0.7978846
      %v2327 = vmul.f32 %v2319, 0.044715
      %v2328 = vmul.f32 %v2321, 0.044715
      %v2329 = vmul.f32 %v2327, %v2319
      %v2330 = vmul.f32 %v2328, %v2321
      %v2331 = vadd.f32 %v2329, 1.0
      %v2332 = vadd.f32 %v2330, 1.0
      %v2333 = vmul.f32 %v2325, %v2331
      %v2334 = vmul.f32 %v2326, %v2332
      %v2335 = vtanh.pop %v2333
      %v2336 = vtanh.pop %v2334
      %v2337 = vadd.f32 %v2335, 1.0
      %v2338 = vadd.f32 %v2336, 1.0
      %v2339 = vmul.f32 %v2323, %v2337
      %v2340 = vmul.f32 %v2324, %v2338
      %v2341 = vpack.c.bf16 %v2340, %v2339
      %s2342 = scalar_lea.vmem %s7, 64
      %v2343 = vld [vmem:[%s2342] sm:$0xf]
      %v2344 = vld [vmem:[%s2342 + $0x4] sm:$0xf]
      %v2345 = vld [vmem:[%s2342 + $0x8] sm:$0xf]
      %v2346 = vld [vmem:[%s2342 + $0xc] sm:$0xf]
      %v2347 = vld [vmem:[%s2342 + $0x10] sm:$0xf]
      %v2348 = vld [vmem:[%s2342 + $0x14] sm:$0xf]
      %v2349 = vld [vmem:[%s2342 + $0x18] sm:$0xf]
      %v2350 = vld [vmem:[%s2342 + $0x1c] sm:$0xf]
      %v2351 = vperm.slane %v1806, 7
      %v2360 = vunpack.c.l.b16 %v2343
      %v2361 = vunpack.c.l.b16 %v2344
      %v2362 = vunpack.c.l.b16 %v2345
      %v2363 = vunpack.c.l.b16 %v2346
      %v2364 = vunpack.c.l.b16 %v2347
      %v2365 = vunpack.c.l.b16 %v2348
      %v2366 = vunpack.c.l.b16 %v2349
      %v2367 = vunpack.c.l.b16 %v2350
      %v2368 = vpack.c.b16 %v2361, %v2360
      %v2369 = vpack.c.b16 %v2363, %v2362
      %v2370 = vpack.c.b16 %v2365, %v2364
      %v2371 = vpack.c.b16 %v2367, %v2366
      %v2377 = vsel %vm1195, %v2341, 0
      %2379 = vmatpush.bf16.msra.mxu0 0
      %2380 = vmatpush.bf16.msra.mxu0 0
      %2381 = vmatpush.bf16.msra.mxu0 0
      %2382 = vmatpush.bf16.msra.mxu0 0
      %2383 = vmatpush.bf16.msra.mxu0 %v2371
      %2384 = vmatpush.bf16.msra.mxu0 %v2370
      %2385 = vmatpush.bf16.msra.mxu0 %v2369
      %2386 = vmatpush.bf16.msra.mxu0 %v2368
      %2387 = vmatmul.bf16.gmra.mxu0 %v2377
      %v2388 = vpop.f32.mrf.mxu0
      %v2389 = vadd.f32 %v2351, %v2388
      %v2390 = vpop.f32.mrf.mxu0
      %2391 = vdwg.mxu0
      %v2392 = vadd.f32 %v2235, %v2389
      %v2393 = vld [vmem:[%s8] sm:$0xff]
      %v2394 = vsel %vm619, %v2392, 0.0
      %2395 = vadd.xlane.f32.xlu0 %v2394
      %v2396 = vpop.xlane.xlu0 %2395
      %v2397 = vmul.f32 %v2396, %v632
      %v2398 = vsub.f32 %v2392, %v2397
      %v2399 = vmul.f32 %v2398, %v2398
      %v2400 = vsel %vm619, %v2399, 0.0
      %2401 = vadd.xlane.f32.xlu0 %v2400
      %v2402 = vpop.xlane.xlu0 %2401
      %v2403 = vmul.f32 %v2402, %v632
      %v2404 = vadd.f32 %v2403, 1e-06
      %v2405 = vrsqrt.pop %v2404
      %v2406 = vmul.f32 %v2405, %v2404
      %v2407 = vmul.f32 %v2406, %v2405
      %v2408 = vmul.f32 0.5, %v2407
      %v2409 = vsub.f32 1.5, %v2408
      %v2410 = vmul.f32 %v2405, %v2409
      %vm2411 = vweird.f32 %v2404
      %vm2412 = vweird.f32 %v2405
      %vm2413 = vmor %vm2411, %vm2412
      %v2414 = vsel %vm2413, %v2405, %v2410
      %v2415 = vmul.f32 %v2398, %v2414
      %v2416 = vperm.slane %v2393, 0
      %v2417 = vmul.f32 %v2415, %v2416
      %v2418 = vperm.slane %v2393, 1
      %v2419 = vadd.f32 %v2417, %v2418
      %v2420 = vpack.c.bf16 %v2419, %v2419
      %v2421 = vld [vmem:[%s9] sm:$0xf]
      %v2422 = vld [vmem:[%s9 + $0x4] sm:$0xf]
      %v2423 = vld [vmem:[%s9 + $0x8] sm:$0xf]
      %v2424 = vld [vmem:[%s9 + $0xc] sm:$0xf]
      %v2425 = vperm.slane %v2393, 2
      %v2430 = vunpack.c.l.b16 %v2421
      %v2431 = vunpack.c.l.b16 %v2422
      %v2432 = vunpack.c.l.b16 %v2423
      %v2433 = vunpack.c.l.b16 %v2424
      %v2434 = vpack.c.b16 %v2431, %v2430
      %v2435 = vpack.c.b16 %v2433, %v2432
      %v2439 = vsel %vm619, %v2420, 0
      %2441 = vmatpush.bf16.msra.mxu0 0
      %2442 = vmatpush.bf16.msra.mxu0 0
      %2443 = vmatpush.bf16.msra.mxu0 0
      %2444 = vmatpush.bf16.msra.mxu0 0
      %2445 = vmatpush.bf16.msra.mxu0 0
      %2446 = vmatpush.bf16.msra.mxu0 0
      %2447 = vmatpush.bf16.msra.mxu0 %v2435
      %2448 = vmatpush.bf16.msra.mxu0 %v2434
      %2449 = vmatmul.bf16.gmra.mxu0 %v2439
      %v2450 = vpop.f32.mrf.mxu0
      %v2451 = vadd.f32 %v2425, %v2450
      %v2452 = vpop.f32.mrf.mxu0
      %2453 = vdwg.mxu0
      %2454 = vst [vmem:[%s357] sm:$0xff] %v2451
      %p2455 = scmp.lt.s32.totalorder %s21, 1
      %s2456 = scalar_select %p2455, %s21, 1
      %s2457 = smul.addr %s2456, 8
      %s2458 = scalar_lea.vmem %s10, %s2457
      // Predicated region
      $region61: #{vit_model_forward.1} parent=59 // pred_check
        %p2459 = pneg %p254
      $region62: #{vit_model_forward.1} parent=59 // pred_check_branch
        %2461 = sbr.rel (%p2459) target = $region64
      $region63: #{vit_model_forward.1} parent=59 // pred_region
        _
      $region64: #{vit_model_forward.1} parent=59 // pred_fallthru
        _
    $region60: #{vit_model_forward.1} parent=5 // pred_fallthru
      _
    %p2462 = scmp.le.s32.totalorder 2, %s16
    // Predicated region
    $region65: #{vit_model_forward.1} parent=5 // pred_check
      %p2463 = pneg %p2462
    $region66: #{vit_model_forward.1} parent=5 // pred_check_branch
      %2465 = sbr.rel (%p2463) target = $region68
    $region67: #{vit_model_forward.1} parent=5 // pred_region
      %s2466 = ssub.s32 %s16, 2
      // Predicated region
      $region69: #{vit_model_forward.1} parent=67 // pred_check
        %p2467 = pneg %p260
      $region70: #{vit_model_forward.1} parent=67 // pred_check_branch
        %2469 = sbr.rel (%p2467) target = $region72
      $region71: #{vit_model_forward.1} parent=67 // pred_region
        %p2470 = scmp.lt.s32.totalorder %s22, 1
        %s2471 = scalar_select %p2470, %s22, 1
        %s2472 = smul.addr %s2471, 8
        %s2473 = scalar_lea.vmem %s10, %s2472
      $region72: #{vit_model_forward.1} parent=67 // pred_fallthru
        _
    $region68: #{vit_model_forward.1} parent=5 // pred_fallthru
      _
  $region6: #{vit_model_forward.1} parent=0 // loop_footer
    %s20 = sadd.s32 1, %s16
  $region7: #{vit_model_forward.1} parent=0 // loop_footer_branch
    %15 = sbr.rel target = $region3
  $region8: #{vit_model_forward.1} parent=0 // loop_exit
    _

</llo_original>
